<compile_context>
chip_gen: v7x
topology: tpu7x:2x2x1
jax: 0.10.0
libtpu: 0.0.40
codegen_flags: <defaults>
</compile_context>

<pallas_src>
import jax
import jax.numpy as jnp
from jax.experimental import pallas as pl
from jax.experimental.pallas import tpu as pltpu

IN_DIM = 784            # 1*28*28
IN_PAD = 896            # 7 * 128  (lane-dense padded feature dim)
HID = 256
LATENT = 20

# bf16 operands + f32 accumulation (review recommendation).  Use jnp.float32
# here if bit-level parity with the fp32 PyTorch module is required.
COMPUTE_DTYPE = jnp.bfloat16


def _pick_tile_b():
    """256 rows for v6e/v7x (2x256x256 MXU), 128 for v5e (4x128x128 MXU)."""
    try:
        kind = jax.devices()[0].device_kind.lower()
    except Exception:
        return 256
    if ("v5 lite" in kind) or ("v5e" in kind) or ("v5lite" in kind):
        return 128
    return 256


def ae_kernel(x_ref, w1_ref, b1_ref, w2_ref, b2_ref,
              w3_ref, b3_ref, w4_ref, b4_ref, o_ref):
    """Whole autoencoder forward on one (TILE_B, 896) batch tile.

    Weights are VMEM-resident (constant index_map); matmuls run in
    COMPUTE_DTYPE with f32 accumulation; bias add / ReLU in f32.
    """
    x = x_ref[...]                                                   # (TB, 896) bf16
    # encoder: Linear(784->256) + ReLU
    h1 = jnp.dot(x, w1_ref[...], preferred_element_type=jnp.float32) + b1_ref[...]
    h1 = jnp.maximum(h1, 0.0)
    # encoder: Linear(256->20)
    z = jnp.dot(h1.astype(w2_ref.dtype), w2_ref[...],
                preferred_element_type=jnp.float32) + b2_ref[...]
    # decoder: Linear(20->256) + ReLU
    h2 = jnp.dot(z.astype(w3_ref.dtype), w3_ref[...],
                 preferred_element_type=jnp.float32) + b3_ref[...]
    h2 = jnp.maximum(h2, 0.0)
    # decoder: Linear(256->784)  (output columns padded to 896, pad cols = 0)
    y = jnp.dot(h2.astype(w4_ref.dtype), w4_ref[...],
                preferred_element_type=jnp.float32) + b4_ref[...]
    o_ref[...] = y.astype(o_ref.dtype)                               # (TB, 896) f32


def init_params(key):
    """PyTorch-style (uniform +-1/sqrt(fan_in)) init, fp32, (in, out) layout."""
    def linear(k, fan_in, fan_out):
        kw, kb = jax.random.split(k)
        bound = 1.0 / jnp.sqrt(fan_in)
        w = jax.random.uniform(kw, (fan_in, fan_out), jnp.float32, -bound, bound)
        b = jax.random.uniform(kb, (1, fan_out), jnp.float32, -bound, bound)
        return w, b

    k1, k2, k3, k4 = jax.random.split(key, 4)
    w1, b1 = linear(k1, IN_DIM, HID)     # encoder Linear(784, 256)
    w2, b2 = linear(k2, HID, LATENT)     # encoder Linear(256, 20)
    w3, b3 = linear(k3, LATENT, HID)     # decoder Linear(20, 256)
    w4, b4 = linear(k4, HID, IN_DIM)     # decoder Linear(256, 784)
    return (w1, b1, w2, b2, w3, b3, w4, b4)


def prepare_params(params):
    """Pad 784->896 (zero rows of w1 / zero cols of w4+b4) and cast weights
    to COMPUTE_DTYPE.  Biases stay f32 (bias add / ReLU done in f32)."""
    w1, b1, w2, b2, w3, b3, w4, b4 = params
    pad = IN_PAD - IN_DIM
    w1p = jnp.pad(w1, ((0, pad), (0, 0))).astype(COMPUTE_DTYPE)   # (896, 256)
    w2p = w2.astype(COMPUTE_DTYPE)                                # (256, 20)
    w3p = w3.astype(COMPUTE_DTYPE)                                # (20, 256)
    w4p = jnp.pad(w4, ((0, 0), (0, pad))).astype(COMPUTE_DTYPE)   # (256, 896)
    b4p = jnp.pad(b4, ((0, 0), (0, pad)))                         # (1, 896) f32
    return (w1p, b1, w2p, b2, w3p, b3, w4p, b4p)


def autoencoder_forward(x_nchw, prepared_params, tile_b=None):
    b = x_nchw.shape[0]
    if tile_b is None:
        tile_b = _pick_tile_b()

    # x.view(batch, -1), cast to compute dtype, pad features 784->896 and
    # batch up to a multiple of the tile.
    x2d = x_nchw.reshape(b, IN_DIM).astype(COMPUTE_DTYPE)
    pad_b = (-b) % tile_b
    x2d = jnp.pad(x2d, ((0, pad_b), (0, IN_PAD - IN_DIM)))
    bp = b + pad_b
    grid = (bp // tile_b,)

    w1, b1, w2, b2, w3, b3, w4, b4 = prepared_params

    # Weights/biases: constant index_map -> DMA'd once, VMEM-resident.
    const = lambda i: (0, 0)
    in_specs = [
        pl.BlockSpec((tile_b, IN_PAD), lambda i: (i, 0)),   # x tile (moving)
        pl.BlockSpec((IN_PAD, HID), const),                 # w1
        pl.BlockSpec((1, HID), const),                      # b1
        pl.BlockSpec((HID, LATENT), const),                 # w2
        pl.BlockSpec((1, LATENT), const),                   # b2
        pl.BlockSpec((LATENT, HID), const),                 # w3
        pl.BlockSpec((1, HID), const),                      # b3
        pl.BlockSpec((HID, IN_PAD), const),                 # w4
        pl.BlockSpec((1, IN_PAD), const),                   # b4
    ]
    out_spec = pl.BlockSpec((tile_b, IN_PAD), lambda i: (i, 0))

    flops = 2 * bp * (IN_PAD * HID + HID * LATENT + LATENT * HID + HID * IN_PAD)
    weight_bytes = sum(int(p.size) * p.dtype.itemsize for p in prepared_params)
    bytes_accessed = int(x2d.size) * x2d.dtype.itemsize + bp * IN_PAD * 4 + weight_bytes

    out2d = pl.pallas_call(
        ae_kernel,
        out_shape=jax.ShapeDtypeStruct((bp, IN_PAD), jnp.float32),
        grid=grid,
        in_specs=in_specs,
        out_specs=out_spec,
        compiler_params=pltpu.CompilerParams(
            dimension_semantics=("parallel",),
            vmem_limit_bytes=32 << 20,
        ),
        cost_estimate=pl.CostEstimate(
            flops=int(flops), transcendentals=0, bytes_accessed=int(bytes_accessed)),
    )(x2d, w1, b1, w2, b2, w3, b3, w4, b4)

    # drop batch + feature padding, reshape like torch .view(batch, 1, 28, 28)
    return out2d[:b, :IN_DIM].reshape(b, 1, 28, 28)


if __name__ == "__main__":
    BATCH = 8   # small demo batch; kernel tiles/pads internally to the MXU size
    key = jax.random.PRNGKey(0)
    kx, kp = jax.random.split(key)
    x = jax.random.normal(kx, (BATCH, 1, 28, 28), dtype=jnp.float32)

    params = init_params(kp)
    prepared = prepare_params(params)

    y = autoencoder_forward(x, prepared)
    y = jax.block_until_ready(y)

    assert y.shape == (BATCH, 1, 28, 28), y.shape
    assert y.dtype == jnp.float32
    print("KERNEL_OK")
</pallas_src>

<mosaic_0001>
module attributes {stable_mosaic.version = 11 : i64} {
  func.func @ae_kernel(%arg0: i32, %arg1: memref<256x896xbf16, #tpu.memory_space<vmem>>, %arg2: memref<896x256xbf16, #tpu.memory_space<vmem>>, %arg3: memref<1x256xf32, #tpu.memory_space<vmem>>, %arg4: memref<256x20xbf16, #tpu.memory_space<vmem>>, %arg5: memref<1x20xf32, #tpu.memory_space<vmem>>, %arg6: memref<20x256xbf16, #tpu.memory_space<vmem>>, %arg7: memref<1x256xf32, #tpu.memory_space<vmem>>, %arg8: memref<256x896xbf16, #tpu.memory_space<vmem>>, %arg9: memref<1x896xf32, #tpu.memory_space<vmem>>, %arg10: memref<256x896xf32, #tpu.memory_space<vmem>>) attributes {dimension_semantics = [#tpu.dimension_semantics<parallel>], iteration_bounds = array<i64: 1>, scalar_prefetch = 0 : i64, scratch_operands = 0 : i64, tpu.core_type = #tpu.core_type<tc>, window_params = [{transform_indices = @transform_0, window_bounds = array<i64: 256, 896>}, {pipeline_mode = #tpu.pipeline_mode<synchronous>, transform_indices = @transform_1, window_bounds = array<i64: 896, 256>}, {pipeline_mode = #tpu.pipeline_mode<synchronous>, transform_indices = @transform_2, window_bounds = array<i64: 1, 256>}, {pipeline_mode = #tpu.pipeline_mode<synchronous>, transform_indices = @transform_3, window_bounds = array<i64: 256, 20>}, {pipeline_mode = #tpu.pipeline_mode<synchronous>, transform_indices = @transform_4, window_bounds = array<i64: 1, 20>}, {pipeline_mode = #tpu.pipeline_mode<synchronous>, transform_indices = @transform_5, window_bounds = array<i64: 20, 256>}, {pipeline_mode = #tpu.pipeline_mode<synchronous>, transform_indices = @transform_6, window_bounds = array<i64: 1, 256>}, {pipeline_mode = #tpu.pipeline_mode<synchronous>, transform_indices = @transform_7, window_bounds = array<i64: 256, 896>}, {pipeline_mode = #tpu.pipeline_mode<synchronous>, transform_indices = @transform_8, window_bounds = array<i64: 1, 896>}, {transform_indices = @transform_9, window_bounds = array<i64: 256, 896>}]} {
    %c0 = arith.constant 0 : index
    %c0_0 = arith.constant 0 : index
    %0 = vector.load %arg1[%c0, %c0_0] : memref<256x896xbf16, #tpu.memory_space<vmem>>, vector<256x896xbf16>
    %c0_1 = arith.constant 0 : index
    %c0_2 = arith.constant 0 : index
    %1 = vector.load %arg2[%c0_1, %c0_2] : memref<896x256xbf16, #tpu.memory_space<vmem>>, vector<896x256xbf16>
    %cst = arith.constant dense<0.000000e+00> : vector<256x256xf32>
    %2 = tpu.matmul %0, %1, %cst {dimension_numbers = #tpu.dot_dimension_numbers<[1], [0], [0], [1], [0, 0, 1, 1], [], []>} : vector<256x896xbf16>, vector<896x256xbf16>, vector<256x256xf32> -> vector<256x256xf32>
    %c0_3 = arith.constant 0 : index
    %c0_4 = arith.constant 0 : index
    %3 = vector.load %arg3[%c0_3, %c0_4] : memref<1x256xf32, #tpu.memory_space<vmem>>, vector<1x256xf32>
    %4 = vector.broadcast %3 : vector<1x256xf32> to vector<256x256xf32>
    %5 = arith.addf %2, %4 : vector<256x256xf32>
    %cst_5 = arith.constant 0.000000e+00 : f32
    %6 = vector.broadcast %cst_5 : f32 to vector<256x256xf32>
    %7 = arith.maximumf %5, %6 : vector<256x256xf32>
    %8 = arith.truncf %7 : vector<256x256xf32> to vector<256x256xbf16>
    %c0_6 = arith.constant 0 : index
    %c0_7 = arith.constant 0 : index
    %9 = vector.load %arg4[%c0_6, %c0_7] : memref<256x20xbf16, #tpu.memory_space<vmem>>, vector<256x20xbf16>
    %cst_8 = arith.constant dense<0.000000e+00> : vector<256x20xf32>
    %10 = tpu.matmul %8, %9, %cst_8 {dimension_numbers = #tpu.dot_dimension_numbers<[1], [0], [0], [1], [0, 0, 1, 1], [], []>} : vector<256x256xbf16>, vector<256x20xbf16>, vector<256x20xf32> -> vector<256x20xf32>
    %c0_9 = arith.constant 0 : index
    %c0_10 = arith.constant 0 : index
    %11 = vector.load %arg5[%c0_9, %c0_10] : memref<1x20xf32, #tpu.memory_space<vmem>>, vector<1x20xf32>
    %12 = vector.broadcast %11 : vector<1x20xf32> to vector<256x20xf32>
    %13 = arith.addf %10, %12 : vector<256x20xf32>
    %14 = arith.truncf %13 : vector<256x20xf32> to vector<256x20xbf16>
    %c0_11 = arith.constant 0 : index
    %c0_12 = arith.constant 0 : index
    %15 = vector.load %arg6[%c0_11, %c0_12] : memref<20x256xbf16, #tpu.memory_space<vmem>>, vector<20x256xbf16>
    %cst_13 = arith.constant dense<0.000000e+00> : vector<256x256xf32>
    %16 = tpu.matmul %14, %15, %cst_13 {dimension_numbers = #tpu.dot_dimension_numbers<[1], [0], [0], [1], [0, 0, 1, 1], [], []>} : vector<256x20xbf16>, vector<20x256xbf16>, vector<256x256xf32> -> vector<256x256xf32>
    %c0_14 = arith.constant 0 : index
    %c0_15 = arith.constant 0 : index
    %17 = vector.load %arg7[%c0_14, %c0_15] : memref<1x256xf32, #tpu.memory_space<vmem>>, vector<1x256xf32>
    %18 = vector.broadcast %17 : vector<1x256xf32> to vector<256x256xf32>
    %19 = arith.addf %16, %18 : vector<256x256xf32>
    %cst_16 = arith.constant 0.000000e+00 : f32
    %20 = vector.broadcast %cst_16 : f32 to vector<256x256xf32>
    %21 = arith.maximumf %19, %20 : vector<256x256xf32>
    %22 = arith.truncf %21 : vector<256x256xf32> to vector<256x256xbf16>
    %c0_17 = arith.constant 0 : index
    %c0_18 = arith.constant 0 : index
    %23 = vector.load %arg8[%c0_17, %c0_18] : memref<256x896xbf16, #tpu.memory_space<vmem>>, vector<256x896xbf16>
    %cst_19 = arith.constant dense<0.000000e+00> : vector<256x896xf32>
    %24 = tpu.matmul %22, %23, %cst_19 {dimension_numbers = #tpu.dot_dimension_numbers<[1], [0], [0], [1], [0, 0, 1, 1], [], []>} : vector<256x256xbf16>, vector<256x896xbf16>, vector<256x896xf32> -> vector<256x896xf32>
    %c0_20 = arith.constant 0 : index
    %c0_21 = arith.constant 0 : index
    %25 = vector.load %arg9[%c0_20, %c0_21] : memref<1x896xf32, #tpu.memory_space<vmem>>, vector<1x896xf32>
    %26 = vector.broadcast %25 : vector<1x896xf32> to vector<256x896xf32>
    %27 = arith.addf %24, %26 : vector<256x896xf32>
    %c0_22 = arith.constant 0 : index
    %c0_23 = arith.constant 0 : index
    %28 = vector.load %arg10[%c0_22, %c0_23] : memref<256x896xf32, #tpu.memory_space<vmem>>, vector<256x896xf32>
    tpu.vector_store %arg10[%c0_22, %c0_23], %27 {strides = array<i32>} : memref<256x896xf32, #tpu.memory_space<vmem>>, vector<256x896xf32>,
    return
  }
  func.func @transform_0(%arg0: i32) -> (i32, i32) {
    %c0_i32 = arith.constant 0 : i32
    %c0_i32_0 = arith.constant 0 : i32
    return %arg0, %c0_i32 : i32, i32
  }
  func.func @transform_1(%arg0: i32) -> (i32, i32) {
    %c0_i32 = arith.constant 0 : i32
    %c0_i32_0 = arith.constant 0 : i32
    %c0_i32_1 = arith.constant 0 : i32
    return %c0_i32, %c0_i32_0 : i32, i32
  }
  func.func @transform_2(%arg0: i32) -> (i32, i32) {
    %c0_i32 = arith.constant 0 : i32
    %c0_i32_0 = arith.constant 0 : i32
    %c0_i32_1 = arith.constant 0 : i32
    return %c0_i32, %c0_i32_0 : i32, i32
  }
  func.func @transform_3(%arg0: i32) -> (i32, i32) {
    %c0_i32 = arith.constant 0 : i32
    %c0_i32_0 = arith.constant 0 : i32
    %c0_i32_1 = arith.constant 0 : i32
    return %c0_i32, %c0_i32_0 : i32, i32
  }
  func.func @transform_4(%arg0: i32) -> (i32, i32) {
    %c0_i32 = arith.constant 0 : i32
    %c0_i32_0 = arith.constant 0 : i32
    %c0_i32_1 = arith.constant 0 : i32
    return %c0_i32, %c0_i32_0 : i32, i32
  }
  func.func @transform_5(%arg0: i32) -> (i32, i32) {
    %c0_i32 = arith.constant 0 : i32
    %c0_i32_0 = arith.constant 0 : i32
    %c0_i32_1 = arith.constant 0 : i32
    return %c0_i32, %c0_i32_0 : i32, i32
  }
  func.func @transform_6(%arg0: i32) -> (i32, i32) {
    %c0_i32 = arith.constant 0 : i32
    %c0_i32_0 = arith.constant 0 : i32
    %c0_i32_1 = arith.constant 0 : i32
    return %c0_i32, %c0_i32_0 : i32, i32
  }
  func.func @transform_7(%arg0: i32) -> (i32, i32) {
    %c0_i32 = arith.constant 0 : i32
    %c0_i32_0 = arith.constant 0 : i32
    %c0_i32_1 = arith.constant 0 : i32
    return %c0_i32, %c0_i32_0 : i32, i32
  }
  func.func @transform_8(%arg0: i32) -> (i32, i32) {
    %c0_i32 = arith.constant 0 : i32
    %c0_i32_0 = arith.constant 0 : i32
    %c0_i32_1 = arith.constant 0 : i32
    return %c0_i32, %c0_i32_0 : i32, i32
  }
  func.func @transform_9(%arg0: i32) -> (i32, i32) {
    %c0_i32 = arith.constant 0 : i32
    %c0_i32_0 = arith.constant 0 : i32
    return %arg0, %c0_i32 : i32, i32
  }
}

</mosaic_0001>

<llo_original>
// kernel: tpu_custom_call.1
$region0: #{tpu_custom_call.1}
  #allocation0 [shape = 'u32[]', space=smem, size = 0x4, offset = 0x4, fixed_abs, tag = 'smem constant byte address 0x4 - core index']
  #allocation1 [shape = 'u32[144,128]{1,0:T(1,128)}', space=vmem, size = 0x12000, scoped, tag = 'internal scratch']
  %s0 = inlined_call_operand.hbm [shape: bf16[256,896], index: 0, kind: input, shape index: {}]
  %s1 = inlined_call_operand.hbm [shape: bf16[896,256], index: 1, kind: input, shape index: {}]
  %s2 = inlined_call_operand.vmem [shape: f32[1,256], index: 2, kind: input, shape index: {}]
  %s3 = inlined_call_operand.vmem [shape: bf16[256,20], index: 3, kind: input, shape index: {}]
  %s4 = inlined_call_operand.vmem [shape: f32[1,20], index: 4, kind: input, shape index: {}]
  %s5 = inlined_call_operand.vmem [shape: bf16[20,256], index: 5, kind: input, shape index: {}]
  %s6 = inlined_call_operand.vmem [shape: f32[1,256], index: 6, kind: input, shape index: {}]
  %s7 = inlined_call_operand.hbm [shape: bf16[256,896], index: 7, kind: input, shape index: {}]
  %s8 = inlined_call_operand.vmem [shape: f32[1,896], index: 8, kind: input, shape index: {}]
  %s9 = inlined_call_operand.hbm [shape: f32[256,896], index: 9, kind: output, shape index: {}]
  %s10 = sld [smem:[#allocation0]]
  $region58: #{tpu_custom_call.1} parent=0
    _
  %s12 = ssub.s32 1, %s10
  %s13 = scalar_select 0, %s12, %s10
  $region1: #{tpu_custom_call.1} parent=0
    #allocation2 [shape = 'u8[458752]{0}', space=vmem, size = 0x70000, scoped, tag = 'input window, operand 0, single buffered']
    #allocation3 [shape = 's32[1]{0}', space=sflag, size = 0x4, scoped, tag = 'scoped memory for tpu_custom_call.1']
    #allocation4 [shape = 's32[1]{0}', space=sflag, size = 0x4, scoped, tag = 'scoped memory for tpu_custom_call.1']
    #allocation5 [shape = 'u8[458752]{0}', space=vmem, size = 0x70000, scoped, tag = 'input window, operand 1, single buffered']
    #allocation6 [shape = 's32[1]{0}', space=sflag, size = 0x4, scoped, tag = 'scoped memory for tpu_custom_call.1']
    #allocation7 [shape = 'u8[458752]{0}', space=vmem, size = 0x70000, scoped, tag = 'input window, operand 7, single buffered']
    #allocation8 [shape = 'u8[917504]{0}', space=vmem, size = 0xe0000, scoped, tag = 'output window, operand 0, single buffered']
    %14 = vsyncpa [#allocation3], 0
    %15 = vsyncpa [#allocation6], 0
    %16 = vsyncpa [#allocation4], 0
    // Predicated region
    $region2: #{tpu_custom_call.1} parent=1 // pred_check
      _
    $region3: #{tpu_custom_call.1} parent=1 // pred_check_branch
      %18 = sbr.rel (0) target = $region5
    $region4: #{tpu_custom_call.1} parent=1 // pred_region
      %s20 = ssub.s32 14336, 14336
      %21 = vsyncadd [#allocation3], %s20
      %s22 = sshll.u32 [#allocation2], 4
      %s23 = int_to_ptr.vmem [resolvable:$true] %s22
      %28 = dma.hbm_to_vmem [thread:$0]  %s0, 14336, %s23, [#allocation3], 448, 448, 28
    $region5: #{tpu_custom_call.1} parent=1 // pred_fallthru
      _
    // Predicated region
    $region6: #{tpu_custom_call.1} parent=1 // pred_check
      _
    $region7: #{tpu_custom_call.1} parent=1 // pred_check_branch
      %30 = sbr.rel (0) target = $region9
    $region8: #{tpu_custom_call.1} parent=1 // pred_region
      %s32 = ssub.s32 14336, 14336
      %33 = vsyncadd [#allocation6], %s32
      %s34 = sshll.u32 [#allocation5], 4
      %s35 = int_to_ptr.vmem [resolvable:$true] %s34
      %40 = dma.hbm_to_vmem [thread:$0]  %s1, 14336, %s35, [#allocation6], 128, 128, 8
    $region9: #{tpu_custom_call.1} parent=1 // pred_fallthru
      _
    // Predicated region
    $region10: #{tpu_custom_call.1} parent=1 // pred_check
      _
    $region11: #{tpu_custom_call.1} parent=1 // pred_check_branch
      %42 = sbr.rel (0) target = $region13
    $region12: #{tpu_custom_call.1} parent=1 // pred_region
      _
    $region13: #{tpu_custom_call.1} parent=1 // pred_fallthru
      _
    // Predicated region
    $region14: #{tpu_custom_call.1} parent=1 // pred_check
      _
    $region15: #{tpu_custom_call.1} parent=1 // pred_check_branch
      %44 = sbr.rel (0) target = $region17
    $region16: #{tpu_custom_call.1} parent=1 // pred_region
      _
    $region17: #{tpu_custom_call.1} parent=1 // pred_fallthru
      _
    // Predicated region
    $region18: #{tpu_custom_call.1} parent=1 // pred_check
      _
    $region19: #{tpu_custom_call.1} parent=1 // pred_check_branch
      %46 = sbr.rel (0) target = $region21
    $region20: #{tpu_custom_call.1} parent=1 // pred_region
      _
    $region21: #{tpu_custom_call.1} parent=1 // pred_fallthru
      _
    // Predicated region
    $region22: #{tpu_custom_call.1} parent=1 // pred_check
      _
    $region23: #{tpu_custom_call.1} parent=1 // pred_check_branch
      %48 = sbr.rel (0) target = $region25
    $region24: #{tpu_custom_call.1} parent=1 // pred_region
      _
    $region25: #{tpu_custom_call.1} parent=1 // pred_fallthru
      _
    // Predicated region
    $region26: #{tpu_custom_call.1} parent=1 // pred_check
      _
    $region27: #{tpu_custom_call.1} parent=1 // pred_check_branch
      %50 = sbr.rel (0) target = $region29
    $region28: #{tpu_custom_call.1} parent=1 // pred_region
      _
    $region29: #{tpu_custom_call.1} parent=1 // pred_fallthru
      _
    // Predicated region
    $region30: #{tpu_custom_call.1} parent=1 // pred_check
      _
    $region31: #{tpu_custom_call.1} parent=1 // pred_check_branch
      %52 = sbr.rel (0) target = $region33
    $region32: #{tpu_custom_call.1} parent=1 // pred_region
      %s54 = ssub.s32 14336, 14336
      %55 = vsyncadd [#allocation6], %s54
      %s56 = sshll.u32 [#allocation7], 4
      %s57 = int_to_ptr.vmem [resolvable:$true] %s56
      %62 = dma.hbm_to_vmem [thread:$0]  %s7, 14336, %s57, [#allocation6], 448, 448, 28
    $region33: #{tpu_custom_call.1} parent=1 // pred_fallthru
      _
    // Predicated region
    $region34: #{tpu_custom_call.1} parent=1 // pred_check
      _
    $region35: #{tpu_custom_call.1} parent=1 // pred_check_branch
      %64 = sbr.rel (0) target = $region37
    $region36: #{tpu_custom_call.1} parent=1 // pred_region
      _
    $region37: #{tpu_custom_call.1} parent=1 // pred_fallthru
      _
    // Predicated region
    $region38: #{tpu_custom_call.1} parent=1 // pred_check
      _
    $region39: #{tpu_custom_call.1} parent=1 // pred_check_branch
      %66 = sbr.rel (0) target = $region41
    $region40: #{tpu_custom_call.1} parent=1 // pred_region
      %67 = dma.done [#allocation3], 14336
    $region41: #{tpu_custom_call.1} parent=1 // pred_fallthru
      _
    // Predicated region
    $region42: #{tpu_custom_call.1} parent=1 // pred_check
      _
    $region43: #{tpu_custom_call.1} parent=1 // pred_check_branch
      %69 = sbr.rel (0) target = $region45
    $region44: #{tpu_custom_call.1} parent=1 // pred_region
      %70 = dma.done [#allocation6], 14336
    $region45: #{tpu_custom_call.1} parent=1 // pred_fallthru
      _
    // Predicated region
    $region46: #{tpu_custom_call.1} parent=1 // pred_check
      _
    $region47: #{tpu_custom_call.1} parent=1 // pred_check_branch
      %72 = sbr.rel (0) target = $region49
    $region48: #{tpu_custom_call.1} parent=1 // pred_region
      %73 = dma.done [#allocation6], 14336
    $region49: #{tpu_custom_call.1} parent=1 // pred_fallthru
      _
    %v75 = vld [vmem:[#allocation2] sm:$0xff]
    %v76 = vld [vmem:[#allocation2 + $0x8] sm:$0xff]
    %v77 = vld [vmem:[#allocation2 + $0x10] sm:$0xff]
    %v78 = vld [vmem:[#allocation2 + $0x18] sm:$0xf]
    %v79 = vld [vmem:[#allocation2 + $0x1c] sm:$0xff]
    %v80 = vld [vmem:[#allocation2 + $0x24] sm:$0xff]
    %v81 = vld [vmem:[#allocation2 + $0x2c] sm:$0xff]
    %v82 = vld [vmem:[#allocation2 + $0x34] sm:$0xf]
    %v83 = vld [vmem:[#allocation2 + $0x38] sm:$0xff]
    %v84 = vld [vmem:[#allocation2 + $0x40] sm:$0xff]
    %v85 = vld [vmem:[#allocation2 + $0x48] sm:$0xff]
    %v86 = vld [vmem:[#allocation2 + $0x50] sm:$0xf]
    %v87 = vld [vmem:[#allocation2 + $0x54] sm:$0xff]
    %v88 = vld [vmem:[#allocation2 + $0x5c] sm:$0xff]
    %v89 = vld [vmem:[#allocation2 + $0x64] sm:$0xff]
    %v90 = vld [vmem:[#allocation2 + $0x6c] sm:$0xf]
    %v91 = vld [vmem:[#allocation2 + $0x70] sm:$0xff]
    %v92 = vld [vmem:[#allocation2 + $0x78] sm:$0xff]
    %v93 = vld [vmem:[#allocation2 + $0x80] sm:$0xff]
    %v94 = vld [vmem:[#allocation2 + $0x88] sm:$0xf]
    %v95 = vld [vmem:[#allocation2 + $0x8c] sm:$0xff]
    %v96 = vld [vmem:[#allocation2 + $0x94] sm:$0xff]
    %v97 = vld [vmem:[#allocation2 + $0x9c] sm:$0xff]
    %v98 = vld [vmem:[#allocation2 + $0xa4] sm:$0xf]
    %v99 = vld [vmem:[#allocation2 + $0xa8] sm:$0xff]
    %v100 = vld [vmem:[#allocation2 + $0xb0] sm:$0xff]
    %v101 = vld [vmem:[#allocation2 + $0xb8] sm:$0xff]
    %v102 = vld [vmem:[#allocation2 + $0xc0] sm:$0xf]
    %v103 = vld [vmem:[#allocation2 + $0xc4] sm:$0xff]
    %v104 = vld [vmem:[#allocation2 + $0xcc] sm:$0xff]
    %v105 = vld [vmem:[#allocation2 + $0xd4] sm:$0xff]
    %v106 = vld [vmem:[#allocation2 + $0xdc] sm:$0xf]
    %v107 = vld [vmem:[#allocation2 + $0xe0] sm:$0xff]
    %v108 = vld [vmem:[#allocation2 + $0xe8] sm:$0xff]
    %v109 = vld [vmem:[#allocation2 + $0xf0] sm:$0xff]
    %v110 = vld [vmem:[#allocation2 + $0xf8] sm:$0xf]
    %v111 = vld [vmem:[#allocation2 + $0xfc] sm:$0xff]
    %v112 = vld [vmem:[#allocation2 + $0x104] sm:$0xff]
    %v113 = vld [vmem:[#allocation2 + $0x10c] sm:$0xff]
    %v114 = vld [vmem:[#allocation2 + $0x114] sm:$0xf]
    %v115 = vld [vmem:[#allocation2 + $0x118] sm:$0xff]
    %v116 = vld [vmem:[#allocation2 + $0x120] sm:$0xff]
    %v117 = vld [vmem:[#allocation2 + $0x128] sm:$0xff]
    %v118 = vld [vmem:[#allocation2 + $0x130] sm:$0xf]
    %v119 = vld [vmem:[#allocation2 + $0x134] sm:$0xff]
    %v120 = vld [vmem:[#allocation2 + $0x13c] sm:$0xff]
    %v121 = vld [vmem:[#allocation2 + $0x144] sm:$0xff]
    %v122 = vld [vmem:[#allocation2 + $0x14c] sm:$0xf]
    %v123 = vld [vmem:[#allocation2 + $0x150] sm:$0xff]
    %v124 = vld [vmem:[#allocation2 + $0x158] sm:$0xff]
    %v125 = vld [vmem:[#allocation2 + $0x160] sm:$0xff]
    %v126 = vld [vmem:[#allocation2 + $0x168] sm:$0xf]
    %v127 = vld [vmem:[#allocation2 + $0x16c] sm:$0xff]
    %v128 = vld [vmem:[#allocation2 + $0x174] sm:$0xff]
    %v129 = vld [vmem:[#allocation2 + $0x17c] sm:$0xff]
    %v130 = vld [vmem:[#allocation2 + $0x184] sm:$0xf]
    %v131 = vld [vmem:[#allocation2 + $0x188] sm:$0xff]
    %v132 = vld [vmem:[#allocation2 + $0x190] sm:$0xff]
    %v133 = vld [vmem:[#allocation2 + $0x198] sm:$0xff]
    %v134 = vld [vmem:[#allocation2 + $0x1a0] sm:$0xf]
    %v135 = vld [vmem:[#allocation2 + $0x1a4] sm:$0xff]
    %v136 = vld [vmem:[#allocation2 + $0x1ac] sm:$0xff]
    %v137 = vld [vmem:[#allocation2 + $0x1b4] sm:$0xff]
    %v138 = vld [vmem:[#allocation2 + $0x1bc] sm:$0xf]
    %v139 = vld [vmem:[#allocation2 + $0x1c0] sm:$0xff]
    %v140 = vld [vmem:[#allocation2 + $0x1c8] sm:$0xff]
    %v141 = vld [vmem:[#allocation2 + $0x1d0] sm:$0xff]
    %v142 = vld [vmem:[#allocation2 + $0x1d8] sm:$0xf]
    %v143 = vld [vmem:[#allocation2 + $0x1dc] sm:$0xff]
    %v144 = vld [vmem:[#allocation2 + $0x1e4] sm:$0xff]
    %v145 = vld [vmem:[#allocation2 + $0x1ec] sm:$0xff]
    %v146 = vld [vmem:[#allocation2 + $0x1f4] sm:$0xf]
    %v147 = vld [vmem:[#allocation2 + $0x1f8] sm:$0xff]
    %v148 = vld [vmem:[#allocation2 + $0x200] sm:$0xff]
    %v149 = vld [vmem:[#allocation2 + $0x208] sm:$0xff]
    %v150 = vld [vmem:[#allocation2 + $0x210] sm:$0xf]
    %v151 = vld [vmem:[#allocation2 + $0x214] sm:$0xff]
    %v152 = vld [vmem:[#allocation2 + $0x21c] sm:$0xff]
    %v153 = vld [vmem:[#allocation2 + $0x224] sm:$0xff]
    %v154 = vld [vmem:[#allocation2 + $0x22c] sm:$0xf]
    %v155 = vld [vmem:[#allocation2 + $0x230] sm:$0xff]
    %v156 = vld [vmem:[#allocation2 + $0x238] sm:$0xff]
    %v157 = vld [vmem:[#allocation2 + $0x240] sm:$0xff]
    %v158 = vld [vmem:[#allocation2 + $0x248] sm:$0xf]
    %v159 = vld [vmem:[#allocation2 + $0x24c] sm:$0xff]
    %v160 = vld [vmem:[#allocation2 + $0x254] sm:$0xff]
    %v161 = vld [vmem:[#allocation2 + $0x25c] sm:$0xff]
    %v162 = vld [vmem:[#allocation2 + $0x264] sm:$0xf]
    %v163 = vld [vmem:[#allocation2 + $0x268] sm:$0xff]
    %v164 = vld [vmem:[#allocation2 + $0x270] sm:$0xff]
    %v165 = vld [vmem:[#allocation2 + $0x278] sm:$0xff]
    %v166 = vld [vmem:[#allocation2 + $0x280] sm:$0xf]
    %v167 = vld [vmem:[#allocation2 + $0x284] sm:$0xff]
    %v168 = vld [vmem:[#allocation2 + $0x28c] sm:$0xff]
    %v169 = vld [vmem:[#allocation2 + $0x294] sm:$0xff]
    %v170 = vld [vmem:[#allocation2 + $0x29c] sm:$0xf]
    %v171 = vld [vmem:[#allocation2 + $0x2a0] sm:$0xff]
    %v172 = vld [vmem:[#allocation2 + $0x2a8] sm:$0xff]
    %v173 = vld [vmem:[#allocation2 + $0x2b0] sm:$0xff]
    %v174 = vld [vmem:[#allocation2 + $0x2b8] sm:$0xf]
    %v175 = vld [vmem:[#allocation2 + $0x2bc] sm:$0xff]
    %v176 = vld [vmem:[#allocation2 + $0x2c4] sm:$0xff]
    %v177 = vld [vmem:[#allocation2 + $0x2cc] sm:$0xff]
    %v178 = vld [vmem:[#allocation2 + $0x2d4] sm:$0xf]
    %v179 = vld [vmem:[#allocation2 + $0x2d8] sm:$0xff]
    %v180 = vld [vmem:[#allocation2 + $0x2e0] sm:$0xff]
    %v181 = vld [vmem:[#allocation2 + $0x2e8] sm:$0xff]
    %v182 = vld [vmem:[#allocation2 + $0x2f0] sm:$0xf]
    %v183 = vld [vmem:[#allocation2 + $0x2f4] sm:$0xff]
    %v184 = vld [vmem:[#allocation2 + $0x2fc] sm:$0xff]
    %v185 = vld [vmem:[#allocation2 + $0x304] sm:$0xff]
    %v186 = vld [vmem:[#allocation2 + $0x30c] sm:$0xf]
    %v187 = vld [vmem:[#allocation2 + $0x310] sm:$0xff]
    %v188 = vld [vmem:[#allocation2 + $0x318] sm:$0xff]
    %v189 = vld [vmem:[#allocation2 + $0x320] sm:$0xff]
    %v190 = vld [vmem:[#allocation2 + $0x328] sm:$0xf]
    %v191 = vld [vmem:[#allocation2 + $0x32c] sm:$0xff]
    %v192 = vld [vmem:[#allocation2 + $0x334] sm:$0xff]
    %v193 = vld [vmem:[#allocation2 + $0x33c] sm:$0xff]
    %v194 = vld [vmem:[#allocation2 + $0x344] sm:$0xf]
    %v195 = vld [vmem:[#allocation2 + $0x348] sm:$0xff]
    %v196 = vld [vmem:[#allocation2 + $0x350] sm:$0xff]
    %v197 = vld [vmem:[#allocation2 + $0x358] sm:$0xff]
    %v198 = vld [vmem:[#allocation2 + $0x360] sm:$0xf]
    %v199 = vld [vmem:[#allocation2 + $0x364] sm:$0xff]
    %v200 = vld [vmem:[#allocation2 + $0x36c] sm:$0xff]
    %v201 = vld [vmem:[#allocation2 + $0x374] sm:$0xff]
    %v202 = vld [vmem:[#allocation2 + $0x37c] sm:$0xf]
    %v203 = vld [vmem:[#allocation5] sm:$0xff]
    %v204 = vld [vmem:[#allocation5 + $0x8] sm:$0xff]
    %v205 = vld [vmem:[#allocation5 + $0x10] sm:$0xff]
    %v206 = vld [vmem:[#allocation5 + $0x18] sm:$0xff]
    %v207 = vld [vmem:[#allocation5 + $0x20] sm:$0xff]
    %v208 = vld [vmem:[#allocation5 + $0x28] sm:$0xff]
    %v209 = vld [vmem:[#allocation5 + $0x30] sm:$0xff]
    %v210 = vld [vmem:[#allocation5 + $0x38] sm:$0xff]
    %v211 = vld [vmem:[#allocation5 + $0x40] sm:$0xff]
    %v212 = vld [vmem:[#allocation5 + $0x48] sm:$0xff]
    %v213 = vld [vmem:[#allocation5 + $0x50] sm:$0xff]
    %v214 = vld [vmem:[#allocation5 + $0x58] sm:$0xff]
    %v215 = vld [vmem:[#allocation5 + $0x60] sm:$0xff]
    %v216 = vld [vmem:[#allocation5 + $0x68] sm:$0xff]
    %v217 = vld [vmem:[#allocation5 + $0x70] sm:$0xff]
    %v218 = vld [vmem:[#allocation5 + $0x78] sm:$0xff]
    %v219 = vld [vmem:[#allocation5 + $0x80] sm:$0xff]
    %v220 = vld [vmem:[#allocation5 + $0x88] sm:$0xff]
    %v221 = vld [vmem:[#allocation5 + $0x90] sm:$0xff]
    %v222 = vld [vmem:[#allocation5 + $0x98] sm:$0xff]
    %v223 = vld [vmem:[#allocation5 + $0xa0] sm:$0xff]
    %v224 = vld [vmem:[#allocation5 + $0xa8] sm:$0xff]
    %v225 = vld [vmem:[#allocation5 + $0xb0] sm:$0xff]
    %v226 = vld [vmem:[#allocation5 + $0xb8] sm:$0xff]
    %v227 = vld [vmem:[#allocation5 + $0xc0] sm:$0xff]
    %v228 = vld [vmem:[#allocation5 + $0xc8] sm:$0xff]
    %v229 = vld [vmem:[#allocation5 + $0xd0] sm:$0xff]
    %v230 = vld [vmem:[#allocation5 + $0xd8] sm:$0xff]
    %v231 = vld [vmem:[#allocation5 + $0xe0] sm:$0xff]
    %v232 = vld [vmem:[#allocation5 + $0xe8] sm:$0xff]
    %v233 = vld [vmem:[#allocation5 + $0xf0] sm:$0xff]
    %v234 = vld [vmem:[#allocation5 + $0xf8] sm:$0xff]
    %v235 = vld [vmem:[#allocation5 + $0x100] sm:$0xff]
    %v236 = vld [vmem:[#allocation5 + $0x108] sm:$0xff]
    %v237 = vld [vmem:[#allocation5 + $0x110] sm:$0xff]
    %v238 = vld [vmem:[#allocation5 + $0x118] sm:$0xff]
    %v239 = vld [vmem:[#allocation5 + $0x120] sm:$0xff]
    %v240 = vld [vmem:[#allocation5 + $0x128] sm:$0xff]
    %v241 = vld [vmem:[#allocation5 + $0x130] sm:$0xff]
    %v242 = vld [vmem:[#allocation5 + $0x138] sm:$0xff]
    %v243 = vld [vmem:[#allocation5 + $0x140] sm:$0xff]
    %v244 = vld [vmem:[#allocation5 + $0x148] sm:$0xff]
    %v245 = vld [vmem:[#allocation5 + $0x150] sm:$0xff]
    %v246 = vld [vmem:[#allocation5 + $0x158] sm:$0xff]
    %v247 = vld [vmem:[#allocation5 + $0x160] sm:$0xff]
    %v248 = vld [vmem:[#allocation5 + $0x168] sm:$0xff]
    %v249 = vld [vmem:[#allocation5 + $0x170] sm:$0xff]
    %v250 = vld [vmem:[#allocation5 + $0x178] sm:$0xff]
    %v251 = vld [vmem:[#allocation5 + $0x180] sm:$0xff]
    %v252 = vld [vmem:[#allocation5 + $0x188] sm:$0xff]
    %v253 = vld [vmem:[#allocation5 + $0x190] sm:$0xff]
    %v254 = vld [vmem:[#allocation5 + $0x198] sm:$0xff]
    %v255 = vld [vmem:[#allocation5 + $0x1a0] sm:$0xff]
    %v256 = vld [vmem:[#allocation5 + $0x1a8] sm:$0xff]
    %v257 = vld [vmem:[#allocation5 + $0x1b0] sm:$0xff]
    %v258 = vld [vmem:[#allocation5 + $0x1b8] sm:$0xff]
    %v259 = vld [vmem:[#allocation5 + $0x1c0] sm:$0xff]
    %v260 = vld [vmem:[#allocation5 + $0x1c8] sm:$0xff]
    %v261 = vld [vmem:[#allocation5 + $0x1d0] sm:$0xff]
    %v262 = vld [vmem:[#allocation5 + $0x1d8] sm:$0xff]
    %v263 = vld [vmem:[#allocation5 + $0x1e0] sm:$0xff]
    %v264 = vld [vmem:[#allocation5 + $0x1e8] sm:$0xff]
    %v265 = vld [vmem:[#allocation5 + $0x1f0] sm:$0xff]
    %v266 = vld [vmem:[#allocation5 + $0x1f8] sm:$0xff]
    %v267 = vld [vmem:[#allocation5 + $0x200] sm:$0xff]
    %v268 = vld [vmem:[#allocation5 + $0x208] sm:$0xff]
    %v269 = vld [vmem:[#allocation5 + $0x210] sm:$0xff]
    %v270 = vld [vmem:[#allocation5 + $0x218] sm:$0xff]
    %v271 = vld [vmem:[#allocation5 + $0x220] sm:$0xff]
    %v272 = vld [vmem:[#allocation5 + $0x228] sm:$0xff]
    %v273 = vld [vmem:[#allocation5 + $0x230] sm:$0xff]
    %v274 = vld [vmem:[#allocation5 + $0x238] sm:$0xff]
    %v275 = vld [vmem:[#allocation5 + $0x240] sm:$0xff]
    %v276 = vld [vmem:[#allocation5 + $0x248] sm:$0xff]
    %v277 = vld [vmem:[#allocation5 + $0x250] sm:$0xff]
    %v278 = vld [vmem:[#allocation5 + $0x258] sm:$0xff]
    %v279 = vld [vmem:[#allocation5 + $0x260] sm:$0xff]
    %v280 = vld [vmem:[#allocation5 + $0x268] sm:$0xff]
    %v281 = vld [vmem:[#allocation5 + $0x270] sm:$0xff]
    %v282 = vld [vmem:[#allocation5 + $0x278] sm:$0xff]
    %v283 = vld [vmem:[#allocation5 + $0x280] sm:$0xff]
    %v284 = vld [vmem:[#allocation5 + $0x288] sm:$0xff]
    %v285 = vld [vmem:[#allocation5 + $0x290] sm:$0xff]
    %v286 = vld [vmem:[#allocation5 + $0x298] sm:$0xff]
    %v287 = vld [vmem:[#allocation5 + $0x2a0] sm:$0xff]
    %v288 = vld [vmem:[#allocation5 + $0x2a8] sm:$0xff]
    %v289 = vld [vmem:[#allocation5 + $0x2b0] sm:$0xff]
    %v290 = vld [vmem:[#allocation5 + $0x2b8] sm:$0xff]
    %v291 = vld [vmem:[#allocation5 + $0x2c0] sm:$0xff]
    %v292 = vld [vmem:[#allocation5 + $0x2c8] sm:$0xff]
    %v293 = vld [vmem:[#allocation5 + $0x2d0] sm:$0xff]
    %v294 = vld [vmem:[#allocation5 + $0x2d8] sm:$0xff]
    %v295 = vld [vmem:[#allocation5 + $0x2e0] sm:$0xff]
    %v296 = vld [vmem:[#allocation5 + $0x2e8] sm:$0xff]
    %v297 = vld [vmem:[#allocation5 + $0x2f0] sm:$0xff]
    %v298 = vld [vmem:[#allocation5 + $0x2f8] sm:$0xff]
    %v299 = vld [vmem:[#allocation5 + $0x300] sm:$0xff]
    %v300 = vld [vmem:[#allocation5 + $0x308] sm:$0xff]
    %v301 = vld [vmem:[#allocation5 + $0x310] sm:$0xff]
    %v302 = vld [vmem:[#allocation5 + $0x318] sm:$0xff]
    %v303 = vld [vmem:[#allocation5 + $0x320] sm:$0xff]
    %v304 = vld [vmem:[#allocation5 + $0x328] sm:$0xff]
    %v305 = vld [vmem:[#allocation5 + $0x330] sm:$0xff]
    %v306 = vld [vmem:[#allocation5 + $0x338] sm:$0xff]
    %v307 = vld [vmem:[#allocation5 + $0x340] sm:$0xff]
    %v308 = vld [vmem:[#allocation5 + $0x348] sm:$0xff]
    %v309 = vld [vmem:[#allocation5 + $0x350] sm:$0xff]
    %v310 = vld [vmem:[#allocation5 + $0x358] sm:$0xff]
    %v311 = vld [vmem:[#allocation5 + $0x360] sm:$0xff]
    %v312 = vld [vmem:[#allocation5 + $0x368] sm:$0xff]
    %v313 = vld [vmem:[#allocation5 + $0x370] sm:$0xff]
    %v314 = vld [vmem:[#allocation5 + $0x378] sm:$0xff]
    %v315 = vld [vmem:[%s2] sm:$0x3]
    %v317 = vlaneseq
    %v318 = vshrl.u32 %v317, 7
    %v319 = vsub.s32 0, %v318
    %v320 = vrot.slane %v315, %v319
    %v321 = vlaneseq
    %v322 = vshrl.u32 %v321, 7
    %v323 = vsub.s32 1, %v322
    %v324 = vrot.slane %v315, %v323
    %v455 = vunpack.c.l.b16 %v75
    %v456 = vunpack.c.h.b16 %v75
    %v457 = vunpack.c.l.b16 %v76
    %v458 = vunpack.c.h.b16 %v76
    %v459 = vunpack.c.l.b16 %v77
    %v460 = vunpack.c.h.b16 %v77
    %v461 = vunpack.c.l.b16 %v78
    %v462 = vunpack.c.l.b16 %v79
    %v463 = vunpack.c.h.b16 %v79
    %v464 = vunpack.c.l.b16 %v80
    %v465 = vunpack.c.h.b16 %v80
    %v466 = vunpack.c.l.b16 %v81
    %v467 = vunpack.c.h.b16 %v81
    %v468 = vunpack.c.l.b16 %v82
    %v469 = vunpack.c.l.b16 %v83
    %v470 = vunpack.c.h.b16 %v83
    %v471 = vunpack.c.l.b16 %v84
    %v472 = vunpack.c.h.b16 %v84
    %v473 = vunpack.c.l.b16 %v85
    %v474 = vunpack.c.h.b16 %v85
    %v475 = vunpack.c.l.b16 %v86
    %v476 = vunpack.c.l.b16 %v87
    %v477 = vunpack.c.h.b16 %v87
    %v478 = vunpack.c.l.b16 %v88
    %v479 = vunpack.c.h.b16 %v88
    %v480 = vunpack.c.l.b16 %v89
    %v481 = vunpack.c.h.b16 %v89
    %v482 = vunpack.c.l.b16 %v90
    %v483 = vunpack.c.l.b16 %v91
    %v484 = vunpack.c.h.b16 %v91
    %v485 = vunpack.c.l.b16 %v92
    %v486 = vunpack.c.h.b16 %v92
    %v487 = vunpack.c.l.b16 %v93
    %v488 = vunpack.c.h.b16 %v93
    %v489 = vunpack.c.l.b16 %v94
    %v490 = vunpack.c.l.b16 %v95
    %v491 = vunpack.c.h.b16 %v95
    %v492 = vunpack.c.l.b16 %v96
    %v493 = vunpack.c.h.b16 %v96
    %v494 = vunpack.c.l.b16 %v97
    %v495 = vunpack.c.h.b16 %v97
    %v496 = vunpack.c.l.b16 %v98
    %v497 = vunpack.c.l.b16 %v99
    %v498 = vunpack.c.h.b16 %v99
    %v499 = vunpack.c.l.b16 %v100
    %v500 = vunpack.c.h.b16 %v100
    %v501 = vunpack.c.l.b16 %v101
    %v502 = vunpack.c.h.b16 %v101
    %v503 = vunpack.c.l.b16 %v102
    %v504 = vunpack.c.l.b16 %v103
    %v505 = vunpack.c.h.b16 %v103
    %v506 = vunpack.c.l.b16 %v104
    %v507 = vunpack.c.h.b16 %v104
    %v508 = vunpack.c.l.b16 %v105
    %v509 = vunpack.c.h.b16 %v105
    %v510 = vunpack.c.l.b16 %v106
    %v511 = vunpack.c.l.b16 %v107
    %v512 = vunpack.c.h.b16 %v107
    %v513 = vunpack.c.l.b16 %v108
    %v514 = vunpack.c.h.b16 %v108
    %v515 = vunpack.c.l.b16 %v109
    %v516 = vunpack.c.h.b16 %v109
    %v517 = vunpack.c.l.b16 %v110
    %v518 = vunpack.c.l.b16 %v111
    %v519 = vunpack.c.h.b16 %v111
    %v520 = vunpack.c.l.b16 %v112
    %v521 = vunpack.c.h.b16 %v112
    %v522 = vunpack.c.l.b16 %v113
    %v523 = vunpack.c.h.b16 %v113
    %v524 = vunpack.c.l.b16 %v114
    %v525 = vunpack.c.l.b16 %v115
    %v526 = vunpack.c.h.b16 %v115
    %v527 = vunpack.c.l.b16 %v116
    %v528 = vunpack.c.h.b16 %v116
    %v529 = vunpack.c.l.b16 %v117
    %v530 = vunpack.c.h.b16 %v117
    %v531 = vunpack.c.l.b16 %v118
    %v532 = vunpack.c.l.b16 %v119
    %v533 = vunpack.c.h.b16 %v119
    %v534 = vunpack.c.l.b16 %v120
    %v535 = vunpack.c.h.b16 %v120
    %v536 = vunpack.c.l.b16 %v121
    %v537 = vunpack.c.h.b16 %v121
    %v538 = vunpack.c.l.b16 %v122
    %v539 = vunpack.c.l.b16 %v123
    %v540 = vunpack.c.h.b16 %v123
    %v541 = vunpack.c.l.b16 %v124
    %v542 = vunpack.c.h.b16 %v124
    %v543 = vunpack.c.l.b16 %v125
    %v544 = vunpack.c.h.b16 %v125
    %v545 = vunpack.c.l.b16 %v126
    %v546 = vunpack.c.l.b16 %v127
    %v547 = vunpack.c.h.b16 %v127
    %v548 = vunpack.c.l.b16 %v128
    %v549 = vunpack.c.h.b16 %v128
    %v550 = vunpack.c.l.b16 %v129
    %v551 = vunpack.c.h.b16 %v129
    %v552 = vunpack.c.l.b16 %v130
    %v553 = vunpack.c.l.b16 %v131
    %v554 = vunpack.c.h.b16 %v131
    %v555 = vunpack.c.l.b16 %v132
    %v556 = vunpack.c.h.b16 %v132
    %v557 = vunpack.c.l.b16 %v133
    %v558 = vunpack.c.h.b16 %v133
    %v559 = vunpack.c.l.b16 %v134
    %v560 = vunpack.c.l.b16 %v135
    %v561 = vunpack.c.h.b16 %v135
    %v562 = vunpack.c.l.b16 %v136
    %v563 = vunpack.c.h.b16 %v136
    %v564 = vunpack.c.l.b16 %v137
    %v565 = vunpack.c.h.b16 %v137
    %v566 = vunpack.c.l.b16 %v138
    %v567 = vunpack.c.l.b16 %v139
    %v568 = vunpack.c.h.b16 %v139
    %v569 = vunpack.c.l.b16 %v140
    %v570 = vunpack.c.h.b16 %v140
    %v571 = vunpack.c.l.b16 %v141
    %v572 = vunpack.c.h.b16 %v141
    %v573 = vunpack.c.l.b16 %v142
    %v574 = vunpack.c.l.b16 %v143
    %v575 = vunpack.c.h.b16 %v143
    %v576 = vunpack.c.l.b16 %v144
    %v577 = vunpack.c.h.b16 %v144
    %v578 = vunpack.c.l.b16 %v145
    %v579 = vunpack.c.h.b16 %v145
    %v580 = vunpack.c.l.b16 %v146
    %v581 = vunpack.c.l.b16 %v147
    %v582 = vunpack.c.h.b16 %v147
    %v583 = vunpack.c.l.b16 %v148
    %v584 = vunpack.c.h.b16 %v148
    %v585 = vunpack.c.l.b16 %v149
    %v586 = vunpack.c.h.b16 %v149
    %v587 = vunpack.c.l.b16 %v150
    %v588 = vunpack.c.l.b16 %v151
    %v589 = vunpack.c.h.b16 %v151
    %v590 = vunpack.c.l.b16 %v152
    %v591 = vunpack.c.h.b16 %v152
    %v592 = vunpack.c.l.b16 %v153
    %v593 = vunpack.c.h.b16 %v153
    %v594 = vunpack.c.l.b16 %v154
    %v595 = vunpack.c.l.b16 %v155
    %v596 = vunpack.c.h.b16 %v155
    %v597 = vunpack.c.l.b16 %v156
    %v598 = vunpack.c.h.b16 %v156
    %v599 = vunpack.c.l.b16 %v157
    %v600 = vunpack.c.h.b16 %v157
    %v601 = vunpack.c.l.b16 %v158
    %v602 = vunpack.c.l.b16 %v159
    %v603 = vunpack.c.h.b16 %v159
    %v604 = vunpack.c.l.b16 %v160
    %v605 = vunpack.c.h.b16 %v160
    %v606 = vunpack.c.l.b16 %v161
    %v607 = vunpack.c.h.b16 %v161
    %v608 = vunpack.c.l.b16 %v162
    %v609 = vunpack.c.l.b16 %v163
    %v610 = vunpack.c.h.b16 %v163
    %v611 = vunpack.c.l.b16 %v164
    %v612 = vunpack.c.h.b16 %v164
    %v613 = vunpack.c.l.b16 %v165
    %v614 = vunpack.c.h.b16 %v165
    %v615 = vunpack.c.l.b16 %v166
    %v616 = vunpack.c.l.b16 %v167
    %v617 = vunpack.c.h.b16 %v167
    %v618 = vunpack.c.l.b16 %v168
    %v619 = vunpack.c.h.b16 %v168
    %v620 = vunpack.c.l.b16 %v169
    %v621 = vunpack.c.h.b16 %v169
    %v622 = vunpack.c.l.b16 %v170
    %v623 = vunpack.c.l.b16 %v171
    %v624 = vunpack.c.h.b16 %v171
    %v625 = vunpack.c.l.b16 %v172
    %v626 = vunpack.c.h.b16 %v172
    %v627 = vunpack.c.l.b16 %v173
    %v628 = vunpack.c.h.b16 %v173
    %v629 = vunpack.c.l.b16 %v174
    %v630 = vunpack.c.l.b16 %v175
    %v631 = vunpack.c.h.b16 %v175
    %v632 = vunpack.c.l.b16 %v176
    %v633 = vunpack.c.h.b16 %v176
    %v634 = vunpack.c.l.b16 %v177
    %v635 = vunpack.c.h.b16 %v177
    %v636 = vunpack.c.l.b16 %v178
    %v637 = vunpack.c.l.b16 %v179
    %v638 = vunpack.c.h.b16 %v179
    %v639 = vunpack.c.l.b16 %v180
    %v640 = vunpack.c.h.b16 %v180
    %v641 = vunpack.c.l.b16 %v181
    %v642 = vunpack.c.h.b16 %v181
    %v643 = vunpack.c.l.b16 %v182
    %v644 = vunpack.c.l.b16 %v183
    %v645 = vunpack.c.h.b16 %v183
    %v646 = vunpack.c.l.b16 %v184
    %v647 = vunpack.c.h.b16 %v184
    %v648 = vunpack.c.l.b16 %v185
    %v649 = vunpack.c.h.b16 %v185
    %v650 = vunpack.c.l.b16 %v186
    %v651 = vunpack.c.l.b16 %v187
    %v652 = vunpack.c.h.b16 %v187
    %v653 = vunpack.c.l.b16 %v188
    %v654 = vunpack.c.h.b16 %v188
    %v655 = vunpack.c.l.b16 %v189
    %v656 = vunpack.c.h.b16 %v189
    %v657 = vunpack.c.l.b16 %v190
    %v658 = vunpack.c.l.b16 %v191
    %v659 = vunpack.c.h.b16 %v191
    %v660 = vunpack.c.l.b16 %v192
    %v661 = vunpack.c.h.b16 %v192
    %v662 = vunpack.c.l.b16 %v193
    %v663 = vunpack.c.h.b16 %v193
    %v664 = vunpack.c.l.b16 %v194
    %v665 = vunpack.c.l.b16 %v195
    %v666 = vunpack.c.h.b16 %v195
    %v667 = vunpack.c.l.b16 %v196
    %v668 = vunpack.c.h.b16 %v196
    %v669 = vunpack.c.l.b16 %v197
    %v670 = vunpack.c.h.b16 %v197
    %v671 = vunpack.c.l.b16 %v198
    %v672 = vunpack.c.l.b16 %v199
    %v673 = vunpack.c.h.b16 %v199
    %v674 = vunpack.c.l.b16 %v200
    %v675 = vunpack.c.h.b16 %v200
    %v676 = vunpack.c.l.b16 %v201
    %v677 = vunpack.c.h.b16 %v201
    %v678 = vunpack.c.l.b16 %v202
    %v679 = vpack.c.b16 %v462, %v455
    %v680 = vpack.c.b16 %v463, %v456
    %v681 = vpack.c.b16 %v464, %v457
    %v682 = vpack.c.b16 %v465, %v458
    %v683 = vpack.c.b16 %v466, %v459
    %v684 = vpack.c.b16 %v467, %v460
    %v685 = vpack.c.b16 %v468, %v461
    %v686 = vpack.c.b16 %v476, %v469
    %v687 = vpack.c.b16 %v477, %v470
    %v688 = vpack.c.b16 %v478, %v471
    %v689 = vpack.c.b16 %v479, %v472
    %v690 = vpack.c.b16 %v480, %v473
    %v691 = vpack.c.b16 %v481, %v474
    %v692 = vpack.c.b16 %v482, %v475
    %v693 = vpack.c.b16 %v490, %v483
    %v694 = vpack.c.b16 %v491, %v484
    %v695 = vpack.c.b16 %v492, %v485
    %v696 = vpack.c.b16 %v493, %v486
    %v697 = vpack.c.b16 %v494, %v487
    %v698 = vpack.c.b16 %v495, %v488
    %v699 = vpack.c.b16 %v496, %v489
    %v700 = vpack.c.b16 %v504, %v497
    %v701 = vpack.c.b16 %v505, %v498
    %v702 = vpack.c.b16 %v506, %v499
    %v703 = vpack.c.b16 %v507, %v500
    %v704 = vpack.c.b16 %v508, %v501
    %v705 = vpack.c.b16 %v509, %v502
    %v706 = vpack.c.b16 %v510, %v503
    %v707 = vpack.c.b16 %v518, %v511
    %v708 = vpack.c.b16 %v519, %v512
    %v709 = vpack.c.b16 %v520, %v513
    %v710 = vpack.c.b16 %v521, %v514
    %v711 = vpack.c.b16 %v522, %v515
    %v712 = vpack.c.b16 %v523, %v516
    %v713 = vpack.c.b16 %v524, %v517
    %v714 = vpack.c.b16 %v532, %v525
    %v715 = vpack.c.b16 %v533, %v526
    %v716 = vpack.c.b16 %v534, %v527
    %v717 = vpack.c.b16 %v535, %v528
    %v718 = vpack.c.b16 %v536, %v529
    %v719 = vpack.c.b16 %v537, %v530
    %v720 = vpack.c.b16 %v538, %v531
    %v721 = vpack.c.b16 %v546, %v539
    %v722 = vpack.c.b16 %v547, %v540
    %v723 = vpack.c.b16 %v548, %v541
    %v724 = vpack.c.b16 %v549, %v542
    %v725 = vpack.c.b16 %v550, %v543
    %v726 = vpack.c.b16 %v551, %v544
    %v727 = vpack.c.b16 %v552, %v545
    %v728 = vpack.c.b16 %v560, %v553
    %v729 = vpack.c.b16 %v561, %v554
    %v730 = vpack.c.b16 %v562, %v555
    %v731 = vpack.c.b16 %v563, %v556
    %v732 = vpack.c.b16 %v564, %v557
    %v733 = vpack.c.b16 %v565, %v558
    %v734 = vpack.c.b16 %v566, %v559
    %v735 = vpack.c.b16 %v574, %v567
    %v736 = vpack.c.b16 %v575, %v568
    %v737 = vpack.c.b16 %v576, %v569
    %v738 = vpack.c.b16 %v577, %v570
    %v739 = vpack.c.b16 %v578, %v571
    %v740 = vpack.c.b16 %v579, %v572
    %v741 = vpack.c.b16 %v580, %v573
    %v742 = vpack.c.b16 %v588, %v581
    %v743 = vpack.c.b16 %v589, %v582
    %v744 = vpack.c.b16 %v590, %v583
    %v745 = vpack.c.b16 %v591, %v584
    %v746 = vpack.c.b16 %v592, %v585
    %v747 = vpack.c.b16 %v593, %v586
    %v748 = vpack.c.b16 %v594, %v587
    %v749 = vpack.c.b16 %v602, %v595
    %v750 = vpack.c.b16 %v603, %v596
    %v751 = vpack.c.b16 %v604, %v597
    %v752 = vpack.c.b16 %v605, %v598
    %v753 = vpack.c.b16 %v606, %v599
    %v754 = vpack.c.b16 %v607, %v600
    %v755 = vpack.c.b16 %v608, %v601
    %v756 = vpack.c.b16 %v616, %v609
    %v757 = vpack.c.b16 %v617, %v610
    %v758 = vpack.c.b16 %v618, %v611
    %v759 = vpack.c.b16 %v619, %v612
    %v760 = vpack.c.b16 %v620, %v613
    %v761 = vpack.c.b16 %v621, %v614
    %v762 = vpack.c.b16 %v622, %v615
    %v763 = vpack.c.b16 %v630, %v623
    %v764 = vpack.c.b16 %v631, %v624
    %v765 = vpack.c.b16 %v632, %v625
    %v766 = vpack.c.b16 %v633, %v626
    %v767 = vpack.c.b16 %v634, %v627
    %v768 = vpack.c.b16 %v635, %v628
    %v769 = vpack.c.b16 %v636, %v629
    %v770 = vpack.c.b16 %v644, %v637
    %v771 = vpack.c.b16 %v645, %v638
    %v772 = vpack.c.b16 %v646, %v639
    %v773 = vpack.c.b16 %v647, %v640
    %v774 = vpack.c.b16 %v648, %v641
    %v775 = vpack.c.b16 %v649, %v642
    %v776 = vpack.c.b16 %v650, %v643
    %v777 = vpack.c.b16 %v658, %v651
    %v778 = vpack.c.b16 %v659, %v652
    %v779 = vpack.c.b16 %v660, %v653
    %v780 = vpack.c.b16 %v661, %v654
    %v781 = vpack.c.b16 %v662, %v655
    %v782 = vpack.c.b16 %v663, %v656
    %v783 = vpack.c.b16 %v664, %v657
    %v784 = vpack.c.b16 %v672, %v665
    %v785 = vpack.c.b16 %v673, %v666
    %v786 = vpack.c.b16 %v674, %v667
    %v787 = vpack.c.b16 %v675, %v668
    %v788 = vpack.c.b16 %v676, %v669
    %v789 = vpack.c.b16 %v677, %v670
    %v790 = vpack.c.b16 %v678, %v671
    %v1015 = vunpack.c.l.b16 %v203
    %v1016 = vunpack.c.h.b16 %v203
    %v1017 = vunpack.c.l.b16 %v204
    %v1018 = vunpack.c.h.b16 %v204
    %v1019 = vunpack.c.l.b16 %v205
    %v1020 = vunpack.c.h.b16 %v205
    %v1021 = vunpack.c.l.b16 %v206
    %v1022 = vunpack.c.h.b16 %v206
    %v1023 = vunpack.c.l.b16 %v207
    %v1024 = vunpack.c.h.b16 %v207
    %v1025 = vunpack.c.l.b16 %v208
    %v1026 = vunpack.c.h.b16 %v208
    %v1027 = vunpack.c.l.b16 %v209
    %v1028 = vunpack.c.h.b16 %v209
    %v1029 = vunpack.c.l.b16 %v210
    %v1030 = vunpack.c.h.b16 %v210
    %v1031 = vunpack.c.l.b16 %v211
    %v1032 = vunpack.c.h.b16 %v211
    %v1033 = vunpack.c.l.b16 %v212
    %v1034 = vunpack.c.h.b16 %v212
    %v1035 = vunpack.c.l.b16 %v213
    %v1036 = vunpack.c.h.b16 %v213
    %v1037 = vunpack.c.l.b16 %v214
    %v1038 = vunpack.c.h.b16 %v214
    %v1039 = vunpack.c.l.b16 %v215
    %v1040 = vunpack.c.h.b16 %v215
    %v1041 = vunpack.c.l.b16 %v216
    %v1042 = vunpack.c.h.b16 %v216
    %v1043 = vunpack.c.l.b16 %v217
    %v1044 = vunpack.c.h.b16 %v217
    %v1045 = vunpack.c.l.b16 %v218
    %v1046 = vunpack.c.h.b16 %v218
    %v1047 = vunpack.c.l.b16 %v219
    %v1048 = vunpack.c.h.b16 %v219
    %v1049 = vunpack.c.l.b16 %v220
    %v1050 = vunpack.c.h.b16 %v220
    %v1051 = vunpack.c.l.b16 %v221
    %v1052 = vunpack.c.h.b16 %v221
    %v1053 = vunpack.c.l.b16 %v222
    %v1054 = vunpack.c.h.b16 %v222
    %v1055 = vunpack.c.l.b16 %v223
    %v1056 = vunpack.c.h.b16 %v223
    %v1057 = vunpack.c.l.b16 %v224
    %v1058 = vunpack.c.h.b16 %v224
    %v1059 = vunpack.c.l.b16 %v225
    %v1060 = vunpack.c.h.b16 %v225
    %v1061 = vunpack.c.l.b16 %v226
    %v1062 = vunpack.c.h.b16 %v226
    %v1063 = vunpack.c.l.b16 %v227
    %v1064 = vunpack.c.h.b16 %v227
    %v1065 = vunpack.c.l.b16 %v228
    %v1066 = vunpack.c.h.b16 %v228
    %v1067 = vunpack.c.l.b16 %v229
    %v1068 = vunpack.c.h.b16 %v229
    %v1069 = vunpack.c.l.b16 %v230
    %v1070 = vunpack.c.h.b16 %v230
    %v1071 = vunpack.c.l.b16 %v231
    %v1072 = vunpack.c.h.b16 %v231
    %v1073 = vunpack.c.l.b16 %v232
    %v1074 = vunpack.c.h.b16 %v232
    %v1075 = vunpack.c.l.b16 %v233
    %v1076 = vunpack.c.h.b16 %v233
    %v1077 = vunpack.c.l.b16 %v234
    %v1078 = vunpack.c.h.b16 %v234
    %v1079 = vunpack.c.l.b16 %v235
    %v1080 = vunpack.c.h.b16 %v235
    %v1081 = vunpack.c.l.b16 %v236
    %v1082 = vunpack.c.h.b16 %v236
    %v1083 = vunpack.c.l.b16 %v237
    %v1084 = vunpack.c.h.b16 %v237
    %v1085 = vunpack.c.l.b16 %v238
    %v1086 = vunpack.c.h.b16 %v238
    %v1087 = vunpack.c.l.b16 %v239
    %v1088 = vunpack.c.h.b16 %v239
    %v1089 = vunpack.c.l.b16 %v240
    %v1090 = vunpack.c.h.b16 %v240
    %v1091 = vunpack.c.l.b16 %v241
    %v1092 = vunpack.c.h.b16 %v241
    %v1093 = vunpack.c.l.b16 %v242
    %v1094 = vunpack.c.h.b16 %v242
    %v1095 = vunpack.c.l.b16 %v243
    %v1096 = vunpack.c.h.b16 %v243
    %v1097 = vunpack.c.l.b16 %v244
    %v1098 = vunpack.c.h.b16 %v244
    %v1099 = vunpack.c.l.b16 %v245
    %v1100 = vunpack.c.h.b16 %v245
    %v1101 = vunpack.c.l.b16 %v246
    %v1102 = vunpack.c.h.b16 %v246
    %v1103 = vunpack.c.l.b16 %v247
    %v1104 = vunpack.c.h.b16 %v247
    %v1105 = vunpack.c.l.b16 %v248
    %v1106 = vunpack.c.h.b16 %v248
    %v1107 = vunpack.c.l.b16 %v249
    %v1108 = vunpack.c.h.b16 %v249
    %v1109 = vunpack.c.l.b16 %v250
    %v1110 = vunpack.c.h.b16 %v250
    %v1111 = vunpack.c.l.b16 %v251
    %v1112 = vunpack.c.h.b16 %v251
    %v1113 = vunpack.c.l.b16 %v252
    %v1114 = vunpack.c.h.b16 %v252
    %v1115 = vunpack.c.l.b16 %v253
    %v1116 = vunpack.c.h.b16 %v253
    %v1117 = vunpack.c.l.b16 %v254
    %v1118 = vunpack.c.h.b16 %v254
    %v1119 = vunpack.c.l.b16 %v255
    %v1120 = vunpack.c.h.b16 %v255
    %v1121 = vunpack.c.l.b16 %v256
    %v1122 = vunpack.c.h.b16 %v256
    %v1123 = vunpack.c.l.b16 %v257
    %v1124 = vunpack.c.h.b16 %v257
    %v1125 = vunpack.c.l.b16 %v258
    %v1126 = vunpack.c.h.b16 %v258
    %v1127 = vunpack.c.l.b16 %v259
    %v1128 = vunpack.c.h.b16 %v259
    %v1129 = vunpack.c.l.b16 %v260
    %v1130 = vunpack.c.h.b16 %v260
    %v1131 = vunpack.c.l.b16 %v261
    %v1132 = vunpack.c.h.b16 %v261
    %v1133 = vunpack.c.l.b16 %v262
    %v1134 = vunpack.c.h.b16 %v262
    %v1135 = vunpack.c.l.b16 %v263
    %v1136 = vunpack.c.h.b16 %v263
    %v1137 = vunpack.c.l.b16 %v264
    %v1138 = vunpack.c.h.b16 %v264
    %v1139 = vunpack.c.l.b16 %v265
    %v1140 = vunpack.c.h.b16 %v265
    %v1141 = vunpack.c.l.b16 %v266
    %v1142 = vunpack.c.h.b16 %v266
    %v1143 = vunpack.c.l.b16 %v267
    %v1144 = vunpack.c.h.b16 %v267
    %v1145 = vunpack.c.l.b16 %v268
    %v1146 = vunpack.c.h.b16 %v268
    %v1147 = vunpack.c.l.b16 %v269
    %v1148 = vunpack.c.h.b16 %v269
    %v1149 = vunpack.c.l.b16 %v270
    %v1150 = vunpack.c.h.b16 %v270
    %v1151 = vunpack.c.l.b16 %v271
    %v1152 = vunpack.c.h.b16 %v271
    %v1153 = vunpack.c.l.b16 %v272
    %v1154 = vunpack.c.h.b16 %v272
    %v1155 = vunpack.c.l.b16 %v273
    %v1156 = vunpack.c.h.b16 %v273
    %v1157 = vunpack.c.l.b16 %v274
    %v1158 = vunpack.c.h.b16 %v274
    %v1159 = vunpack.c.l.b16 %v275
    %v1160 = vunpack.c.h.b16 %v275
    %v1161 = vunpack.c.l.b16 %v276
    %v1162 = vunpack.c.h.b16 %v276
    %v1163 = vunpack.c.l.b16 %v277
    %v1164 = vunpack.c.h.b16 %v277
    %v1165 = vunpack.c.l.b16 %v278
    %v1166 = vunpack.c.h.b16 %v278
    %v1167 = vunpack.c.l.b16 %v279
    %v1168 = vunpack.c.h.b16 %v279
    %v1169 = vunpack.c.l.b16 %v280
    %v1170 = vunpack.c.h.b16 %v280
    %v1171 = vunpack.c.l.b16 %v281
    %v1172 = vunpack.c.h.b16 %v281
    %v1173 = vunpack.c.l.b16 %v282
    %v1174 = vunpack.c.h.b16 %v282
    %v1175 = vunpack.c.l.b16 %v283
    %v1176 = vunpack.c.h.b16 %v283
    %v1177 = vunpack.c.l.b16 %v284
    %v1178 = vunpack.c.h.b16 %v284
    %v1179 = vunpack.c.l.b16 %v285
    %v1180 = vunpack.c.h.b16 %v285
    %v1181 = vunpack.c.l.b16 %v286
    %v1182 = vunpack.c.h.b16 %v286
    %v1183 = vunpack.c.l.b16 %v287
    %v1184 = vunpack.c.h.b16 %v287
    %v1185 = vunpack.c.l.b16 %v288
    %v1186 = vunpack.c.h.b16 %v288
    %v1187 = vunpack.c.l.b16 %v289
    %v1188 = vunpack.c.h.b16 %v289
    %v1189 = vunpack.c.l.b16 %v290
    %v1190 = vunpack.c.h.b16 %v290
    %v1191 = vunpack.c.l.b16 %v291
    %v1192 = vunpack.c.h.b16 %v291
    %v1193 = vunpack.c.l.b16 %v292
    %v1194 = vunpack.c.h.b16 %v292
    %v1195 = vunpack.c.l.b16 %v293
    %v1196 = vunpack.c.h.b16 %v293
    %v1197 = vunpack.c.l.b16 %v294
    %v1198 = vunpack.c.h.b16 %v294
    %v1199 = vunpack.c.l.b16 %v295
    %v1200 = vunpack.c.h.b16 %v295
    %v1201 = vunpack.c.l.b16 %v296
    %v1202 = vunpack.c.h.b16 %v296
    %v1203 = vunpack.c.l.b16 %v297
    %v1204 = vunpack.c.h.b16 %v297
    %v1205 = vunpack.c.l.b16 %v298
    %v1206 = vunpack.c.h.b16 %v298
    %v1207 = vunpack.c.l.b16 %v299
    %v1208 = vunpack.c.h.b16 %v299
    %v1209 = vunpack.c.l.b16 %v300
    %v1210 = vunpack.c.h.b16 %v300
    %v1211 = vunpack.c.l.b16 %v301
    %v1212 = vunpack.c.h.b16 %v301
    %v1213 = vunpack.c.l.b16 %v302
    %v1214 = vunpack.c.h.b16 %v302
    %v1215 = vunpack.c.l.b16 %v303
    %v1216 = vunpack.c.h.b16 %v303
    %v1217 = vunpack.c.l.b16 %v304
    %v1218 = vunpack.c.h.b16 %v304
    %v1219 = vunpack.c.l.b16 %v305
    %v1220 = vunpack.c.h.b16 %v305
    %v1221 = vunpack.c.l.b16 %v306
    %v1222 = vunpack.c.h.b16 %v306
    %v1223 = vunpack.c.l.b16 %v307
    %v1224 = vunpack.c.h.b16 %v307
    %v1225 = vunpack.c.l.b16 %v308
    %v1226 = vunpack.c.h.b16 %v308
    %v1227 = vunpack.c.l.b16 %v309
    %v1228 = vunpack.c.h.b16 %v309
    %v1229 = vunpack.c.l.b16 %v310
    %v1230 = vunpack.c.h.b16 %v310
    %v1231 = vunpack.c.l.b16 %v311
    %v1232 = vunpack.c.h.b16 %v311
    %v1233 = vunpack.c.l.b16 %v312
    %v1234 = vunpack.c.h.b16 %v312
    %v1235 = vunpack.c.l.b16 %v313
    %v1236 = vunpack.c.h.b16 %v313
    %v1237 = vunpack.c.l.b16 %v314
    %v1238 = vunpack.c.h.b16 %v314
    %v1239 = vpack.c.b16 %v1017, %v1015
    %v1240 = vpack.c.b16 %v1018, %v1016
    %v1241 = vpack.c.b16 %v1021, %v1019
    %v1242 = vpack.c.b16 %v1022, %v1020
    %v1243 = vpack.c.b16 %v1025, %v1023
    %v1244 = vpack.c.b16 %v1026, %v1024
    %v1245 = vpack.c.b16 %v1029, %v1027
    %v1246 = vpack.c.b16 %v1030, %v1028
    %v1247 = vpack.c.b16 %v1033, %v1031
    %v1248 = vpack.c.b16 %v1034, %v1032
    %v1249 = vpack.c.b16 %v1037, %v1035
    %v1250 = vpack.c.b16 %v1038, %v1036
    %v1251 = vpack.c.b16 %v1041, %v1039
    %v1252 = vpack.c.b16 %v1042, %v1040
    %v1253 = vpack.c.b16 %v1045, %v1043
    %v1254 = vpack.c.b16 %v1046, %v1044
    %v1255 = vpack.c.b16 %v1049, %v1047
    %v1256 = vpack.c.b16 %v1050, %v1048
    %v1257 = vpack.c.b16 %v1053, %v1051
    %v1258 = vpack.c.b16 %v1054, %v1052
    %v1259 = vpack.c.b16 %v1057, %v1055
    %v1260 = vpack.c.b16 %v1058, %v1056
    %v1261 = vpack.c.b16 %v1061, %v1059
    %v1262 = vpack.c.b16 %v1062, %v1060
    %v1263 = vpack.c.b16 %v1065, %v1063
    %v1264 = vpack.c.b16 %v1066, %v1064
    %v1265 = vpack.c.b16 %v1069, %v1067
    %v1266 = vpack.c.b16 %v1070, %v1068
    %v1267 = vpack.c.b16 %v1073, %v1071
    %v1268 = vpack.c.b16 %v1074, %v1072
    %v1269 = vpack.c.b16 %v1077, %v1075
    %v1270 = vpack.c.b16 %v1078, %v1076
    %v1271 = vpack.c.b16 %v1081, %v1079
    %v1272 = vpack.c.b16 %v1082, %v1080
    %v1273 = vpack.c.b16 %v1085, %v1083
    %v1274 = vpack.c.b16 %v1086, %v1084
    %v1275 = vpack.c.b16 %v1089, %v1087
    %v1276 = vpack.c.b16 %v1090, %v1088
    %v1277 = vpack.c.b16 %v1093, %v1091
    %v1278 = vpack.c.b16 %v1094, %v1092
    %v1279 = vpack.c.b16 %v1097, %v1095
    %v1280 = vpack.c.b16 %v1098, %v1096
    %v1281 = vpack.c.b16 %v1101, %v1099
    %v1282 = vpack.c.b16 %v1102, %v1100
    %v1283 = vpack.c.b16 %v1105, %v1103
    %v1284 = vpack.c.b16 %v1106, %v1104
    %v1285 = vpack.c.b16 %v1109, %v1107
    %v1286 = vpack.c.b16 %v1110, %v1108
    %v1287 = vpack.c.b16 %v1113, %v1111
    %v1288 = vpack.c.b16 %v1114, %v1112
    %v1289 = vpack.c.b16 %v1117, %v1115
    %v1290 = vpack.c.b16 %v1118, %v1116
    %v1291 = vpack.c.b16 %v1121, %v1119
    %v1292 = vpack.c.b16 %v1122, %v1120
    %v1293 = vpack.c.b16 %v1125, %v1123
    %v1294 = vpack.c.b16 %v1126, %v1124
    %v1295 = vpack.c.b16 %v1129, %v1127
    %v1296 = vpack.c.b16 %v1130, %v1128
    %v1297 = vpack.c.b16 %v1133, %v1131
    %v1298 = vpack.c.b16 %v1134, %v1132
    %v1299 = vpack.c.b16 %v1137, %v1135
    %v1300 = vpack.c.b16 %v1138, %v1136
    %v1301 = vpack.c.b16 %v1141, %v1139
    %v1302 = vpack.c.b16 %v1142, %v1140
    %v1303 = vpack.c.b16 %v1145, %v1143
    %v1304 = vpack.c.b16 %v1146, %v1144
    %v1305 = vpack.c.b16 %v1149, %v1147
    %v1306 = vpack.c.b16 %v1150, %v1148
    %v1307 = vpack.c.b16 %v1153, %v1151
    %v1308 = vpack.c.b16 %v1154, %v1152
    %v1309 = vpack.c.b16 %v1157, %v1155
    %v1310 = vpack.c.b16 %v1158, %v1156
    %v1311 = vpack.c.b16 %v1161, %v1159
    %v1312 = vpack.c.b16 %v1162, %v1160
    %v1313 = vpack.c.b16 %v1165, %v1163
    %v1314 = vpack.c.b16 %v1166, %v1164
    %v1315 = vpack.c.b16 %v1169, %v1167
    %v1316 = vpack.c.b16 %v1170, %v1168
    %v1317 = vpack.c.b16 %v1173, %v1171
    %v1318 = vpack.c.b16 %v1174, %v1172
    %v1319 = vpack.c.b16 %v1177, %v1175
    %v1320 = vpack.c.b16 %v1178, %v1176
    %v1321 = vpack.c.b16 %v1181, %v1179
    %v1322 = vpack.c.b16 %v1182, %v1180
    %v1323 = vpack.c.b16 %v1185, %v1183
    %v1324 = vpack.c.b16 %v1186, %v1184
    %v1325 = vpack.c.b16 %v1189, %v1187
    %v1326 = vpack.c.b16 %v1190, %v1188
    %v1327 = vpack.c.b16 %v1193, %v1191
    %v1328 = vpack.c.b16 %v1194, %v1192
    %v1329 = vpack.c.b16 %v1197, %v1195
    %v1330 = vpack.c.b16 %v1198, %v1196
    %v1331 = vpack.c.b16 %v1201, %v1199
    %v1332 = vpack.c.b16 %v1202, %v1200
    %v1333 = vpack.c.b16 %v1205, %v1203
    %v1334 = vpack.c.b16 %v1206, %v1204
    %v1335 = vpack.c.b16 %v1209, %v1207
    %v1336 = vpack.c.b16 %v1210, %v1208
    %v1337 = vpack.c.b16 %v1213, %v1211
    %v1338 = vpack.c.b16 %v1214, %v1212
    %v1339 = vpack.c.b16 %v1217, %v1215
    %v1340 = vpack.c.b16 %v1218, %v1216
    %v1341 = vpack.c.b16 %v1221, %v1219
    %v1342 = vpack.c.b16 %v1222, %v1220
    %v1343 = vpack.c.b16 %v1225, %v1223
    %v1344 = vpack.c.b16 %v1226, %v1224
    %v1345 = vpack.c.b16 %v1229, %v1227
    %v1346 = vpack.c.b16 %v1230, %v1228
    %v1347 = vpack.c.b16 %v1233, %v1231
    %v1348 = vpack.c.b16 %v1234, %v1232
    %v1349 = vpack.c.b16 %v1237, %v1235
    %v1350 = vpack.c.b16 %v1238, %v1236
    %1463 = vmatprep.subr.bf16.mxu0 %v1240
    %1464 = vmatpush1.bf16.msra.mxu0 %v1239
    %1465 = vmatprep.subr.bf16.mxu0 %v1242
    %1466 = vmatpush1.bf16.msra.mxu0 %v1241
    %1467 = vmatprep.subr.bf16.mxu0 %v1244
    %1468 = vmatpush1.bf16.msra.mxu0 %v1243
    %1469 = vmatprep.subr.bf16.mxu0 %v1246
    %1470 = vmatpush1.bf16.msra.mxu0 %v1245
    %1471 = vmatprep.subr.bf16.mxu0 %v1248
    %1472 = vmatpush1.bf16.msra.mxu0 %v1247
    %1473 = vmatprep.subr.bf16.mxu0 %v1250
    %1474 = vmatpush1.bf16.msra.mxu0 %v1249
    %1475 = vmatprep.subr.bf16.mxu0 %v1252
    %1476 = vmatpush1.bf16.msra.mxu0 %v1251
    %1477 = vmatprep.subr.bf16.mxu0 %v1254
    %1478 = vmatpush1.bf16.msra.mxu0 %v1253
    %1479 = vmatprep.subr.bf16.mxu0 %v1256
    %1480 = vmatpush1.bf16.msra.mxu0 %v1255
    %1481 = vmatprep.subr.bf16.mxu0 %v1258
    %1482 = vmatpush1.bf16.msra.mxu0 %v1257
    %1483 = vmatprep.subr.bf16.mxu0 %v1260
    %1484 = vmatpush1.bf16.msra.mxu0 %v1259
    %1485 = vmatprep.subr.bf16.mxu0 %v1262
    %1486 = vmatpush1.bf16.msra.mxu0 %v1261
    %1487 = vmatprep.subr.bf16.mxu0 %v1264
    %1488 = vmatpush1.bf16.msra.mxu0 %v1263
    %1489 = vmatprep.subr.bf16.mxu0 %v1266
    %1490 = vmatpush1.bf16.msra.mxu0 %v1265
    %1491 = vmatprep.subr.bf16.mxu0 %v1268
    %1492 = vmatpush1.bf16.msra.mxu0 %v1267
    %1493 = vmatprep.subr.bf16.mxu0 %v1270
    %1494 = vmatpush1.bf16.msra.mxu0 %v1269
    %1495 = vmatprep.mubr.bf16.mxu0 %v680
    %1496 = vmatmul.mubr.bf16.gmra.mrb[0].mxu0 %v679
    %v1497 = vpop.f32.mrb[0].mxu0
    %v1498 = vadd.f32 %v320, %v1497
    %v1499 = vpop.f32.mrb[0].mxu0
    %v1500 = vadd.f32 %v324, %v1499
    %v1501 = vpop.f32.mrb[0].mxu0
    %v1502 = vadd.f32 %v320, %v1501
    %v1503 = vpop.f32.mrb[0].mxu0
    %v1504 = vadd.f32 %v324, %v1503
    %1505 = vmatprep.mubr.bf16.mxu0 %v687
    %1506 = vmatmul.mubr.bf16.gmra.mrb[0].mxu0 %v686
    %v1507 = vpop.f32.mrb[0].mxu0
    %v1508 = vadd.f32 %v320, %v1507
    %v1509 = vpop.f32.mrb[0].mxu0
    %v1510 = vadd.f32 %v324, %v1509
    %v1511 = vpop.f32.mrb[0].mxu0
    %v1512 = vadd.f32 %v320, %v1511
    %v1513 = vpop.f32.mrb[0].mxu0
    %v1514 = vadd.f32 %v324, %v1513
    %1515 = vmatprep.mubr.bf16.mxu0 %v694
    %1516 = vmatmul.mubr.bf16.gmra.mrb[0].mxu0 %v693
    %v1517 = vpop.f32.mrb[0].mxu0
    %v1518 = vadd.f32 %v320, %v1517
    %v1519 = vpop.f32.mrb[0].mxu0
    %v1520 = vadd.f32 %v324, %v1519
    %v1521 = vpop.f32.mrb[0].mxu0
    %v1522 = vadd.f32 %v320, %v1521
    %v1523 = vpop.f32.mrb[0].mxu0
    %v1524 = vadd.f32 %v324, %v1523
    %1525 = vmatprep.mubr.bf16.mxu0 %v701
    %1526 = vmatmul.mubr.bf16.gmra.mrb[0].mxu0 %v700
    %v1527 = vpop.f32.mrb[0].mxu0
    %v1528 = vadd.f32 %v320, %v1527
    %v1529 = vpop.f32.mrb[0].mxu0
    %v1530 = vadd.f32 %v324, %v1529
    %v1531 = vpop.f32.mrb[0].mxu0
    %v1532 = vadd.f32 %v320, %v1531
    %v1533 = vpop.f32.mrb[0].mxu0
    %v1534 = vadd.f32 %v324, %v1533
    %1535 = vmatprep.mubr.bf16.mxu0 %v708
    %1536 = vmatmul.mubr.bf16.gmra.mrb[0].mxu0 %v707
    %v1537 = vpop.f32.mrb[0].mxu0
    %v1538 = vadd.f32 %v320, %v1537
    %v1539 = vpop.f32.mrb[0].mxu0
    %v1540 = vadd.f32 %v324, %v1539
    %v1541 = vpop.f32.mrb[0].mxu0
    %v1542 = vadd.f32 %v320, %v1541
    %v1543 = vpop.f32.mrb[0].mxu0
    %v1544 = vadd.f32 %v324, %v1543
    %1545 = vmatprep.mubr.bf16.mxu0 %v715
    %1546 = vmatmul.mubr.bf16.gmra.mrb[0].mxu0 %v714
    %v1547 = vpop.f32.mrb[0].mxu0
    %v1548 = vadd.f32 %v320, %v1547
    %v1549 = vpop.f32.mrb[0].mxu0
    %v1550 = vadd.f32 %v324, %v1549
    %v1551 = vpop.f32.mrb[0].mxu0
    %v1552 = vadd.f32 %v320, %v1551
    %v1553 = vpop.f32.mrb[0].mxu0
    %v1554 = vadd.f32 %v324, %v1553
    %1555 = vmatprep.mubr.bf16.mxu0 %v722
    %1556 = vmatmul.mubr.bf16.gmra.mrb[0].mxu0 %v721
    %v1557 = vpop.f32.mrb[0].mxu0
    %v1558 = vadd.f32 %v320, %v1557
    %v1559 = vpop.f32.mrb[0].mxu0
    %v1560 = vadd.f32 %v324, %v1559
    %v1561 = vpop.f32.mrb[0].mxu0
    %v1562 = vadd.f32 %v320, %v1561
    %v1563 = vpop.f32.mrb[0].mxu0
    %v1564 = vadd.f32 %v324, %v1563
    %1565 = vmatprep.mubr.bf16.mxu0 %v729
    %1566 = vmatmul.mubr.bf16.gmra.mrb[0].mxu0 %v728
    %v1567 = vpop.f32.mrb[0].mxu0
    %v1568 = vadd.f32 %v320, %v1567
    %v1569 = vpop.f32.mrb[0].mxu0
    %v1570 = vadd.f32 %v324, %v1569
    %v1571 = vpop.f32.mrb[0].mxu0
    %v1572 = vadd.f32 %v320, %v1571
    %v1573 = vpop.f32.mrb[0].mxu0
    %v1574 = vadd.f32 %v324, %v1573
    %1575 = vmatprep.mubr.bf16.mxu0 %v736
    %1576 = vmatmul.mubr.bf16.gmra.mrb[0].mxu0 %v735
    %v1577 = vpop.f32.mrb[0].mxu0
    %v1578 = vadd.f32 %v320, %v1577
    %v1579 = vpop.f32.mrb[0].mxu0
    %v1580 = vadd.f32 %v324, %v1579
    %v1581 = vpop.f32.mrb[0].mxu0
    %v1582 = vadd.f32 %v320, %v1581
    %v1583 = vpop.f32.mrb[0].mxu0
    %v1584 = vadd.f32 %v324, %v1583
    %1585 = vmatprep.mubr.bf16.mxu0 %v743
    %1586 = vmatmul.mubr.bf16.gmra.mrb[0].mxu0 %v742
    %v1587 = vpop.f32.mrb[0].mxu0
    %v1588 = vadd.f32 %v320, %v1587
    %v1589 = vpop.f32.mrb[0].mxu0
    %v1590 = vadd.f32 %v324, %v1589
    %v1591 = vpop.f32.mrb[0].mxu0
    %v1592 = vadd.f32 %v320, %v1591
    %v1593 = vpop.f32.mrb[0].mxu0
    %v1594 = vadd.f32 %v324, %v1593
    %1595 = vmatprep.mubr.bf16.mxu0 %v750
    %1596 = vmatmul.mubr.bf16.gmra.mrb[0].mxu0 %v749
    %v1597 = vpop.f32.mrb[0].mxu0
    %v1598 = vadd.f32 %v320, %v1597
    %v1599 = vpop.f32.mrb[0].mxu0
    %v1600 = vadd.f32 %v324, %v1599
    %v1601 = vpop.f32.mrb[0].mxu0
    %v1602 = vadd.f32 %v320, %v1601
    %v1603 = vpop.f32.mrb[0].mxu0
    %v1604 = vadd.f32 %v324, %v1603
    %1605 = vmatprep.mubr.bf16.mxu0 %v757
    %1606 = vmatmul.mubr.bf16.gmra.mrb[0].mxu0 %v756
    %v1607 = vpop.f32.mrb[0].mxu0
    %v1608 = vadd.f32 %v320, %v1607
    %v1609 = vpop.f32.mrb[0].mxu0
    %v1610 = vadd.f32 %v324, %v1609
    %v1611 = vpop.f32.mrb[0].mxu0
    %v1612 = vadd.f32 %v320, %v1611
    %v1613 = vpop.f32.mrb[0].mxu0
    %v1614 = vadd.f32 %v324, %v1613
    %1615 = vmatprep.mubr.bf16.mxu0 %v764
    %1616 = vmatmul.mubr.bf16.gmra.mrb[0].mxu0 %v763
    %v1617 = vpop.f32.mrb[0].mxu0
    %v1618 = vadd.f32 %v320, %v1617
    %v1619 = vpop.f32.mrb[0].mxu0
    %v1620 = vadd.f32 %v324, %v1619
    %v1621 = vpop.f32.mrb[0].mxu0
    %v1622 = vadd.f32 %v320, %v1621
    %v1623 = vpop.f32.mrb[0].mxu0
    %v1624 = vadd.f32 %v324, %v1623
    %1625 = vmatprep.mubr.bf16.mxu0 %v771
    %1626 = vmatmul.mubr.bf16.gmra.mrb[0].mxu0 %v770
    %v1627 = vpop.f32.mrb[0].mxu0
    %v1628 = vadd.f32 %v320, %v1627
    %v1629 = vpop.f32.mrb[0].mxu0
    %v1630 = vadd.f32 %v324, %v1629
    %v1631 = vpop.f32.mrb[0].mxu0
    %v1632 = vadd.f32 %v320, %v1631
    %v1633 = vpop.f32.mrb[0].mxu0
    %v1634 = vadd.f32 %v324, %v1633
    %1635 = vmatprep.mubr.bf16.mxu0 %v778
    %1636 = vmatmul.mubr.bf16.gmra.mrb[0].mxu0 %v777
    %v1637 = vpop.f32.mrb[0].mxu0
    %v1638 = vadd.f32 %v320, %v1637
    %v1639 = vpop.f32.mrb[0].mxu0
    %v1640 = vadd.f32 %v324, %v1639
    %v1641 = vpop.f32.mrb[0].mxu0
    %v1642 = vadd.f32 %v320, %v1641
    %v1643 = vpop.f32.mrb[0].mxu0
    %v1644 = vadd.f32 %v324, %v1643
    %1645 = vmatprep.mubr.bf16.mxu0 %v785
    %1646 = vmatmul.mubr.bf16.gmra.mrb[0].mxu0 %v784
    %v1647 = vpop.f32.mrb[0].mxu0
    %v1648 = vadd.f32 %v320, %v1647
    %v1649 = vpop.f32.mrb[0].mxu0
    %v1650 = vadd.f32 %v324, %v1649
    %v1651 = vpop.f32.mrb[0].mxu0
    %v1652 = vadd.f32 %v320, %v1651
    %v1653 = vpop.f32.mrb[0].mxu0
    %v1654 = vadd.f32 %v324, %v1653
    %1655 = vdwg.mxu0
    %1656 = vmatprep.subr.bf16.mxu0 %v1272
    %1657 = vmatpush1.bf16.msra.mxu0 %v1271
    %1658 = vmatprep.subr.bf16.mxu0 %v1274
    %1659 = vmatpush1.bf16.msra.mxu0 %v1273
    %1660 = vmatprep.subr.bf16.mxu0 %v1276
    %1661 = vmatpush1.bf16.msra.mxu0 %v1275
    %1662 = vmatprep.subr.bf16.mxu0 %v1278
    %1663 = vmatpush1.bf16.msra.mxu0 %v1277
    %1664 = vmatprep.subr.bf16.mxu0 %v1280
    %1665 = vmatpush1.bf16.msra.mxu0 %v1279
    %1666 = vmatprep.subr.bf16.mxu0 %v1282
    %1667 = vmatpush1.bf16.msra.mxu0 %v1281
    %1668 = vmatprep.subr.bf16.mxu0 %v1284
    %1669 = vmatpush1.bf16.msra.mxu0 %v1283
    %1670 = vmatprep.subr.bf16.mxu0 %v1286
    %1671 = vmatpush1.bf16.msra.mxu0 %v1285
    %1672 = vmatprep.subr.bf16.mxu0 %v1288
    %1673 = vmatpush1.bf16.msra.mxu0 %v1287
    %1674 = vmatprep.subr.bf16.mxu0 %v1290
    %1675 = vmatpush1.bf16.msra.mxu0 %v1289
    %1676 = vmatprep.subr.bf16.mxu0 %v1292
    %1677 = vmatpush1.bf16.msra.mxu0 %v1291
    %1678 = vmatprep.subr.bf16.mxu0 %v1294
    %1679 = vmatpush1.bf16.msra.mxu0 %v1293
    %1680 = vmatprep.subr.bf16.mxu0 %v1296
    %1681 = vmatpush1.bf16.msra.mxu0 %v1295
    %1682 = vmatprep.subr.bf16.mxu0 %v1298
    %1683 = vmatpush1.bf16.msra.mxu0 %v1297
    %1684 = vmatprep.subr.bf16.mxu0 %v1300
    %1685 = vmatpush1.bf16.msra.mxu0 %v1299
    %1686 = vmatprep.subr.bf16.mxu0 %v1302
    %1687 = vmatpush1.bf16.msra.mxu0 %v1301
    %1688 = vmatprep.mubr.bf16.mxu0 %v682
    %1689 = vmatmul.mubr.bf16.gmra.mrb[0].mxu0 %v681
    %v1690 = vpop.f32.mrb[0].mxu0
    %v1691 = vadd.f32 %v1498, %v1690
    %v1692 = vpop.f32.mrb[0].mxu0
    %v1693 = vadd.f32 %v1500, %v1692
    %v1694 = vpop.f32.mrb[0].mxu0
    %v1695 = vadd.f32 %v1502, %v1694
    %v1696 = vpop.f32.mrb[0].mxu0
    %v1697 = vadd.f32 %v1504, %v1696
    %1698 = vmatprep.mubr.bf16.mxu0 %v689
    %1699 = vmatmul.mubr.bf16.gmra.mrb[0].mxu0 %v688
    %v1700 = vpop.f32.mrb[0].mxu0
    %v1701 = vadd.f32 %v1508, %v1700
    %v1702 = vpop.f32.mrb[0].mxu0
    %v1703 = vadd.f32 %v1510, %v1702
    %v1704 = vpop.f32.mrb[0].mxu0
    %v1705 = vadd.f32 %v1512, %v1704
    %v1706 = vpop.f32.mrb[0].mxu0
    %v1707 = vadd.f32 %v1514, %v1706
    %1708 = vmatprep.mubr.bf16.mxu0 %v696
    %1709 = vmatmul.mubr.bf16.gmra.mrb[0].mxu0 %v695
    %v1710 = vpop.f32.mrb[0].mxu0
    %v1711 = vadd.f32 %v1518, %v1710
    %v1712 = vpop.f32.mrb[0].mxu0
    %v1713 = vadd.f32 %v1520, %v1712
    %v1714 = vpop.f32.mrb[0].mxu0
    %v1715 = vadd.f32 %v1522, %v1714
    %v1716 = vpop.f32.mrb[0].mxu0
    %v1717 = vadd.f32 %v1524, %v1716
    %1718 = vmatprep.mubr.bf16.mxu0 %v703
    %1719 = vmatmul.mubr.bf16.gmra.mrb[0].mxu0 %v702
    %v1720 = vpop.f32.mrb[0].mxu0
    %v1721 = vadd.f32 %v1528, %v1720
    %v1722 = vpop.f32.mrb[0].mxu0
    %v1723 = vadd.f32 %v1530, %v1722
    %v1724 = vpop.f32.mrb[0].mxu0
    %v1725 = vadd.f32 %v1532, %v1724
    %v1726 = vpop.f32.mrb[0].mxu0
    %v1727 = vadd.f32 %v1534, %v1726
    %1728 = vmatprep.mubr.bf16.mxu0 %v710
    %1729 = vmatmul.mubr.bf16.gmra.mrb[0].mxu0 %v709
    %v1730 = vpop.f32.mrb[0].mxu0
    %v1731 = vadd.f32 %v1538, %v1730
    %v1732 = vpop.f32.mrb[0].mxu0
    %v1733 = vadd.f32 %v1540, %v1732
    %v1734 = vpop.f32.mrb[0].mxu0
    %v1735 = vadd.f32 %v1542, %v1734
    %v1736 = vpop.f32.mrb[0].mxu0
    %v1737 = vadd.f32 %v1544, %v1736
    %1738 = vmatprep.mubr.bf16.mxu0 %v717
    %1739 = vmatmul.mubr.bf16.gmra.mrb[0].mxu0 %v716
    %v1740 = vpop.f32.mrb[0].mxu0
    %v1741 = vadd.f32 %v1548, %v1740
    %v1742 = vpop.f32.mrb[0].mxu0
    %v1743 = vadd.f32 %v1550, %v1742
    %v1744 = vpop.f32.mrb[0].mxu0
    %v1745 = vadd.f32 %v1552, %v1744
    %v1746 = vpop.f32.mrb[0].mxu0
    %v1747 = vadd.f32 %v1554, %v1746
    %1748 = vmatprep.mubr.bf16.mxu0 %v724
    %1749 = vmatmul.mubr.bf16.gmra.mrb[0].mxu0 %v723
    %v1750 = vpop.f32.mrb[0].mxu0
    %v1751 = vadd.f32 %v1558, %v1750
    %v1752 = vpop.f32.mrb[0].mxu0
    %v1753 = vadd.f32 %v1560, %v1752
    %v1754 = vpop.f32.mrb[0].mxu0
    %v1755 = vadd.f32 %v1562, %v1754
    %v1756 = vpop.f32.mrb[0].mxu0
    %v1757 = vadd.f32 %v1564, %v1756
    %1758 = vmatprep.mubr.bf16.mxu0 %v731
    %1759 = vmatmul.mubr.bf16.gmra.mrb[0].mxu0 %v730
    %v1760 = vpop.f32.mrb[0].mxu0
    %v1761 = vadd.f32 %v1568, %v1760
    %v1762 = vpop.f32.mrb[0].mxu0
    %v1763 = vadd.f32 %v1570, %v1762
    %v1764 = vpop.f32.mrb[0].mxu0
    %v1765 = vadd.f32 %v1572, %v1764
    %v1766 = vpop.f32.mrb[0].mxu0
    %v1767 = vadd.f32 %v1574, %v1766
    %1768 = vmatprep.mubr.bf16.mxu0 %v738
    %1769 = vmatmul.mubr.bf16.gmra.mrb[0].mxu0 %v737
    %v1770 = vpop.f32.mrb[0].mxu0
    %v1771 = vadd.f32 %v1578, %v1770
    %v1772 = vpop.f32.mrb[0].mxu0
    %v1773 = vadd.f32 %v1580, %v1772
    %v1774 = vpop.f32.mrb[0].mxu0
    %v1775 = vadd.f32 %v1582, %v1774
    %v1776 = vpop.f32.mrb[0].mxu0
    %v1777 = vadd.f32 %v1584, %v1776
    %1778 = vmatprep.mubr.bf16.mxu0 %v745
    %1779 = vmatmul.mubr.bf16.gmra.mrb[0].mxu0 %v744
    %v1780 = vpop.f32.mrb[0].mxu0
    %v1781 = vadd.f32 %v1588, %v1780
    %v1782 = vpop.f32.mrb[0].mxu0
    %v1783 = vadd.f32 %v1590, %v1782
    %v1784 = vpop.f32.mrb[0].mxu0
    %v1785 = vadd.f32 %v1592, %v1784
    %v1786 = vpop.f32.mrb[0].mxu0
    %v1787 = vadd.f32 %v1594, %v1786
    %1788 = vmatprep.mubr.bf16.mxu0 %v752
    %1789 = vmatmul.mubr.bf16.gmra.mrb[0].mxu0 %v751
    %v1790 = vpop.f32.mrb[0].mxu0
    %v1791 = vadd.f32 %v1598, %v1790
    %v1792 = vpop.f32.mrb[0].mxu0
    %v1793 = vadd.f32 %v1600, %v1792
    %v1794 = vpop.f32.mrb[0].mxu0
    %v1795 = vadd.f32 %v1602, %v1794
    %v1796 = vpop.f32.mrb[0].mxu0
    %v1797 = vadd.f32 %v1604, %v1796
    %1798 = vmatprep.mubr.bf16.mxu0 %v759
    %1799 = vmatmul.mubr.bf16.gmra.mrb[0].mxu0 %v758
    %v1800 = vpop.f32.mrb[0].mxu0
    %v1801 = vadd.f32 %v1608, %v1800
    %v1802 = vpop.f32.mrb[0].mxu0
    %v1803 = vadd.f32 %v1610, %v1802
    %v1804 = vpop.f32.mrb[0].mxu0
    %v1805 = vadd.f32 %v1612, %v1804
    %v1806 = vpop.f32.mrb[0].mxu0
    %v1807 = vadd.f32 %v1614, %v1806
    %1808 = vmatprep.mubr.bf16.mxu0 %v766
    %1809 = vmatmul.mubr.bf16.gmra.mrb[0].mxu0 %v765
    %v1810 = vpop.f32.mrb[0].mxu0
    %v1811 = vadd.f32 %v1618, %v1810
    %v1812 = vpop.f32.mrb[0].mxu0
    %v1813 = vadd.f32 %v1620, %v1812
    %v1814 = vpop.f32.mrb[0].mxu0
    %v1815 = vadd.f32 %v1622, %v1814
    %v1816 = vpop.f32.mrb[0].mxu0
    %v1817 = vadd.f32 %v1624, %v1816
    %1818 = vmatprep.mubr.bf16.mxu0 %v773
    %1819 = vmatmul.mubr.bf16.gmra.mrb[0].mxu0 %v772
    %v1820 = vpop.f32.mrb[0].mxu0
    %v1821 = vadd.f32 %v1628, %v1820
    %v1822 = vpop.f32.mrb[0].mxu0
    %v1823 = vadd.f32 %v1630, %v1822
    %v1824 = vpop.f32.mrb[0].mxu0
    %v1825 = vadd.f32 %v1632, %v1824
    %v1826 = vpop.f32.mrb[0].mxu0
    %v1827 = vadd.f32 %v1634, %v1826
    %1828 = vmatprep.mubr.bf16.mxu0 %v780
    %1829 = vmatmul.mubr.bf16.gmra.mrb[0].mxu0 %v779
    %v1830 = vpop.f32.mrb[0].mxu0
    %v1831 = vadd.f32 %v1638, %v1830
    %v1832 = vpop.f32.mrb[0].mxu0
    %v1833 = vadd.f32 %v1640, %v1832
    %v1834 = vpop.f32.mrb[0].mxu0
    %v1835 = vadd.f32 %v1642, %v1834
    %v1836 = vpop.f32.mrb[0].mxu0
    %v1837 = vadd.f32 %v1644, %v1836
    %1838 = vmatprep.mubr.bf16.mxu0 %v787
    %1839 = vmatmul.mubr.bf16.gmra.mrb[0].mxu0 %v786
    %v1840 = vpop.f32.mrb[0].mxu0
    %v1841 = vadd.f32 %v1648, %v1840
    %v1842 = vpop.f32.mrb[0].mxu0
    %v1843 = vadd.f32 %v1650, %v1842
    %v1844 = vpop.f32.mrb[0].mxu0
    %v1845 = vadd.f32 %v1652, %v1844
    %v1846 = vpop.f32.mrb[0].mxu0
    %v1847 = vadd.f32 %v1654, %v1846
    %1848 = vdwg.mxu0
    %1849 = vmatprep.subr.bf16.mxu0 %v1304
    %1850 = vmatpush1.bf16.msra.mxu0 %v1303
    %1851 = vmatprep.subr.bf16.mxu0 %v1306
    %1852 = vmatpush1.bf16.msra.mxu0 %v1305
    %1853 = vmatprep.subr.bf16.mxu0 %v1308
    %1854 = vmatpush1.bf16.msra.mxu0 %v1307
    %1855 = vmatprep.subr.bf16.mxu0 %v1310
    %1856 = vmatpush1.bf16.msra.mxu0 %v1309
    %1857 = vmatprep.subr.bf16.mxu0 %v1312
    %1858 = vmatpush1.bf16.msra.mxu0 %v1311
    %1859 = vmatprep.subr.bf16.mxu0 %v1314
    %1860 = vmatpush1.bf16.msra.mxu0 %v1313
    %1861 = vmatprep.subr.bf16.mxu0 %v1316
    %1862 = vmatpush1.bf16.msra.mxu0 %v1315
    %1863 = vmatprep.subr.bf16.mxu0 %v1318
    %1864 = vmatpush1.bf16.msra.mxu0 %v1317
    %1865 = vmatprep.subr.bf16.mxu0 %v1320
    %1866 = vmatpush1.bf16.msra.mxu0 %v1319
    %1867 = vmatprep.subr.bf16.mxu0 %v1322
    %1868 = vmatpush1.bf16.msra.mxu0 %v1321
    %1869 = vmatprep.subr.bf16.mxu0 %v1324
    %1870 = vmatpush1.bf16.msra.mxu0 %v1323
    %1871 = vmatprep.subr.bf16.mxu0 %v1326
    %1872 = vmatpush1.bf16.msra.mxu0 %v1325
    %1873 = vmatprep.subr.bf16.mxu0 %v1328
    %1874 = vmatpush1.bf16.msra.mxu0 %v1327
    %1875 = vmatprep.subr.bf16.mxu0 %v1330
    %1876 = vmatpush1.bf16.msra.mxu0 %v1329
    %1877 = vmatprep.subr.bf16.mxu0 %v1332
    %1878 = vmatpush1.bf16.msra.mxu0 %v1331
    %1879 = vmatprep.subr.bf16.mxu0 %v1334
    %1880 = vmatpush1.bf16.msra.mxu0 %v1333
    %1881 = vmatprep.mubr.bf16.mxu0 %v684
    %1882 = vmatmul.mubr.bf16.gmra.mrb[0].mxu0 %v683
    %v1883 = vpop.f32.mrb[0].mxu0
    %v1884 = vadd.f32 %v1691, %v1883
    %v1885 = vpop.f32.mrb[0].mxu0
    %v1886 = vadd.f32 %v1693, %v1885
    %v1887 = vpop.f32.mrb[0].mxu0
    %v1888 = vadd.f32 %v1695, %v1887
    %v1889 = vpop.f32.mrb[0].mxu0
    %v1890 = vadd.f32 %v1697, %v1889
    %1891 = vmatprep.mubr.bf16.mxu0 %v691
    %1892 = vmatmul.mubr.bf16.gmra.mrb[0].mxu0 %v690
    %v1893 = vpop.f32.mrb[0].mxu0
    %v1894 = vadd.f32 %v1701, %v1893
    %v1895 = vpop.f32.mrb[0].mxu0
    %v1896 = vadd.f32 %v1703, %v1895
    %v1897 = vpop.f32.mrb[0].mxu0
    %v1898 = vadd.f32 %v1705, %v1897
    %v1899 = vpop.f32.mrb[0].mxu0
    %v1900 = vadd.f32 %v1707, %v1899
    %1901 = vmatprep.mubr.bf16.mxu0 %v698
    %1902 = vmatmul.mubr.bf16.gmra.mrb[0].mxu0 %v697
    %v1903 = vpop.f32.mrb[0].mxu0
    %v1904 = vadd.f32 %v1711, %v1903
    %v1905 = vpop.f32.mrb[0].mxu0
    %v1906 = vadd.f32 %v1713, %v1905
    %v1907 = vpop.f32.mrb[0].mxu0
    %v1908 = vadd.f32 %v1715, %v1907
    %v1909 = vpop.f32.mrb[0].mxu0
    %v1910 = vadd.f32 %v1717, %v1909
    %1911 = vmatprep.mubr.bf16.mxu0 %v705
    %1912 = vmatmul.mubr.bf16.gmra.mrb[0].mxu0 %v704
    %v1913 = vpop.f32.mrb[0].mxu0
    %v1914 = vadd.f32 %v1721, %v1913
    %v1915 = vpop.f32.mrb[0].mxu0
    %v1916 = vadd.f32 %v1723, %v1915
    %v1917 = vpop.f32.mrb[0].mxu0
    %v1918 = vadd.f32 %v1725, %v1917
    %v1919 = vpop.f32.mrb[0].mxu0
    %v1920 = vadd.f32 %v1727, %v1919
    %1921 = vmatprep.mubr.bf16.mxu0 %v712
    %1922 = vmatmul.mubr.bf16.gmra.mrb[0].mxu0 %v711
    %v1923 = vpop.f32.mrb[0].mxu0
    %v1924 = vadd.f32 %v1731, %v1923
    %v1925 = vpop.f32.mrb[0].mxu0
    %v1926 = vadd.f32 %v1733, %v1925
    %v1927 = vpop.f32.mrb[0].mxu0
    %v1928 = vadd.f32 %v1735, %v1927
    %v1929 = vpop.f32.mrb[0].mxu0
    %v1930 = vadd.f32 %v1737, %v1929
    %1931 = vmatprep.mubr.bf16.mxu0 %v719
    %1932 = vmatmul.mubr.bf16.gmra.mrb[0].mxu0 %v718
    %v1933 = vpop.f32.mrb[0].mxu0
    %v1934 = vadd.f32 %v1741, %v1933
    %v1935 = vpop.f32.mrb[0].mxu0
    %v1936 = vadd.f32 %v1743, %v1935
    %v1937 = vpop.f32.mrb[0].mxu0
    %v1938 = vadd.f32 %v1745, %v1937
    %v1939 = vpop.f32.mrb[0].mxu0
    %v1940 = vadd.f32 %v1747, %v1939
    %1941 = vmatprep.mubr.bf16.mxu0 %v726
    %1942 = vmatmul.mubr.bf16.gmra.mrb[0].mxu0 %v725
    %v1943 = vpop.f32.mrb[0].mxu0
    %v1944 = vadd.f32 %v1751, %v1943
    %v1945 = vpop.f32.mrb[0].mxu0
    %v1946 = vadd.f32 %v1753, %v1945
    %v1947 = vpop.f32.mrb[0].mxu0
    %v1948 = vadd.f32 %v1755, %v1947
    %v1949 = vpop.f32.mrb[0].mxu0
    %v1950 = vadd.f32 %v1757, %v1949
    %1951 = vmatprep.mubr.bf16.mxu0 %v733
    %1952 = vmatmul.mubr.bf16.gmra.mrb[0].mxu0 %v732
    %v1953 = vpop.f32.mrb[0].mxu0
    %v1954 = vadd.f32 %v1761, %v1953
    %v1955 = vpop.f32.mrb[0].mxu0
    %v1956 = vadd.f32 %v1763, %v1955
    %v1957 = vpop.f32.mrb[0].mxu0
    %v1958 = vadd.f32 %v1765, %v1957
    %v1959 = vpop.f32.mrb[0].mxu0
    %v1960 = vadd.f32 %v1767, %v1959
    %1961 = vmatprep.mubr.bf16.mxu0 %v740
    %1962 = vmatmul.mubr.bf16.gmra.mrb[0].mxu0 %v739
    %v1963 = vpop.f32.mrb[0].mxu0
    %v1964 = vadd.f32 %v1771, %v1963
    %v1965 = vpop.f32.mrb[0].mxu0
    %v1966 = vadd.f32 %v1773, %v1965
    %v1967 = vpop.f32.mrb[0].mxu0
    %v1968 = vadd.f32 %v1775, %v1967
    %v1969 = vpop.f32.mrb[0].mxu0
    %v1970 = vadd.f32 %v1777, %v1969
    %1971 = vmatprep.mubr.bf16.mxu0 %v747
    %1972 = vmatmul.mubr.bf16.gmra.mrb[0].mxu0 %v746
    %v1973 = vpop.f32.mrb[0].mxu0
    %v1974 = vadd.f32 %v1781, %v1973
    %v1975 = vpop.f32.mrb[0].mxu0
    %v1976 = vadd.f32 %v1783, %v1975
    %v1977 = vpop.f32.mrb[0].mxu0
    %v1978 = vadd.f32 %v1785, %v1977
    %v1979 = vpop.f32.mrb[0].mxu0
    %v1980 = vadd.f32 %v1787, %v1979
    %1981 = vmatprep.mubr.bf16.mxu0 %v754
    %1982 = vmatmul.mubr.bf16.gmra.mrb[0].mxu0 %v753
    %v1983 = vpop.f32.mrb[0].mxu0
    %v1984 = vadd.f32 %v1791, %v1983
    %v1985 = vpop.f32.mrb[0].mxu0
    %v1986 = vadd.f32 %v1793, %v1985
    %v1987 = vpop.f32.mrb[0].mxu0
    %v1988 = vadd.f32 %v1795, %v1987
    %v1989 = vpop.f32.mrb[0].mxu0
    %v1990 = vadd.f32 %v1797, %v1989
    %1991 = vmatprep.mubr.bf16.mxu0 %v761
    %1992 = vmatmul.mubr.bf16.gmra.mrb[0].mxu0 %v760
    %v1993 = vpop.f32.mrb[0].mxu0
    %v1994 = vadd.f32 %v1801, %v1993
    %v1995 = vpop.f32.mrb[0].mxu0
    %v1996 = vadd.f32 %v1803, %v1995
    %v1997 = vpop.f32.mrb[0].mxu0
    %v1998 = vadd.f32 %v1805, %v1997
    %v1999 = vpop.f32.mrb[0].mxu0
    %v2000 = vadd.f32 %v1807, %v1999
    %2001 = vmatprep.mubr.bf16.mxu0 %v768
    %2002 = vmatmul.mubr.bf16.gmra.mrb[0].mxu0 %v767
    %v2003 = vpop.f32.mrb[0].mxu0
    %v2004 = vadd.f32 %v1811, %v2003
    %v2005 = vpop.f32.mrb[0].mxu0
    %v2006 = vadd.f32 %v1813, %v2005
    %v2007 = vpop.f32.mrb[0].mxu0
    %v2008 = vadd.f32 %v1815, %v2007
    %v2009 = vpop.f32.mrb[0].mxu0
    %v2010 = vadd.f32 %v1817, %v2009
    %2011 = vmatprep.mubr.bf16.mxu0 %v775
    %2012 = vmatmul.mubr.bf16.gmra.mrb[0].mxu0 %v774
    %v2013 = vpop.f32.mrb[0].mxu0
    %v2014 = vadd.f32 %v1821, %v2013
    %v2015 = vpop.f32.mrb[0].mxu0
    %v2016 = vadd.f32 %v1823, %v2015
    %v2017 = vpop.f32.mrb[0].mxu0
    %v2018 = vadd.f32 %v1825, %v2017
    %v2019 = vpop.f32.mrb[0].mxu0
    %v2020 = vadd.f32 %v1827, %v2019
    %2021 = vmatprep.mubr.bf16.mxu0 %v782
    %2022 = vmatmul.mubr.bf16.gmra.mrb[0].mxu0 %v781
    %v2023 = vpop.f32.mrb[0].mxu0
    %v2024 = vadd.f32 %v1831, %v2023
    %v2025 = vpop.f32.mrb[0].mxu0
    %v2026 = vadd.f32 %v1833, %v2025
    %v2027 = vpop.f32.mrb[0].mxu0
    %v2028 = vadd.f32 %v1835, %v2027
    %v2029 = vpop.f32.mrb[0].mxu0
    %v2030 = vadd.f32 %v1837, %v2029
    %2031 = vmatprep.mubr.bf16.mxu0 %v789
    %2032 = vmatmul.mubr.bf16.gmra.mrb[0].mxu0 %v788
    %v2033 = vpop.f32.mrb[0].mxu0
    %v2034 = vadd.f32 %v1841, %v2033
    %v2035 = vpop.f32.mrb[0].mxu0
    %v2036 = vadd.f32 %v1843, %v2035
    %v2037 = vpop.f32.mrb[0].mxu0
    %v2038 = vadd.f32 %v1845, %v2037
    %v2039 = vpop.f32.mrb[0].mxu0
    %v2040 = vadd.f32 %v1847, %v2039
    %2041 = vdwg.mxu0
    %2042 = vmatprep.subr.bf16.mxu0 %v1336
    %2043 = vmatpush1.bf16.msra.mxu0 %v1335
    %2044 = vmatprep.subr.bf16.mxu0 %v1338
    %2045 = vmatpush1.bf16.msra.mxu0 %v1337
    %2046 = vmatprep.subr.bf16.mxu0 %v1340
    %2047 = vmatpush1.bf16.msra.mxu0 %v1339
    %2048 = vmatprep.subr.bf16.mxu0 %v1342
    %2049 = vmatpush1.bf16.msra.mxu0 %v1341
    %2050 = vmatprep.subr.bf16.mxu0 %v1344
    %2051 = vmatpush1.bf16.msra.mxu0 %v1343
    %2052 = vmatprep.subr.bf16.mxu0 %v1346
    %2053 = vmatpush1.bf16.msra.mxu0 %v1345
    %2054 = vmatprep.subr.bf16.mxu0 %v1348
    %2055 = vmatpush1.bf16.msra.mxu0 %v1347
    %2056 = vmatprep.subr.bf16.mxu0 %v1350
    %2057 = vmatpush1.bf16.msra.mxu0 %v1349
    %2058 = vmatprep.subr.bf16.mxu0 0
    %2059 = vmatpush1.bf16.msra.mxu0 0
    %2060 = vmatprep.subr.bf16.mxu0 0
    %2061 = vmatpush1.bf16.msra.mxu0 0
    %2062 = vmatprep.subr.bf16.mxu0 0
    %2063 = vmatpush1.bf16.msra.mxu0 0
    %2064 = vmatprep.subr.bf16.mxu0 0
    %2065 = vmatpush1.bf16.msra.mxu0 0
    %2066 = vmatprep.subr.bf16.mxu0 0
    %2067 = vmatpush1.bf16.msra.mxu0 0
    %2068 = vmatprep.subr.bf16.mxu0 0
    %2069 = vmatpush1.bf16.msra.mxu0 0
    %2070 = vmatprep.subr.bf16.mxu0 0
    %2071 = vmatpush1.bf16.msra.mxu0 0
    %2072 = vmatprep.subr.bf16.mxu0 0
    %2073 = vmatpush1.bf16.msra.mxu0 0
    %2074 = vmatprep.mubr.bf16.mxu0 0
    %2075 = vmatmul.mubr.bf16.gmra.mrb[0].mxu0 %v685
    %v2076 = vpop.f32.mrb[0].mxu0
    %v2077 = vadd.f32 %v1884, %v2076
    %v2078 = vpop.f32.mrb[0].mxu0
    %v2079 = vadd.f32 %v1886, %v2078
    %v2080 = vpop.f32.mrb[0].mxu0
    %v2081 = vadd.f32 %v1888, %v2080
    %v2082 = vpop.f32.mrb[0].mxu0
    %v2083 = vadd.f32 %v1890, %v2082
    %2084 = vmatprep.mubr.bf16.mxu0 0
    %2085 = vmatmul.mubr.bf16.gmra.mrb[0].mxu0 %v692
    %v2086 = vpop.f32.mrb[0].mxu0
    %v2087 = vadd.f32 %v1894, %v2086
    %v2088 = vpop.f32.mrb[0].mxu0
    %v2089 = vadd.f32 %v1896, %v2088
    %v2090 = vpop.f32.mrb[0].mxu0
    %v2091 = vadd.f32 %v1898, %v2090
    %v2092 = vpop.f32.mrb[0].mxu0
    %v2093 = vadd.f32 %v1900, %v2092
    %2094 = vmatprep.mubr.bf16.mxu0 0
    %2095 = vmatmul.mubr.bf16.gmra.mrb[0].mxu0 %v699
    %v2096 = vpop.f32.mrb[0].mxu0
    %v2097 = vadd.f32 %v1904, %v2096
    %v2098 = vpop.f32.mrb[0].mxu0
    %v2099 = vadd.f32 %v1906, %v2098
    %v2100 = vpop.f32.mrb[0].mxu0
    %v2101 = vadd.f32 %v1908, %v2100
    %v2102 = vpop.f32.mrb[0].mxu0
    %v2103 = vadd.f32 %v1910, %v2102
    %2104 = vmatprep.mubr.bf16.mxu0 0
    %2105 = vmatmul.mubr.bf16.gmra.mrb[0].mxu0 %v706
    %v2106 = vpop.f32.mrb[0].mxu0
    %v2107 = vadd.f32 %v1914, %v2106
    %v2108 = vpop.f32.mrb[0].mxu0
    %v2109 = vadd.f32 %v1916, %v2108
    %v2110 = vpop.f32.mrb[0].mxu0
    %v2111 = vadd.f32 %v1918, %v2110
    %v2112 = vpop.f32.mrb[0].mxu0
    %v2113 = vadd.f32 %v1920, %v2112
    %2114 = vmatprep.mubr.bf16.mxu0 0
    %2115 = vmatmul.mubr.bf16.gmra.mrb[0].mxu0 %v713
    %v2116 = vpop.f32.mrb[0].mxu0
    %v2117 = vadd.f32 %v1924, %v2116
    %v2118 = vpop.f32.mrb[0].mxu0
    %v2119 = vadd.f32 %v1926, %v2118
    %v2120 = vpop.f32.mrb[0].mxu0
    %v2121 = vadd.f32 %v1928, %v2120
    %v2122 = vpop.f32.mrb[0].mxu0
    %v2123 = vadd.f32 %v1930, %v2122
    %2124 = vmatprep.mubr.bf16.mxu0 0
    %2125 = vmatmul.mubr.bf16.gmra.mrb[0].mxu0 %v720
    %v2126 = vpop.f32.mrb[0].mxu0
    %v2127 = vadd.f32 %v1934, %v2126
    %v2128 = vpop.f32.mrb[0].mxu0
    %v2129 = vadd.f32 %v1936, %v2128
    %v2130 = vpop.f32.mrb[0].mxu0
    %v2131 = vadd.f32 %v1938, %v2130
    %v2132 = vpop.f32.mrb[0].mxu0
    %v2133 = vadd.f32 %v1940, %v2132
    %2134 = vmatprep.mubr.bf16.mxu0 0
    %2135 = vmatmul.mubr.bf16.gmra.mrb[0].mxu0 %v727
    %v2136 = vpop.f32.mrb[0].mxu0
    %v2137 = vadd.f32 %v1944, %v2136
    %v2138 = vpop.f32.mrb[0].mxu0
    %v2139 = vadd.f32 %v1946, %v2138
    %v2140 = vpop.f32.mrb[0].mxu0
    %v2141 = vadd.f32 %v1948, %v2140
    %v2142 = vpop.f32.mrb[0].mxu0
    %v2143 = vadd.f32 %v1950, %v2142
    %2144 = vmatprep.mubr.bf16.mxu0 0
    %2145 = vmatmul.mubr.bf16.gmra.mrb[0].mxu0 %v734
    %v2146 = vpop.f32.mrb[0].mxu0
    %v2147 = vadd.f32 %v1954, %v2146
    %v2148 = vpop.f32.mrb[0].mxu0
    %v2149 = vadd.f32 %v1956, %v2148
    %v2150 = vpop.f32.mrb[0].mxu0
    %v2151 = vadd.f32 %v1958, %v2150
    %v2152 = vpop.f32.mrb[0].mxu0
    %v2153 = vadd.f32 %v1960, %v2152
    %2154 = vmatprep.mubr.bf16.mxu0 0
    %2155 = vmatmul.mubr.bf16.gmra.mrb[0].mxu0 %v741
    %v2156 = vpop.f32.mrb[0].mxu0
    %v2157 = vadd.f32 %v1964, %v2156
    %v2158 = vpop.f32.mrb[0].mxu0
    %v2159 = vadd.f32 %v1966, %v2158
    %v2160 = vpop.f32.mrb[0].mxu0
    %v2161 = vadd.f32 %v1968, %v2160
    %v2162 = vpop.f32.mrb[0].mxu0
    %v2163 = vadd.f32 %v1970, %v2162
    %2164 = vmatprep.mubr.bf16.mxu0 0
    %2165 = vmatmul.mubr.bf16.gmra.mrb[0].mxu0 %v748
    %v2166 = vpop.f32.mrb[0].mxu0
    %v2167 = vadd.f32 %v1974, %v2166
    %v2168 = vpop.f32.mrb[0].mxu0
    %v2169 = vadd.f32 %v1976, %v2168
    %v2170 = vpop.f32.mrb[0].mxu0
    %v2171 = vadd.f32 %v1978, %v2170
    %v2172 = vpop.f32.mrb[0].mxu0
    %v2173 = vadd.f32 %v1980, %v2172
    %2174 = vmatprep.mubr.bf16.mxu0 0
    %2175 = vmatmul.mubr.bf16.gmra.mrb[0].mxu0 %v755
    %v2176 = vpop.f32.mrb[0].mxu0
    %v2177 = vadd.f32 %v1984, %v2176
    %v2178 = vpop.f32.mrb[0].mxu0
    %v2179 = vadd.f32 %v1986, %v2178
    %v2180 = vpop.f32.mrb[0].mxu0
    %v2181 = vadd.f32 %v1988, %v2180
    %v2182 = vpop.f32.mrb[0].mxu0
    %v2183 = vadd.f32 %v1990, %v2182
    %2184 = vmatprep.mubr.bf16.mxu0 0
    %2185 = vmatmul.mubr.bf16.gmra.mrb[0].mxu0 %v762
    %v2186 = vpop.f32.mrb[0].mxu0
    %v2187 = vadd.f32 %v1994, %v2186
    %v2188 = vpop.f32.mrb[0].mxu0
    %v2189 = vadd.f32 %v1996, %v2188
    %v2190 = vpop.f32.mrb[0].mxu0
    %v2191 = vadd.f32 %v1998, %v2190
    %v2192 = vpop.f32.mrb[0].mxu0
    %v2193 = vadd.f32 %v2000, %v2192
    %2194 = vmatprep.mubr.bf16.mxu0 0
    %2195 = vmatmul.mubr.bf16.gmra.mrb[0].mxu0 %v769
    %v2196 = vpop.f32.mrb[0].mxu0
    %v2197 = vadd.f32 %v2004, %v2196
    %v2198 = vpop.f32.mrb[0].mxu0
    %v2199 = vadd.f32 %v2006, %v2198
    %v2200 = vpop.f32.mrb[0].mxu0
    %v2201 = vadd.f32 %v2008, %v2200
    %v2202 = vpop.f32.mrb[0].mxu0
    %v2203 = vadd.f32 %v2010, %v2202
    %2204 = vmatprep.mubr.bf16.mxu0 0
    %2205 = vmatmul.mubr.bf16.gmra.mrb[0].mxu0 %v776
    %v2206 = vpop.f32.mrb[0].mxu0
    %v2207 = vadd.f32 %v2014, %v2206
    %v2208 = vpop.f32.mrb[0].mxu0
    %v2209 = vadd.f32 %v2016, %v2208
    %v2210 = vpop.f32.mrb[0].mxu0
    %v2211 = vadd.f32 %v2018, %v2210
    %v2212 = vpop.f32.mrb[0].mxu0
    %v2213 = vadd.f32 %v2020, %v2212
    %2214 = vmatprep.mubr.bf16.mxu0 0
    %2215 = vmatmul.mubr.bf16.gmra.mrb[0].mxu0 %v783
    %v2216 = vpop.f32.mrb[0].mxu0
    %v2217 = vadd.f32 %v2024, %v2216
    %v2218 = vpop.f32.mrb[0].mxu0
    %v2219 = vadd.f32 %v2026, %v2218
    %v2220 = vpop.f32.mrb[0].mxu0
    %v2221 = vadd.f32 %v2028, %v2220
    %v2222 = vpop.f32.mrb[0].mxu0
    %v2223 = vadd.f32 %v2030, %v2222
    %2224 = vmatprep.mubr.bf16.mxu0 0
    %2225 = vmatmul.mubr.bf16.gmra.mrb[0].mxu0 %v790
    %v2226 = vpop.f32.mrb[0].mxu0
    %v2227 = vadd.f32 %v2034, %v2226
    %v2228 = vpop.f32.mrb[0].mxu0
    %v2229 = vadd.f32 %v2036, %v2228
    %v2230 = vpop.f32.mrb[0].mxu0
    %v2231 = vadd.f32 %v2038, %v2230
    %v2232 = vpop.f32.mrb[0].mxu0
    %v2233 = vadd.f32 %v2040, %v2232
    %2234 = vdwg.mxu0
    %v2235 = vmax.f32 %v2077, 0.0
    %v2236 = vmax.f32 %v2079, 0.0
    %v2237 = vmax.f32 %v2081, 0.0
    %v2238 = vmax.f32 %v2083, 0.0
    %v2239 = vmax.f32 %v2087, 0.0
    %v2240 = vmax.f32 %v2089, 0.0
    %v2241 = vmax.f32 %v2091, 0.0
    %v2242 = vmax.f32 %v2093, 0.0
    %v2243 = vmax.f32 %v2097, 0.0
    %v2244 = vmax.f32 %v2099, 0.0
    %v2245 = vmax.f32 %v2101, 0.0
    %v2246 = vmax.f32 %v2103, 0.0
    %v2247 = vmax.f32 %v2107, 0.0
    %v2248 = vmax.f32 %v2109, 0.0
    %v2249 = vmax.f32 %v2111, 0.0
    %v2250 = vmax.f32 %v2113, 0.0
    %v2251 = vmax.f32 %v2117, 0.0
    %v2252 = vmax.f32 %v2119, 0.0
    %v2253 = vmax.f32 %v2121, 0.0
    %v2254 = vmax.f32 %v2123, 0.0
    %v2255 = vmax.f32 %v2127, 0.0
    %v2256 = vmax.f32 %v2129, 0.0
    %v2257 = vmax.f32 %v2131, 0.0
    %v2258 = vmax.f32 %v2133, 0.0
    %v2259 = vmax.f32 %v2137, 0.0
    %v2260 = vmax.f32 %v2139, 0.0
    %v2261 = vmax.f32 %v2141, 0.0
    %v2262 = vmax.f32 %v2143, 0.0
    %v2263 = vmax.f32 %v2147, 0.0
    %v2264 = vmax.f32 %v2149, 0.0
    %v2265 = vmax.f32 %v2151, 0.0
    %v2266 = vmax.f32 %v2153, 0.0
    %v2267 = vmax.f32 %v2157, 0.0
    %v2268 = vmax.f32 %v2159, 0.0
    %v2269 = vmax.f32 %v2161, 0.0
    %v2270 = vmax.f32 %v2163, 0.0
    %v2271 = vmax.f32 %v2167, 0.0
    %v2272 = vmax.f32 %v2169, 0.0
    %v2273 = vmax.f32 %v2171, 0.0
    %v2274 = vmax.f32 %v2173, 0.0
    %v2275 = vmax.f32 %v2177, 0.0
    %v2276 = vmax.f32 %v2179, 0.0
    %v2277 = vmax.f32 %v2181, 0.0
    %v2278 = vmax.f32 %v2183, 0.0
    %v2279 = vmax.f32 %v2187, 0.0
    %v2280 = vmax.f32 %v2189, 0.0
    %v2281 = vmax.f32 %v2191, 0.0
    %v2282 = vmax.f32 %v2193, 0.0
    %v2283 = vmax.f32 %v2197, 0.0
    %v2284 = vmax.f32 %v2199, 0.0
    %v2285 = vmax.f32 %v2201, 0.0
    %v2286 = vmax.f32 %v2203, 0.0
    %v2287 = vmax.f32 %v2207, 0.0
    %v2288 = vmax.f32 %v2209, 0.0
    %v2289 = vmax.f32 %v2211, 0.0
    %v2290 = vmax.f32 %v2213, 0.0
    %v2291 = vmax.f32 %v2217, 0.0
    %v2292 = vmax.f32 %v2219, 0.0
    %v2293 = vmax.f32 %v2221, 0.0
    %v2294 = vmax.f32 %v2223, 0.0
    %v2295 = vmax.f32 %v2227, 0.0
    %v2296 = vmax.f32 %v2229, 0.0
    %v2297 = vmax.f32 %v2231, 0.0
    %v2298 = vmax.f32 %v2233, 0.0
    %v2299 = vpack.c.bf16 %v2237, %v2235
    %v2300 = vpack.c.bf16 %v2238, %v2236
    %v2301 = vpack.c.bf16 %v2241, %v2239
    %v2302 = vpack.c.bf16 %v2242, %v2240
    %v2303 = vpack.c.bf16 %v2245, %v2243
    %v2304 = vpack.c.bf16 %v2246, %v2244
    %v2305 = vpack.c.bf16 %v2249, %v2247
    %v2306 = vpack.c.bf16 %v2250, %v2248
    %v2307 = vpack.c.bf16 %v2253, %v2251
    %v2308 = vpack.c.bf16 %v2254, %v2252
    %v2309 = vpack.c.bf16 %v2257, %v2255
    %v2310 = vpack.c.bf16 %v2258, %v2256
    %v2311 = vpack.c.bf16 %v2261, %v2259
    %v2312 = vpack.c.bf16 %v2262, %v2260
    %v2313 = vpack.c.bf16 %v2265, %v2263
    %v2314 = vpack.c.bf16 %v2266, %v2264
    %v2315 = vpack.c.bf16 %v2269, %v2267
    %v2316 = vpack.c.bf16 %v2270, %v2268
    %v2317 = vpack.c.bf16 %v2273, %v2271
    %v2318 = vpack.c.bf16 %v2274, %v2272
    %v2319 = vpack.c.bf16 %v2277, %v2275
    %v2320 = vpack.c.bf16 %v2278, %v2276
    %v2321 = vpack.c.bf16 %v2281, %v2279
    %v2322 = vpack.c.bf16 %v2282, %v2280
    %v2323 = vpack.c.bf16 %v2285, %v2283
    %v2324 = vpack.c.bf16 %v2286, %v2284
    %v2325 = vpack.c.bf16 %v2289, %v2287
    %v2326 = vpack.c.bf16 %v2290, %v2288
    %v2327 = vpack.c.bf16 %v2293, %v2291
    %v2328 = vpack.c.bf16 %v2294, %v2292
    %v2329 = vpack.c.bf16 %v2297, %v2295
    %v2330 = vpack.c.bf16 %v2298, %v2296
    %v2331 = vld [vmem:[%s3] sm:$0xf]
    %v2332 = vld [vmem:[%s3 + $0x4] sm:$0xf]
    %v2333 = vld [vmem:[%s3 + $0x8] sm:$0xf]
    %v2334 = vld [vmem:[%s3 + $0xc] sm:$0xf]
    %v2335 = vld [vmem:[%s3 + $0x10] sm:$0xf]
    %v2336 = vld [vmem:[%s3 + $0x14] sm:$0xf]
    %v2337 = vld [vmem:[%s3 + $0x18] sm:$0xf]
    %v2338 = vld [vmem:[%s3 + $0x1c] sm:$0xf]
    %v2339 = vld [vmem:[%s3 + $0x20] sm:$0xf]
    %v2340 = vld [vmem:[%s3 + $0x24] sm:$0xf]
    %v2341 = vld [vmem:[%s3 + $0x28] sm:$0xf]
    %v2342 = vld [vmem:[%s3 + $0x2c] sm:$0xf]
    %v2343 = vld [vmem:[%s3 + $0x30] sm:$0xf]
    %v2344 = vld [vmem:[%s3 + $0x34] sm:$0xf]
    %v2345 = vld [vmem:[%s3 + $0x38] sm:$0xf]
    %v2346 = vld [vmem:[%s3 + $0x3c] sm:$0xf]
    %v2347 = vld [vmem:[%s3 + $0x40] sm:$0xf]
    %v2348 = vld [vmem:[%s3 + $0x44] sm:$0xf]
    %v2349 = vld [vmem:[%s3 + $0x48] sm:$0xf]
    %v2350 = vld [vmem:[%s3 + $0x4c] sm:$0xf]
    %v2351 = vld [vmem:[%s3 + $0x50] sm:$0xf]
    %v2352 = vld [vmem:[%s3 + $0x54] sm:$0xf]
    %v2353 = vld [vmem:[%s3 + $0x58] sm:$0xf]
    %v2354 = vld [vmem:[%s3 + $0x5c] sm:$0xf]
    %v2355 = vld [vmem:[%s3 + $0x60] sm:$0xf]
    %v2356 = vld [vmem:[%s3 + $0x64] sm:$0xf]
    %v2357 = vld [vmem:[%s3 + $0x68] sm:$0xf]
    %v2358 = vld [vmem:[%s3 + $0x6c] sm:$0xf]
    %v2359 = vld [vmem:[%s3 + $0x70] sm:$0xf]
    %v2360 = vld [vmem:[%s3 + $0x74] sm:$0xf]
    %v2361 = vld [vmem:[%s3 + $0x78] sm:$0xf]
    %v2362 = vld [vmem:[%s3 + $0x7c] sm:$0xf]
    %v2363 = vld [vmem:[%s4] sm:$0x1]
    %v2365 = vlaneseq
    %v2366 = vshrl.u32 %v2365, 7
    %v2367 = vsub.s32 0, %v2366
    %v2368 = vrot.slane %v2363, %v2367
    %v2402 = vunpack.c.l.b16 %v2331
    %v2403 = vunpack.c.l.b16 %v2332
    %v2404 = vunpack.c.l.b16 %v2333
    %v2405 = vunpack.c.l.b16 %v2334
    %v2406 = vunpack.c.l.b16 %v2335
    %v2407 = vunpack.c.l.b16 %v2336
    %v2408 = vunpack.c.l.b16 %v2337
    %v2409 = vunpack.c.l.b16 %v2338
    %v2410 = vunpack.c.l.b16 %v2339
    %v2411 = vunpack.c.l.b16 %v2340
    %v2412 = vunpack.c.l.b16 %v2341
    %v2413 = vunpack.c.l.b16 %v2342
    %v2414 = vunpack.c.l.b16 %v2343
    %v2415 = vunpack.c.l.b16 %v2344
    %v2416 = vunpack.c.l.b16 %v2345
    %v2417 = vunpack.c.l.b16 %v2346
    %v2418 = vunpack.c.l.b16 %v2347
    %v2419 = vunpack.c.l.b16 %v2348
    %v2420 = vunpack.c.l.b16 %v2349
    %v2421 = vunpack.c.l.b16 %v2350
    %v2422 = vunpack.c.l.b16 %v2351
    %v2423 = vunpack.c.l.b16 %v2352
    %v2424 = vunpack.c.l.b16 %v2353
    %v2425 = vunpack.c.l.b16 %v2354
    %v2426 = vunpack.c.l.b16 %v2355
    %v2427 = vunpack.c.l.b16 %v2356
    %v2428 = vunpack.c.l.b16 %v2357
    %v2429 = vunpack.c.l.b16 %v2358
    %v2430 = vunpack.c.l.b16 %v2359
    %v2431 = vunpack.c.l.b16 %v2360
    %v2432 = vunpack.c.l.b16 %v2361
    %v2433 = vunpack.c.l.b16 %v2362
    %v2434 = vpack.c.b16 %v2403, %v2402
    %v2435 = vpack.c.b16 %v2405, %v2404
    %v2436 = vpack.c.b16 %v2407, %v2406
    %v2437 = vpack.c.b16 %v2409, %v2408
    %v2438 = vpack.c.b16 %v2411, %v2410
    %v2439 = vpack.c.b16 %v2413, %v2412
    %v2440 = vpack.c.b16 %v2415, %v2414
    %v2441 = vpack.c.b16 %v2417, %v2416
    %v2442 = vpack.c.b16 %v2419, %v2418
    %v2443 = vpack.c.b16 %v2421, %v2420
    %v2444 = vpack.c.b16 %v2423, %v2422
    %v2445 = vpack.c.b16 %v2425, %v2424
    %v2446 = vpack.c.b16 %v2427, %v2426
    %v2447 = vpack.c.b16 %v2429, %v2428
    %v2448 = vpack.c.b16 %v2431, %v2430
    %v2449 = vpack.c.b16 %v2433, %v2432
    %2466 = vmatprep.subr.bf16.mxu0 0
    %2467 = vmatpush1.bf16.msra.mxu0 %v2434
    %2468 = vmatprep.subr.bf16.mxu0 0
    %2469 = vmatpush1.bf16.msra.mxu0 %v2435
    %2470 = vmatprep.subr.bf16.mxu0 0
    %2471 = vmatpush1.bf16.msra.mxu0 %v2436
    %2472 = vmatprep.subr.bf16.mxu0 0
    %2473 = vmatpush1.bf16.msra.mxu0 %v2437
    %2474 = vmatprep.subr.bf16.mxu0 0
    %2475 = vmatpush1.bf16.msra.mxu0 %v2438
    %2476 = vmatprep.subr.bf16.mxu0 0
    %2477 = vmatpush1.bf16.msra.mxu0 %v2439
    %2478 = vmatprep.subr.bf16.mxu0 0
    %2479 = vmatpush1.bf16.msra.mxu0 %v2440
    %2480 = vmatprep.subr.bf16.mxu0 0
    %2481 = vmatpush1.bf16.msra.mxu0 %v2441
    %2482 = vmatprep.subr.bf16.mxu0 0
    %2483 = vmatpush1.bf16.msra.mxu0 %v2442
    %2484 = vmatprep.subr.bf16.mxu0 0
    %2485 = vmatpush1.bf16.msra.mxu0 %v2443
    %2486 = vmatprep.subr.bf16.mxu0 0
    %2487 = vmatpush1.bf16.msra.mxu0 %v2444
    %2488 = vmatprep.subr.bf16.mxu0 0
    %2489 = vmatpush1.bf16.msra.mxu0 %v2445
    %2490 = vmatprep.subr.bf16.mxu0 0
    %2491 = vmatpush1.bf16.msra.mxu0 %v2446
    %2492 = vmatprep.subr.bf16.mxu0 0
    %2493 = vmatpush1.bf16.msra.mxu0 %v2447
    %2494 = vmatprep.subr.bf16.mxu0 0
    %2495 = vmatpush1.bf16.msra.mxu0 %v2448
    %2496 = vmatprep.subr.bf16.mxu0 0
    %2497 = vmatpush1.bf16.msra.mxu0 %v2449
    %2498 = vmatprep.mubr.bf16.mxu0 %v2300
    %2499 = vmatmul.mubr.bf16.gmra.mrb[0].mxu0 %v2299
    %v2500 = vpop.f32.mrb[0].mxu0
    %v2501 = vadd.f32 %v2368, %v2500
    %v2502 = vpop.f32.mrb[0].mxu0
    %v2503 = vpop.f32.mrb[0].mxu0
    %v2504 = vadd.f32 %v2368, %v2503
    %v2505 = vpop.f32.mrb[0].mxu0
    %2506 = vmatprep.mubr.bf16.mxu0 %v2302
    %2507 = vmatmul.mubr.bf16.gmra.mrb[0].mxu0 %v2301
    %v2508 = vpop.f32.mrb[0].mxu0
    %v2509 = vadd.f32 %v2368, %v2508
    %v2510 = vpop.f32.mrb[0].mxu0
    %v2511 = vpop.f32.mrb[0].mxu0
    %v2512 = vadd.f32 %v2368, %v2511
    %v2513 = vpop.f32.mrb[0].mxu0
    %2514 = vmatprep.mubr.bf16.mxu0 %v2304
    %2515 = vmatmul.mubr.bf16.gmra.mrb[0].mxu0 %v2303
    %v2516 = vpop.f32.mrb[0].mxu0
    %v2517 = vadd.f32 %v2368, %v2516
    %v2518 = vpop.f32.mrb[0].mxu0
    %v2519 = vpop.f32.mrb[0].mxu0
    %v2520 = vadd.f32 %v2368, %v2519
    %v2521 = vpop.f32.mrb[0].mxu0
    %2522 = vmatprep.mubr.bf16.mxu0 %v2306
    %2523 = vmatmul.mubr.bf16.gmra.mrb[0].mxu0 %v2305
    %v2524 = vpop.f32.mrb[0].mxu0
    %v2525 = vadd.f32 %v2368, %v2524
    %v2526 = vpop.f32.mrb[0].mxu0
    %v2527 = vpop.f32.mrb[0].mxu0
    %v2528 = vadd.f32 %v2368, %v2527
    %v2529 = vpop.f32.mrb[0].mxu0
    %2530 = vmatprep.mubr.bf16.mxu0 %v2308
    %2531 = vmatmul.mubr.bf16.gmra.mrb[0].mxu0 %v2307
    %v2532 = vpop.f32.mrb[0].mxu0
    %v2533 = vadd.f32 %v2368, %v2532
    %v2534 = vpop.f32.mrb[0].mxu0
    %v2535 = vpop.f32.mrb[0].mxu0
    %v2536 = vadd.f32 %v2368, %v2535
    %v2537 = vpop.f32.mrb[0].mxu0
    %2538 = vmatprep.mubr.bf16.mxu0 %v2310
    %2539 = vmatmul.mubr.bf16.gmra.mrb[0].mxu0 %v2309
    %v2540 = vpop.f32.mrb[0].mxu0
    %v2541 = vadd.f32 %v2368, %v2540
    %v2542 = vpop.f32.mrb[0].mxu0
    %v2543 = vpop.f32.mrb[0].mxu0
    %v2544 = vadd.f32 %v2368, %v2543
    %v2545 = vpop.f32.mrb[0].mxu0
    %2546 = vmatprep.mubr.bf16.mxu0 %v2312
    %2547 = vmatmul.mubr.bf16.gmra.mrb[0].mxu0 %v2311
    %v2548 = vpop.f32.mrb[0].mxu0
    %v2549 = vadd.f32 %v2368, %v2548
    %v2550 = vpop.f32.mrb[0].mxu0
    %v2551 = vpop.f32.mrb[0].mxu0
    %v2552 = vadd.f32 %v2368, %v2551
    %v2553 = vpop.f32.mrb[0].mxu0
    %2554 = vmatprep.mubr.bf16.mxu0 %v2314
    %2555 = vmatmul.mubr.bf16.gmra.mrb[0].mxu0 %v2313
    %v2556 = vpop.f32.mrb[0].mxu0
    %v2557 = vadd.f32 %v2368, %v2556
    %v2558 = vpop.f32.mrb[0].mxu0
    %v2559 = vpop.f32.mrb[0].mxu0
    %v2560 = vadd.f32 %v2368, %v2559
    %v2561 = vpop.f32.mrb[0].mxu0
    %2562 = vmatprep.mubr.bf16.mxu0 %v2316
    %2563 = vmatmul.mubr.bf16.gmra.mrb[0].mxu0 %v2315
    %v2564 = vpop.f32.mrb[0].mxu0
    %v2565 = vadd.f32 %v2368, %v2564
    %v2566 = vpop.f32.mrb[0].mxu0
    %v2567 = vpop.f32.mrb[0].mxu0
    %v2568 = vadd.f32 %v2368, %v2567
    %v2569 = vpop.f32.mrb[0].mxu0
    %2570 = vmatprep.mubr.bf16.mxu0 %v2318
    %2571 = vmatmul.mubr.bf16.gmra.mrb[0].mxu0 %v2317
    %v2572 = vpop.f32.mrb[0].mxu0
    %v2573 = vadd.f32 %v2368, %v2572
    %v2574 = vpop.f32.mrb[0].mxu0
    %v2575 = vpop.f32.mrb[0].mxu0
    %v2576 = vadd.f32 %v2368, %v2575
    %v2577 = vpop.f32.mrb[0].mxu0
    %2578 = vmatprep.mubr.bf16.mxu0 %v2320
    %2579 = vmatmul.mubr.bf16.gmra.mrb[0].mxu0 %v2319
    %v2580 = vpop.f32.mrb[0].mxu0
    %v2581 = vadd.f32 %v2368, %v2580
    %v2582 = vpop.f32.mrb[0].mxu0
    %v2583 = vpop.f32.mrb[0].mxu0
    %v2584 = vadd.f32 %v2368, %v2583
    %v2585 = vpop.f32.mrb[0].mxu0
    %2586 = vmatprep.mubr.bf16.mxu0 %v2322
    %2587 = vmatmul.mubr.bf16.gmra.mrb[0].mxu0 %v2321
    %v2588 = vpop.f32.mrb[0].mxu0
    %v2589 = vadd.f32 %v2368, %v2588
    %v2590 = vpop.f32.mrb[0].mxu0
    %v2591 = vpop.f32.mrb[0].mxu0
    %v2592 = vadd.f32 %v2368, %v2591
    %v2593 = vpop.f32.mrb[0].mxu0
    %2594 = vmatprep.mubr.bf16.mxu0 %v2324
    %2595 = vmatmul.mubr.bf16.gmra.mrb[0].mxu0 %v2323
    %v2596 = vpop.f32.mrb[0].mxu0
    %v2597 = vadd.f32 %v2368, %v2596
    %v2598 = vpop.f32.mrb[0].mxu0
    %v2599 = vpop.f32.mrb[0].mxu0
    %v2600 = vadd.f32 %v2368, %v2599
    %v2601 = vpop.f32.mrb[0].mxu0
    %2602 = vmatprep.mubr.bf16.mxu0 %v2326
    %2603 = vmatmul.mubr.bf16.gmra.mrb[0].mxu0 %v2325
    %v2604 = vpop.f32.mrb[0].mxu0
    %v2605 = vadd.f32 %v2368, %v2604
    %v2606 = vpop.f32.mrb[0].mxu0
    %v2607 = vpop.f32.mrb[0].mxu0
    %v2608 = vadd.f32 %v2368, %v2607
    %v2609 = vpop.f32.mrb[0].mxu0
    %2610 = vmatprep.mubr.bf16.mxu0 %v2328
    %2611 = vmatmul.mubr.bf16.gmra.mrb[0].mxu0 %v2327
    %v2612 = vpop.f32.mrb[0].mxu0
    %v2613 = vadd.f32 %v2368, %v2612
    %v2614 = vpop.f32.mrb[0].mxu0
    %v2615 = vpop.f32.mrb[0].mxu0
    %v2616 = vadd.f32 %v2368, %v2615
    %v2617 = vpop.f32.mrb[0].mxu0
    %2618 = vmatprep.mubr.bf16.mxu0 %v2330
    %2619 = vmatmul.mubr.bf16.gmra.mrb[0].mxu0 %v2329
    %v2620 = vpop.f32.mrb[0].mxu0
    %v2621 = vadd.f32 %v2368, %v2620
    %v2622 = vpop.f32.mrb[0].mxu0
    %v2623 = vpop.f32.mrb[0].mxu0
    %v2624 = vadd.f32 %v2368, %v2623
    %v2625 = vpop.f32.mrb[0].mxu0
    %2626 = vdwg.mxu0
    %v2627 = vpack.c.bf16 %v2504, %v2501
    %v2628 = vpack.c.bf16 %v2512, %v2509
    %v2629 = vpack.c.bf16 %v2520, %v2517
    %v2630 = vpack.c.bf16 %v2528, %v2525
    %v2631 = vpack.c.bf16 %v2536, %v2533
    %v2632 = vpack.c.bf16 %v2544, %v2541
    %v2633 = vpack.c.bf16 %v2552, %v2549
    %v2634 = vpack.c.bf16 %v2560, %v2557
    %v2635 = vpack.c.bf16 %v2568, %v2565
    %v2636 = vpack.c.bf16 %v2576, %v2573
    %v2637 = vpack.c.bf16 %v2584, %v2581
    %v2638 = vpack.c.bf16 %v2592, %v2589
    %v2639 = vpack.c.bf16 %v2600, %v2597
    %v2640 = vpack.c.bf16 %v2608, %v2605
    %v2641 = vpack.c.bf16 %v2616, %v2613
    %v2642 = vpack.c.bf16 %v2624, %v2621
    %v2643 = vld [vmem:[%s5] sm:$0xff]
    %v2644 = vld [vmem:[%s5 + $0x8] sm:$0xff]
    %v2645 = vld [vmem:[%s5 + $0x10] sm:$0x33]
    %v2646 = vld [vmem:[%s6] sm:$0x3]
    %v2648 = vlaneseq
    %v2649 = vshrl.u32 %v2648, 7
    %v2650 = vsub.s32 0, %v2649
    %v2651 = vrot.slane %v2646, %v2650
    %v2652 = vlaneseq
    %v2653 = vshrl.u32 %v2652, 7
    %v2654 = vsub.s32 1, %v2653
    %v2655 = vrot.slane %v2646, %v2654
    %v2661 = vunpack.c.l.b16 %v2643
    %v2662 = vunpack.c.h.b16 %v2643
    %v2663 = vunpack.c.l.b16 %v2644
    %v2664 = vunpack.c.h.b16 %v2644
    %v2665 = vunpack.c.l.b16 %v2645
    %v2666 = vunpack.c.h.b16 %v2645
    %v2667 = vpack.c.b16 %v2663, %v2661
    %v2668 = vpack.c.b16 %v2664, %v2662
    %v2669 = vpack.c.b16 %v2665, %v2665
    %v2670 = vpack.c.b16 %v2666, %v2666
    %vm2673 = vcmask 162816
    %v2675 = vsel %vm2673, %v2627, 0
    %v2678 = vsel %vm2673, %v2628, 0
    %v2681 = vsel %vm2673, %v2629, 0
    %v2684 = vsel %vm2673, %v2630, 0
    %v2687 = vsel %vm2673, %v2631, 0
    %v2690 = vsel %vm2673, %v2632, 0
    %v2693 = vsel %vm2673, %v2633, 0
    %v2696 = vsel %vm2673, %v2634, 0
    %v2699 = vsel %vm2673, %v2635, 0
    %v2702 = vsel %vm2673, %v2636, 0
    %v2705 = vsel %vm2673, %v2637, 0
    %v2708 = vsel %vm2673, %v2638, 0
    %v2711 = vsel %vm2673, %v2639, 0
    %v2714 = vsel %vm2673, %v2640, 0
    %v2717 = vsel %vm2673, %v2641, 0
    %v2720 = vsel %vm2673, %v2642, 0
    %vm2722 = vcmask 1041408
    %v2724 = vsel %vm2722, %v2669, 0
    %v2727 = vsel %vm2722, %v2670, 0
    %2729 = vmatprep.subr.bf16.mxu0 %v2668
    %2730 = vmatpush1.bf16.msra.mxu0 %v2667
    %2731 = vmatprep.subr.bf16.mxu0 %v2727
    %2732 = vmatpush1.bf16.msra.mxu0 %v2724
    %2733 = vmatprep.subr.bf16.mxu0 0
    %2734 = vmatpush1.bf16.msra.mxu0 0
    %2735 = vmatprep.subr.bf16.mxu0 0
    %2736 = vmatpush1.bf16.msra.mxu0 0
    %2737 = vmatprep.subr.bf16.mxu0 0
    %2738 = vmatpush1.bf16.msra.mxu0 0
    %2739 = vmatprep.subr.bf16.mxu0 0
    %2740 = vmatpush1.bf16.msra.mxu0 0
    %2741 = vmatprep.subr.bf16.mxu0 0
    %2742 = vmatpush1.bf16.msra.mxu0 0
    %2743 = vmatprep.subr.bf16.mxu0 0
    %2744 = vmatpush1.bf16.msra.mxu0 0
    %2745 = vmatprep.subr.bf16.mxu0 0
    %2746 = vmatpush1.bf16.msra.mxu0 0
    %2747 = vmatprep.subr.bf16.mxu0 0
    %2748 = vmatpush1.bf16.msra.mxu0 0
    %2749 = vmatprep.subr.bf16.mxu0 0
    %2750 = vmatpush1.bf16.msra.mxu0 0
    %2751 = vmatprep.subr.bf16.mxu0 0
    %2752 = vmatpush1.bf16.msra.mxu0 0
    %2753 = vmatprep.subr.bf16.mxu0 0
    %2754 = vmatpush1.bf16.msra.mxu0 0
    %2755 = vmatprep.subr.bf16.mxu0 0
    %2756 = vmatpush1.bf16.msra.mxu0 0
    %2757 = vmatprep.subr.bf16.mxu0 0
    %2758 = vmatpush1.bf16.msra.mxu0 0
    %2759 = vmatprep.subr.bf16.mxu0 0
    %2760 = vmatpush1.bf16.msra.mxu0 0
    %2761 = vmatprep.mubr.bf16.mxu0 0
    %2762 = vmatmul.mubr.bf16.gmra.mrb[0].mxu0 %v2675
    %v2763 = vpop.f32.mrb[0].mxu0
    %v2764 = vadd.f32 %v2651, %v2763
    %v2765 = vpop.f32.mrb[0].mxu0
    %v2766 = vadd.f32 %v2655, %v2765
    %v2767 = vpop.f32.mrb[0].mxu0
    %v2768 = vadd.f32 %v2651, %v2767
    %v2769 = vpop.f32.mrb[0].mxu0
    %v2770 = vadd.f32 %v2655, %v2769
    %2771 = vmatprep.mubr.bf16.mxu0 0
    %2772 = vmatmul.mubr.bf16.gmra.mrb[0].mxu0 %v2678
    %v2773 = vpop.f32.mrb[0].mxu0
    %v2774 = vadd.f32 %v2651, %v2773
    %v2775 = vpop.f32.mrb[0].mxu0
    %v2776 = vadd.f32 %v2655, %v2775
    %v2777 = vpop.f32.mrb[0].mxu0
    %v2778 = vadd.f32 %v2651, %v2777
    %v2779 = vpop.f32.mrb[0].mxu0
    %v2780 = vadd.f32 %v2655, %v2779
    %2781 = vmatprep.mubr.bf16.mxu0 0
    %2782 = vmatmul.mubr.bf16.gmra.mrb[0].mxu0 %v2681
    %v2783 = vpop.f32.mrb[0].mxu0
    %v2784 = vadd.f32 %v2651, %v2783
    %v2785 = vpop.f32.mrb[0].mxu0
    %v2786 = vadd.f32 %v2655, %v2785
    %v2787 = vpop.f32.mrb[0].mxu0
    %v2788 = vadd.f32 %v2651, %v2787
    %v2789 = vpop.f32.mrb[0].mxu0
    %v2790 = vadd.f32 %v2655, %v2789
    %2791 = vmatprep.mubr.bf16.mxu0 0
    %2792 = vmatmul.mubr.bf16.gmra.mrb[0].mxu0 %v2684
    %v2793 = vpop.f32.mrb[0].mxu0
    %v2794 = vadd.f32 %v2651, %v2793
    %v2795 = vpop.f32.mrb[0].mxu0
    %v2796 = vadd.f32 %v2655, %v2795
    %v2797 = vpop.f32.mrb[0].mxu0
    %v2798 = vadd.f32 %v2651, %v2797
    %v2799 = vpop.f32.mrb[0].mxu0
    %v2800 = vadd.f32 %v2655, %v2799
    %2801 = vmatprep.mubr.bf16.mxu0 0
    %2802 = vmatmul.mubr.bf16.gmra.mrb[0].mxu0 %v2687
    %v2803 = vpop.f32.mrb[0].mxu0
    %v2804 = vadd.f32 %v2651, %v2803
    %v2805 = vpop.f32.mrb[0].mxu0
    %v2806 = vadd.f32 %v2655, %v2805
    %v2807 = vpop.f32.mrb[0].mxu0
    %v2808 = vadd.f32 %v2651, %v2807
    %v2809 = vpop.f32.mrb[0].mxu0
    %v2810 = vadd.f32 %v2655, %v2809
    %2811 = vmatprep.mubr.bf16.mxu0 0
    %2812 = vmatmul.mubr.bf16.gmra.mrb[0].mxu0 %v2690
    %v2813 = vpop.f32.mrb[0].mxu0
    %v2814 = vadd.f32 %v2651, %v2813
    %v2815 = vpop.f32.mrb[0].mxu0
    %v2816 = vadd.f32 %v2655, %v2815
    %v2817 = vpop.f32.mrb[0].mxu0
    %v2818 = vadd.f32 %v2651, %v2817
    %v2819 = vpop.f32.mrb[0].mxu0
    %v2820 = vadd.f32 %v2655, %v2819
    %2821 = vmatprep.mubr.bf16.mxu0 0
    %2822 = vmatmul.mubr.bf16.gmra.mrb[0].mxu0 %v2693
    %v2823 = vpop.f32.mrb[0].mxu0
    %v2824 = vadd.f32 %v2651, %v2823
    %v2825 = vpop.f32.mrb[0].mxu0
    %v2826 = vadd.f32 %v2655, %v2825
    %v2827 = vpop.f32.mrb[0].mxu0
    %v2828 = vadd.f32 %v2651, %v2827
    %v2829 = vpop.f32.mrb[0].mxu0
    %v2830 = vadd.f32 %v2655, %v2829
    %2831 = vmatprep.mubr.bf16.mxu0 0
    %2832 = vmatmul.mubr.bf16.gmra.mrb[0].mxu0 %v2696
    %v2833 = vpop.f32.mrb[0].mxu0
    %v2834 = vadd.f32 %v2651, %v2833
    %v2835 = vpop.f32.mrb[0].mxu0
    %v2836 = vadd.f32 %v2655, %v2835
    %v2837 = vpop.f32.mrb[0].mxu0
    %v2838 = vadd.f32 %v2651, %v2837
    %v2839 = vpop.f32.mrb[0].mxu0
    %v2840 = vadd.f32 %v2655, %v2839
    %2841 = vmatprep.mubr.bf16.mxu0 0
    %2842 = vmatmul.mubr.bf16.gmra.mrb[0].mxu0 %v2699
    %v2843 = vpop.f32.mrb[0].mxu0
    %v2844 = vadd.f32 %v2651, %v2843
    %v2845 = vpop.f32.mrb[0].mxu0
    %v2846 = vadd.f32 %v2655, %v2845
    %v2847 = vpop.f32.mrb[0].mxu0
    %v2848 = vadd.f32 %v2651, %v2847
    %v2849 = vpop.f32.mrb[0].mxu0
    %v2850 = vadd.f32 %v2655, %v2849
    %2851 = vmatprep.mubr.bf16.mxu0 0
    %2852 = vmatmul.mubr.bf16.gmra.mrb[0].mxu0 %v2702
    %v2853 = vpop.f32.mrb[0].mxu0
    %v2854 = vadd.f32 %v2651, %v2853
    %v2855 = vpop.f32.mrb[0].mxu0
    %v2856 = vadd.f32 %v2655, %v2855
    %v2857 = vpop.f32.mrb[0].mxu0
    %v2858 = vadd.f32 %v2651, %v2857
    %v2859 = vpop.f32.mrb[0].mxu0
    %v2860 = vadd.f32 %v2655, %v2859
    %2861 = vmatprep.mubr.bf16.mxu0 0
    %2862 = vmatmul.mubr.bf16.gmra.mrb[0].mxu0 %v2705
    %v2863 = vpop.f32.mrb[0].mxu0
    %v2864 = vadd.f32 %v2651, %v2863
    %v2865 = vpop.f32.mrb[0].mxu0
    %v2866 = vadd.f32 %v2655, %v2865
    %v2867 = vpop.f32.mrb[0].mxu0
    %v2868 = vadd.f32 %v2651, %v2867
    %v2869 = vpop.f32.mrb[0].mxu0
    %v2870 = vadd.f32 %v2655, %v2869
    %2871 = vmatprep.mubr.bf16.mxu0 0
    %2872 = vmatmul.mubr.bf16.gmra.mrb[0].mxu0 %v2708
    %v2873 = vpop.f32.mrb[0].mxu0
    %v2874 = vadd.f32 %v2651, %v2873
    %v2875 = vpop.f32.mrb[0].mxu0
    %v2876 = vadd.f32 %v2655, %v2875
    %v2877 = vpop.f32.mrb[0].mxu0
    %v2878 = vadd.f32 %v2651, %v2877
    %v2879 = vpop.f32.mrb[0].mxu0
    %v2880 = vadd.f32 %v2655, %v2879
    %2881 = vmatprep.mubr.bf16.mxu0 0
    %2882 = vmatmul.mubr.bf16.gmra.mrb[0].mxu0 %v2711
    %v2883 = vpop.f32.mrb[0].mxu0
    %v2884 = vadd.f32 %v2651, %v2883
    %v2885 = vpop.f32.mrb[0].mxu0
    %v2886 = vadd.f32 %v2655, %v2885
    %v2887 = vpop.f32.mrb[0].mxu0
    %v2888 = vadd.f32 %v2651, %v2887
    %v2889 = vpop.f32.mrb[0].mxu0
    %v2890 = vadd.f32 %v2655, %v2889
    %2891 = vmatprep.mubr.bf16.mxu0 0
    %2892 = vmatmul.mubr.bf16.gmra.mrb[0].mxu0 %v2714
    %v2893 = vpop.f32.mrb[0].mxu0
    %v2894 = vadd.f32 %v2651, %v2893
    %v2895 = vpop.f32.mrb[0].mxu0
    %v2896 = vadd.f32 %v2655, %v2895
    %v2897 = vpop.f32.mrb[0].mxu0
    %v2898 = vadd.f32 %v2651, %v2897
    %v2899 = vpop.f32.mrb[0].mxu0
    %v2900 = vadd.f32 %v2655, %v2899
    %2901 = vmatprep.mubr.bf16.mxu0 0
    %2902 = vmatmul.mubr.bf16.gmra.mrb[0].mxu0 %v2717
    %v2903 = vpop.f32.mrb[0].mxu0
    %v2904 = vadd.f32 %v2651, %v2903
    %v2905 = vpop.f32.mrb[0].mxu0
    %v2906 = vadd.f32 %v2655, %v2905
    %v2907 = vpop.f32.mrb[0].mxu0
    %v2908 = vadd.f32 %v2651, %v2907
    %v2909 = vpop.f32.mrb[0].mxu0
    %v2910 = vadd.f32 %v2655, %v2909
    %2911 = vmatprep.mubr.bf16.mxu0 0
    %2912 = vmatmul.mubr.bf16.gmra.mrb[0].mxu0 %v2720
    %v2913 = vpop.f32.mrb[0].mxu0
    %v2914 = vadd.f32 %v2651, %v2913
    %v2915 = vpop.f32.mrb[0].mxu0
    %v2916 = vadd.f32 %v2655, %v2915
    %v2917 = vpop.f32.mrb[0].mxu0
    %v2918 = vadd.f32 %v2651, %v2917
    %v2919 = vpop.f32.mrb[0].mxu0
    %v2920 = vadd.f32 %v2655, %v2919
    %2921 = vdwg.mxu0
    %v2922 = vmax.f32 %v2764, 0.0
    %v2923 = vmax.f32 %v2766, 0.0
    %v2924 = vmax.f32 %v2768, 0.0
    %v2925 = vmax.f32 %v2770, 0.0
    %v2926 = vmax.f32 %v2774, 0.0
    %v2927 = vmax.f32 %v2776, 0.0
    %v2928 = vmax.f32 %v2778, 0.0
    %v2929 = vmax.f32 %v2780, 0.0
    %v2930 = vmax.f32 %v2784, 0.0
    %v2931 = vmax.f32 %v2786, 0.0
    %v2932 = vmax.f32 %v2788, 0.0
    %v2933 = vmax.f32 %v2790, 0.0
    %v2934 = vmax.f32 %v2794, 0.0
    %v2935 = vmax.f32 %v2796, 0.0
    %v2936 = vmax.f32 %v2798, 0.0
    %v2937 = vmax.f32 %v2800, 0.0
    %v2938 = vmax.f32 %v2804, 0.0
    %v2939 = vmax.f32 %v2806, 0.0
    %v2940 = vmax.f32 %v2808, 0.0
    %v2941 = vmax.f32 %v2810, 0.0
    %v2942 = vmax.f32 %v2814, 0.0
    %v2943 = vmax.f32 %v2816, 0.0
    %v2944 = vmax.f32 %v2818, 0.0
    %v2945 = vmax.f32 %v2820, 0.0
    %v2946 = vmax.f32 %v2824, 0.0
    %v2947 = vmax.f32 %v2826, 0.0
    %v2948 = vmax.f32 %v2828, 0.0
    %v2949 = vmax.f32 %v2830, 0.0
    %v2950 = vmax.f32 %v2834, 0.0
    %v2951 = vmax.f32 %v2836, 0.0
    %v2952 = vmax.f32 %v2838, 0.0
    %v2953 = vmax.f32 %v2840, 0.0
    %v2954 = vmax.f32 %v2844, 0.0
    %v2955 = vmax.f32 %v2846, 0.0
    %v2956 = vmax.f32 %v2848, 0.0
    %v2957 = vmax.f32 %v2850, 0.0
    %v2958 = vmax.f32 %v2854, 0.0
    %v2959 = vmax.f32 %v2856, 0.0
    %v2960 = vmax.f32 %v2858, 0.0
    %v2961 = vmax.f32 %v2860, 0.0
    %v2962 = vmax.f32 %v2864, 0.0
    %v2963 = vmax.f32 %v2866, 0.0
    %v2964 = vmax.f32 %v2868, 0.0
    %v2965 = vmax.f32 %v2870, 0.0
    %v2966 = vmax.f32 %v2874, 0.0
    %v2967 = vmax.f32 %v2876, 0.0
    %v2968 = vmax.f32 %v2878, 0.0
    %v2969 = vmax.f32 %v2880, 0.0
    %v2970 = vmax.f32 %v2884, 0.0
    %v2971 = vmax.f32 %v2886, 0.0
    %v2972 = vmax.f32 %v2888, 0.0
    %v2973 = vmax.f32 %v2890, 0.0
    %v2974 = vmax.f32 %v2894, 0.0
    %v2975 = vmax.f32 %v2896, 0.0
    %v2976 = vmax.f32 %v2898, 0.0
    %v2977 = vmax.f32 %v2900, 0.0
    %v2978 = vmax.f32 %v2904, 0.0
    %v2979 = vmax.f32 %v2906, 0.0
    %v2980 = vmax.f32 %v2908, 0.0
    %v2981 = vmax.f32 %v2910, 0.0
    %v2982 = vmax.f32 %v2914, 0.0
    %v2983 = vmax.f32 %v2916, 0.0
    %v2984 = vmax.f32 %v2918, 0.0
    %v2985 = vmax.f32 %v2920, 0.0
    %v2986 = vpack.c.bf16 %v2924, %v2922
    %v2987 = vpack.c.bf16 %v2925, %v2923
    %v2988 = vpack.c.bf16 %v2928, %v2926
    %v2989 = vpack.c.bf16 %v2929, %v2927
    %v2990 = vpack.c.bf16 %v2932, %v2930
    %v2991 = vpack.c.bf16 %v2933, %v2931
    %v2992 = vpack.c.bf16 %v2936, %v2934
    %v2993 = vpack.c.bf16 %v2937, %v2935
    %v2994 = vpack.c.bf16 %v2940, %v2938
    %v2995 = vpack.c.bf16 %v2941, %v2939
    %v2996 = vpack.c.bf16 %v2944, %v2942
    %v2997 = vpack.c.bf16 %v2945, %v2943
    %v2998 = vpack.c.bf16 %v2948, %v2946
    %v2999 = vpack.c.bf16 %v2949, %v2947
    %v3000 = vpack.c.bf16 %v2952, %v2950
    %v3001 = vpack.c.bf16 %v2953, %v2951
    %v3002 = vpack.c.bf16 %v2956, %v2954
    %v3003 = vpack.c.bf16 %v2957, %v2955
    %v3004 = vpack.c.bf16 %v2960, %v2958
    %v3005 = vpack.c.bf16 %v2961, %v2959
    %v3006 = vpack.c.bf16 %v2964, %v2962
    %v3007 = vpack.c.bf16 %v2965, %v2963
    %v3008 = vpack.c.bf16 %v2968, %v2966
    %v3009 = vpack.c.bf16 %v2969, %v2967
    %v3010 = vpack.c.bf16 %v2972, %v2970
    %v3011 = vpack.c.bf16 %v2973, %v2971
    %v3012 = vpack.c.bf16 %v2976, %v2974
    %v3013 = vpack.c.bf16 %v2977, %v2975
    %v3014 = vpack.c.bf16 %v2980, %v2978
    %v3015 = vpack.c.bf16 %v2981, %v2979
    %v3016 = vpack.c.bf16 %v2984, %v2982
    %v3017 = vpack.c.bf16 %v2985, %v2983
    %v3018 = vld [vmem:[#allocation7] sm:$0xff]
    %v3019 = vld [vmem:[#allocation7 + $0x8] sm:$0xff]
    %v3020 = vld [vmem:[#allocation7 + $0x10] sm:$0xff]
    %v3021 = vld [vmem:[#allocation7 + $0x18] sm:$0xf]
    %v3022 = vld [vmem:[#allocation7 + $0x1c] sm:$0xff]
    %v3023 = vld [vmem:[#allocation7 + $0x24] sm:$0xff]
    %v3024 = vld [vmem:[#allocation7 + $0x2c] sm:$0xff]
    %v3025 = vld [vmem:[#allocation7 + $0x34] sm:$0xf]
    %v3026 = vld [vmem:[#allocation7 + $0x38] sm:$0xff]
    %v3027 = vld [vmem:[#allocation7 + $0x40] sm:$0xff]
    %v3028 = vld [vmem:[#allocation7 + $0x48] sm:$0xff]
    %v3029 = vld [vmem:[#allocation7 + $0x50] sm:$0xf]
    %v3030 = vld [vmem:[#allocation7 + $0x54] sm:$0xff]
    %v3031 = vld [vmem:[#allocation7 + $0x5c] sm:$0xff]
    %v3032 = vld [vmem:[#allocation7 + $0x64] sm:$0xff]
    %v3033 = vld [vmem:[#allocation7 + $0x6c] sm:$0xf]
    %v3034 = vld [vmem:[#allocation7 + $0x70] sm:$0xff]
    %v3035 = vld [vmem:[#allocation7 + $0x78] sm:$0xff]
    %v3036 = vld [vmem:[#allocation7 + $0x80] sm:$0xff]
    %v3037 = vld [vmem:[#allocation7 + $0x88] sm:$0xf]
    %v3038 = vld [vmem:[#allocation7 + $0x8c] sm:$0xff]
    %v3039 = vld [vmem:[#allocation7 + $0x94] sm:$0xff]
    %v3040 = vld [vmem:[#allocation7 + $0x9c] sm:$0xff]
    %v3041 = vld [vmem:[#allocation7 + $0xa4] sm:$0xf]
    %v3042 = vld [vmem:[#allocation7 + $0xa8] sm:$0xff]
    %v3043 = vld [vmem:[#allocation7 + $0xb0] sm:$0xff]
    %v3044 = vld [vmem:[#allocation7 + $0xb8] sm:$0xff]
    %v3045 = vld [vmem:[#allocation7 + $0xc0] sm:$0xf]
    %v3046 = vld [vmem:[#allocation7 + $0xc4] sm:$0xff]
    %v3047 = vld [vmem:[#allocation7 + $0xcc] sm:$0xff]
    %v3048 = vld [vmem:[#allocation7 + $0xd4] sm:$0xff]
    %v3049 = vld [vmem:[#allocation7 + $0xdc] sm:$0xf]
    %v3050 = vld [vmem:[#allocation7 + $0xe0] sm:$0xff]
    %v3051 = vld [vmem:[#allocation7 + $0xe8] sm:$0xff]
    %v3052 = vld [vmem:[#allocation7 + $0xf0] sm:$0xff]
    %v3053 = vld [vmem:[#allocation7 + $0xf8] sm:$0xf]
    %v3054 = vld [vmem:[#allocation7 + $0xfc] sm:$0xff]
    %v3055 = vld [vmem:[#allocation7 + $0x104] sm:$0xff]
    %v3056 = vld [vmem:[#allocation7 + $0x10c] sm:$0xff]
    %v3057 = vld [vmem:[#allocation7 + $0x114] sm:$0xf]
    %v3058 = vld [vmem:[#allocation7 + $0x118] sm:$0xff]
    %v3059 = vld [vmem:[#allocation7 + $0x120] sm:$0xff]
    %v3060 = vld [vmem:[#allocation7 + $0x128] sm:$0xff]
    %v3061 = vld [vmem:[#allocation7 + $0x130] sm:$0xf]
    %v3062 = vld [vmem:[#allocation7 + $0x134] sm:$0xff]
    %v3063 = vld [vmem:[#allocation7 + $0x13c] sm:$0xff]
    %v3064 = vld [vmem:[#allocation7 + $0x144] sm:$0xff]
    %v3065 = vld [vmem:[#allocation7 + $0x14c] sm:$0xf]
    %v3066 = vld [vmem:[#allocation7 + $0x150] sm:$0xff]
    %v3067 = vld [vmem:[#allocation7 + $0x158] sm:$0xff]
    %v3068 = vld [vmem:[#allocation7 + $0x160] sm:$0xff]
    %v3069 = vld [vmem:[#allocation7 + $0x168] sm:$0xf]
    %v3070 = vld [vmem:[#allocation7 + $0x16c] sm:$0xff]
    %v3071 = vld [vmem:[#allocation7 + $0x174] sm:$0xff]
    %v3072 = vld [vmem:[#allocation7 + $0x17c] sm:$0xff]
    %v3073 = vld [vmem:[#allocation7 + $0x184] sm:$0xf]
    %v3074 = vld [vmem:[#allocation7 + $0x188] sm:$0xff]
    %v3075 = vld [vmem:[#allocation7 + $0x190] sm:$0xff]
    %v3076 = vld [vmem:[#allocation7 + $0x198] sm:$0xff]
    %v3077 = vld [vmem:[#allocation7 + $0x1a0] sm:$0xf]
    %v3078 = vld [vmem:[#allocation7 + $0x1a4] sm:$0xff]
    %v3079 = vld [vmem:[#allocation7 + $0x1ac] sm:$0xff]
    %v3080 = vld [vmem:[#allocation7 + $0x1b4] sm:$0xff]
    %v3081 = vld [vmem:[#allocation7 + $0x1bc] sm:$0xf]
    %v3082 = vld [vmem:[#allocation7 + $0x1c0] sm:$0xff]
    %v3083 = vld [vmem:[#allocation7 + $0x1c8] sm:$0xff]
    %v3084 = vld [vmem:[#allocation7 + $0x1d0] sm:$0xff]
    %v3085 = vld [vmem:[#allocation7 + $0x1d8] sm:$0xf]
    %v3086 = vld [vmem:[#allocation7 + $0x1dc] sm:$0xff]
    %v3087 = vld [vmem:[#allocation7 + $0x1e4] sm:$0xff]
    %v3088 = vld [vmem:[#allocation7 + $0x1ec] sm:$0xff]
    %v3089 = vld [vmem:[#allocation7 + $0x1f4] sm:$0xf]
    %v3090 = vld [vmem:[#allocation7 + $0x1f8] sm:$0xff]
    %v3091 = vld [vmem:[#allocation7 + $0x200] sm:$0xff]
    %v3092 = vld [vmem:[#allocation7 + $0x208] sm:$0xff]
    %v3093 = vld [vmem:[#allocation7 + $0x210] sm:$0xf]
    %v3094 = vld [vmem:[#allocation7 + $0x214] sm:$0xff]
    %v3095 = vld [vmem:[#allocation7 + $0x21c] sm:$0xff]
    %v3096 = vld [vmem:[#allocation7 + $0x224] sm:$0xff]
    %v3097 = vld [vmem:[#allocation7 + $0x22c] sm:$0xf]
    %v3098 = vld [vmem:[#allocation7 + $0x230] sm:$0xff]
    %v3099 = vld [vmem:[#allocation7 + $0x238] sm:$0xff]
    %v3100 = vld [vmem:[#allocation7 + $0x240] sm:$0xff]
    %v3101 = vld [vmem:[#allocation7 + $0x248] sm:$0xf]
    %v3102 = vld [vmem:[#allocation7 + $0x24c] sm:$0xff]
    %v3103 = vld [vmem:[#allocation7 + $0x254] sm:$0xff]
    %v3104 = vld [vmem:[#allocation7 + $0x25c] sm:$0xff]
    %v3105 = vld [vmem:[#allocation7 + $0x264] sm:$0xf]
    %v3106 = vld [vmem:[#allocation7 + $0x268] sm:$0xff]
    %v3107 = vld [vmem:[#allocation7 + $0x270] sm:$0xff]
    %v3108 = vld [vmem:[#allocation7 + $0x278] sm:$0xff]
    %v3109 = vld [vmem:[#allocation7 + $0x280] sm:$0xf]
    %v3110 = vld [vmem:[#allocation7 + $0x284] sm:$0xff]
    %v3111 = vld [vmem:[#allocation7 + $0x28c] sm:$0xff]
    %v3112 = vld [vmem:[#allocation7 + $0x294] sm:$0xff]
    %v3113 = vld [vmem:[#allocation7 + $0x29c] sm:$0xf]
    %v3114 = vld [vmem:[#allocation7 + $0x2a0] sm:$0xff]
    %v3115 = vld [vmem:[#allocation7 + $0x2a8] sm:$0xff]
    %v3116 = vld [vmem:[#allocation7 + $0x2b0] sm:$0xff]
    %v3117 = vld [vmem:[#allocation7 + $0x2b8] sm:$0xf]
    %v3118 = vld [vmem:[#allocation7 + $0x2bc] sm:$0xff]
    %v3119 = vld [vmem:[#allocation7 + $0x2c4] sm:$0xff]
    %v3120 = vld [vmem:[#allocation7 + $0x2cc] sm:$0xff]
    %v3121 = vld [vmem:[#allocation7 + $0x2d4] sm:$0xf]
    %v3122 = vld [vmem:[#allocation7 + $0x2d8] sm:$0xff]
    %v3123 = vld [vmem:[#allocation7 + $0x2e0] sm:$0xff]
    %v3124 = vld [vmem:[#allocation7 + $0x2e8] sm:$0xff]
    %v3125 = vld [vmem:[#allocation7 + $0x2f0] sm:$0xf]
    %v3126 = vld [vmem:[#allocation7 + $0x2f4] sm:$0xff]
    %v3127 = vld [vmem:[#allocation7 + $0x2fc] sm:$0xff]
    %v3128 = vld [vmem:[#allocation7 + $0x304] sm:$0xff]
    %v3129 = vld [vmem:[#allocation7 + $0x30c] sm:$0xf]
    %v3130 = vld [vmem:[#allocation7 + $0x310] sm:$0xff]
    %v3131 = vld [vmem:[#allocation7 + $0x318] sm:$0xff]
    %v3132 = vld [vmem:[#allocation7 + $0x320] sm:$0xff]
    %v3133 = vld [vmem:[#allocation7 + $0x328] sm:$0xf]
    %v3134 = vld [vmem:[#allocation7 + $0x32c] sm:$0xff]
    %v3135 = vld [vmem:[#allocation7 + $0x334] sm:$0xff]
    %v3136 = vld [vmem:[#allocation7 + $0x33c] sm:$0xff]
    %v3137 = vld [vmem:[#allocation7 + $0x344] sm:$0xf]
    %v3138 = vld [vmem:[#allocation7 + $0x348] sm:$0xff]
    %v3139 = vld [vmem:[#allocation7 + $0x350] sm:$0xff]
    %v3140 = vld [vmem:[#allocation7 + $0x358] sm:$0xff]
    %v3141 = vld [vmem:[#allocation7 + $0x360] sm:$0xf]
    %v3142 = vld [vmem:[#allocation7 + $0x364] sm:$0xff]
    %v3143 = vld [vmem:[#allocation7 + $0x36c] sm:$0xff]
    %v3144 = vld [vmem:[#allocation7 + $0x374] sm:$0xff]
    %v3145 = vld [vmem:[#allocation7 + $0x37c] sm:$0xf]
    %v3146 = vld [vmem:[%s8] sm:$0xff]
    %v3148 = vlaneseq
    %v3149 = vshrl.u32 %v3148, 7
    %v3150 = vsub.s32 0, %v3149
    %v3151 = vrot.slane %v3146, %v3150
    %v3152 = vlaneseq
    %v3153 = vshrl.u32 %v3152, 7
    %v3154 = vsub.s32 1, %v3153
    %v3155 = vrot.slane %v3146, %v3154
    %v3156 = vlaneseq
    %v3157 = vshrl.u32 %v3156, 7
    %v3158 = vsub.s32 2, %v3157
    %v3159 = vrot.slane %v3146, %v3158
    %v3160 = vlaneseq
    %v3161 = vshrl.u32 %v3160, 7
    %v3162 = vsub.s32 3, %v3161
    %v3163 = vrot.slane %v3146, %v3162
    %v3164 = vlaneseq
    %v3165 = vshrl.u32 %v3164, 7
    %v3166 = vsub.s32 4, %v3165
    %v3167 = vrot.slane %v3146, %v3166
    %v3168 = vlaneseq
    %v3169 = vshrl.u32 %v3168, 7
    %v3170 = vsub.s32 5, %v3169
    %v3171 = vrot.slane %v3146, %v3170
    %v3172 = vlaneseq
    %v3173 = vshrl.u32 %v3172, 7
    %v3174 = vsub.s32 6, %v3173
    %v3175 = vrot.slane %v3146, %v3174
    %v3311 = vunpack.c.l.b16 %v3018
    %v3312 = vunpack.c.h.b16 %v3018
    %v3313 = vunpack.c.l.b16 %v3019
    %v3314 = vunpack.c.h.b16 %v3019
    %v3315 = vunpack.c.l.b16 %v3020
    %v3316 = vunpack.c.h.b16 %v3020
    %v3317 = vunpack.c.l.b16 %v3021
    %v3318 = vunpack.c.l.b16 %v3022
    %v3319 = vunpack.c.h.b16 %v3022
    %v3320 = vunpack.c.l.b16 %v3023
    %v3321 = vunpack.c.h.b16 %v3023
    %v3322 = vunpack.c.l.b16 %v3024
    %v3323 = vunpack.c.h.b16 %v3024
    %v3324 = vunpack.c.l.b16 %v3025
    %v3325 = vunpack.c.l.b16 %v3026
    %v3326 = vunpack.c.h.b16 %v3026
    %v3327 = vunpack.c.l.b16 %v3027
    %v3328 = vunpack.c.h.b16 %v3027
    %v3329 = vunpack.c.l.b16 %v3028
    %v3330 = vunpack.c.h.b16 %v3028
    %v3331 = vunpack.c.l.b16 %v3029
    %v3332 = vunpack.c.l.b16 %v3030
    %v3333 = vunpack.c.h.b16 %v3030
    %v3334 = vunpack.c.l.b16 %v3031
    %v3335 = vunpack.c.h.b16 %v3031
    %v3336 = vunpack.c.l.b16 %v3032
    %v3337 = vunpack.c.h.b16 %v3032
    %v3338 = vunpack.c.l.b16 %v3033
    %v3339 = vunpack.c.l.b16 %v3034
    %v3340 = vunpack.c.h.b16 %v3034
    %v3341 = vunpack.c.l.b16 %v3035
    %v3342 = vunpack.c.h.b16 %v3035
    %v3343 = vunpack.c.l.b16 %v3036
    %v3344 = vunpack.c.h.b16 %v3036
    %v3345 = vunpack.c.l.b16 %v3037
    %v3346 = vunpack.c.l.b16 %v3038
    %v3347 = vunpack.c.h.b16 %v3038
    %v3348 = vunpack.c.l.b16 %v3039
    %v3349 = vunpack.c.h.b16 %v3039
    %v3350 = vunpack.c.l.b16 %v3040
    %v3351 = vunpack.c.h.b16 %v3040
    %v3352 = vunpack.c.l.b16 %v3041
    %v3353 = vunpack.c.l.b16 %v3042
    %v3354 = vunpack.c.h.b16 %v3042
    %v3355 = vunpack.c.l.b16 %v3043
    %v3356 = vunpack.c.h.b16 %v3043
    %v3357 = vunpack.c.l.b16 %v3044
    %v3358 = vunpack.c.h.b16 %v3044
    %v3359 = vunpack.c.l.b16 %v3045
    %v3360 = vunpack.c.l.b16 %v3046
    %v3361 = vunpack.c.h.b16 %v3046
    %v3362 = vunpack.c.l.b16 %v3047
    %v3363 = vunpack.c.h.b16 %v3047
    %v3364 = vunpack.c.l.b16 %v3048
    %v3365 = vunpack.c.h.b16 %v3048
    %v3366 = vunpack.c.l.b16 %v3049
    %v3367 = vunpack.c.l.b16 %v3050
    %v3368 = vunpack.c.h.b16 %v3050
    %v3369 = vunpack.c.l.b16 %v3051
    %v3370 = vunpack.c.h.b16 %v3051
    %v3371 = vunpack.c.l.b16 %v3052
    %v3372 = vunpack.c.h.b16 %v3052
    %v3373 = vunpack.c.l.b16 %v3053
    %v3374 = vunpack.c.l.b16 %v3054
    %v3375 = vunpack.c.h.b16 %v3054
    %v3376 = vunpack.c.l.b16 %v3055
    %v3377 = vunpack.c.h.b16 %v3055
    %v3378 = vunpack.c.l.b16 %v3056
    %v3379 = vunpack.c.h.b16 %v3056
    %v3380 = vunpack.c.l.b16 %v3057
    %v3381 = vunpack.c.l.b16 %v3058
    %v3382 = vunpack.c.h.b16 %v3058
    %v3383 = vunpack.c.l.b16 %v3059
    %v3384 = vunpack.c.h.b16 %v3059
    %v3385 = vunpack.c.l.b16 %v3060
    %v3386 = vunpack.c.h.b16 %v3060
    %v3387 = vunpack.c.l.b16 %v3061
    %v3388 = vunpack.c.l.b16 %v3062
    %v3389 = vunpack.c.h.b16 %v3062
    %v3390 = vunpack.c.l.b16 %v3063
    %v3391 = vunpack.c.h.b16 %v3063
    %v3392 = vunpack.c.l.b16 %v3064
    %v3393 = vunpack.c.h.b16 %v3064
    %v3394 = vunpack.c.l.b16 %v3065
    %v3395 = vunpack.c.l.b16 %v3066
    %v3396 = vunpack.c.h.b16 %v3066
    %v3397 = vunpack.c.l.b16 %v3067
    %v3398 = vunpack.c.h.b16 %v3067
    %v3399 = vunpack.c.l.b16 %v3068
    %v3400 = vunpack.c.h.b16 %v3068
    %v3401 = vunpack.c.l.b16 %v3069
    %v3402 = vunpack.c.l.b16 %v3070
    %v3403 = vunpack.c.h.b16 %v3070
    %v3404 = vunpack.c.l.b16 %v3071
    %v3405 = vunpack.c.h.b16 %v3071
    %v3406 = vunpack.c.l.b16 %v3072
    %v3407 = vunpack.c.h.b16 %v3072
    %v3408 = vunpack.c.l.b16 %v3073
    %v3409 = vunpack.c.l.b16 %v3074
    %v3410 = vunpack.c.h.b16 %v3074
    %v3411 = vunpack.c.l.b16 %v3075
    %v3412 = vunpack.c.h.b16 %v3075
    %v3413 = vunpack.c.l.b16 %v3076
    %v3414 = vunpack.c.h.b16 %v3076
    %v3415 = vunpack.c.l.b16 %v3077
    %v3416 = vunpack.c.l.b16 %v3078
    %v3417 = vunpack.c.h.b16 %v3078
    %v3418 = vunpack.c.l.b16 %v3079
    %v3419 = vunpack.c.h.b16 %v3079
    %v3420 = vunpack.c.l.b16 %v3080
    %v3421 = vunpack.c.h.b16 %v3080
    %v3422 = vunpack.c.l.b16 %v3081
    %v3423 = vunpack.c.l.b16 %v3082
    %v3424 = vunpack.c.h.b16 %v3082
    %v3425 = vunpack.c.l.b16 %v3083
    %v3426 = vunpack.c.h.b16 %v3083
    %v3427 = vunpack.c.l.b16 %v3084
    %v3428 = vunpack.c.h.b16 %v3084
    %v3429 = vunpack.c.l.b16 %v3085
    %v3430 = vunpack.c.l.b16 %v3086
    %v3431 = vunpack.c.h.b16 %v3086
    %v3432 = vunpack.c.l.b16 %v3087
    %v3433 = vunpack.c.h.b16 %v3087
    %v3434 = vunpack.c.l.b16 %v3088
    %v3435 = vunpack.c.h.b16 %v3088
    %v3436 = vunpack.c.l.b16 %v3089
    %v3437 = vunpack.c.l.b16 %v3090
    %v3438 = vunpack.c.h.b16 %v3090
    %v3439 = vunpack.c.l.b16 %v3091
    %v3440 = vunpack.c.h.b16 %v3091
    %v3441 = vunpack.c.l.b16 %v3092
    %v3442 = vunpack.c.h.b16 %v3092
    %v3443 = vunpack.c.l.b16 %v3093
    %v3444 = vunpack.c.l.b16 %v3094
    %v3445 = vunpack.c.h.b16 %v3094
    %v3446 = vunpack.c.l.b16 %v3095
    %v3447 = vunpack.c.h.b16 %v3095
    %v3448 = vunpack.c.l.b16 %v3096
    %v3449 = vunpack.c.h.b16 %v3096
    %v3450 = vunpack.c.l.b16 %v3097
    %v3451 = vunpack.c.l.b16 %v3098
    %v3452 = vunpack.c.h.b16 %v3098
    %v3453 = vunpack.c.l.b16 %v3099
    %v3454 = vunpack.c.h.b16 %v3099
    %v3455 = vunpack.c.l.b16 %v3100
    %v3456 = vunpack.c.h.b16 %v3100
    %v3457 = vunpack.c.l.b16 %v3101
    %v3458 = vunpack.c.l.b16 %v3102
    %v3459 = vunpack.c.h.b16 %v3102
    %v3460 = vunpack.c.l.b16 %v3103
    %v3461 = vunpack.c.h.b16 %v3103
    %v3462 = vunpack.c.l.b16 %v3104
    %v3463 = vunpack.c.h.b16 %v3104
    %v3464 = vunpack.c.l.b16 %v3105
    %v3465 = vunpack.c.l.b16 %v3106
    %v3466 = vunpack.c.h.b16 %v3106
    %v3467 = vunpack.c.l.b16 %v3107
    %v3468 = vunpack.c.h.b16 %v3107
    %v3469 = vunpack.c.l.b16 %v3108
    %v3470 = vunpack.c.h.b16 %v3108
    %v3471 = vunpack.c.l.b16 %v3109
    %v3472 = vunpack.c.l.b16 %v3110
    %v3473 = vunpack.c.h.b16 %v3110
    %v3474 = vunpack.c.l.b16 %v3111
    %v3475 = vunpack.c.h.b16 %v3111
    %v3476 = vunpack.c.l.b16 %v3112
    %v3477 = vunpack.c.h.b16 %v3112
    %v3478 = vunpack.c.l.b16 %v3113
    %v3479 = vunpack.c.l.b16 %v3114
    %v3480 = vunpack.c.h.b16 %v3114
    %v3481 = vunpack.c.l.b16 %v3115
    %v3482 = vunpack.c.h.b16 %v3115
    %v3483 = vunpack.c.l.b16 %v3116
    %v3484 = vunpack.c.h.b16 %v3116
    %v3485 = vunpack.c.l.b16 %v3117
    %v3486 = vunpack.c.l.b16 %v3118
    %v3487 = vunpack.c.h.b16 %v3118
    %v3488 = vunpack.c.l.b16 %v3119
    %v3489 = vunpack.c.h.b16 %v3119
    %v3490 = vunpack.c.l.b16 %v3120
    %v3491 = vunpack.c.h.b16 %v3120
    %v3492 = vunpack.c.l.b16 %v3121
    %v3493 = vunpack.c.l.b16 %v3122
    %v3494 = vunpack.c.h.b16 %v3122
    %v3495 = vunpack.c.l.b16 %v3123
    %v3496 = vunpack.c.h.b16 %v3123
    %v3497 = vunpack.c.l.b16 %v3124
    %v3498 = vunpack.c.h.b16 %v3124
    %v3499 = vunpack.c.l.b16 %v3125
    %v3500 = vunpack.c.l.b16 %v3126
    %v3501 = vunpack.c.h.b16 %v3126
    %v3502 = vunpack.c.l.b16 %v3127
    %v3503 = vunpack.c.h.b16 %v3127
    %v3504 = vunpack.c.l.b16 %v3128
    %v3505 = vunpack.c.h.b16 %v3128
    %v3506 = vunpack.c.l.b16 %v3129
    %v3507 = vunpack.c.l.b16 %v3130
    %v3508 = vunpack.c.h.b16 %v3130
    %v3509 = vunpack.c.l.b16 %v3131
    %v3510 = vunpack.c.h.b16 %v3131
    %v3511 = vunpack.c.l.b16 %v3132
    %v3512 = vunpack.c.h.b16 %v3132
    %v3513 = vunpack.c.l.b16 %v3133
    %v3514 = vunpack.c.l.b16 %v3134
    %v3515 = vunpack.c.h.b16 %v3134
    %v3516 = vunpack.c.l.b16 %v3135
    %v3517 = vunpack.c.h.b16 %v3135
    %v3518 = vunpack.c.l.b16 %v3136
    %v3519 = vunpack.c.h.b16 %v3136
    %v3520 = vunpack.c.l.b16 %v3137
    %v3521 = vunpack.c.l.b16 %v3138
    %v3522 = vunpack.c.h.b16 %v3138
    %v3523 = vunpack.c.l.b16 %v3139
    %v3524 = vunpack.c.h.b16 %v3139
    %v3525 = vunpack.c.l.b16 %v3140
    %v3526 = vunpack.c.h.b16 %v3140
    %v3527 = vunpack.c.l.b16 %v3141
    %v3528 = vunpack.c.l.b16 %v3142
    %v3529 = vunpack.c.h.b16 %v3142
    %v3530 = vunpack.c.l.b16 %v3143
    %v3531 = vunpack.c.h.b16 %v3143
    %v3532 = vunpack.c.l.b16 %v3144
    %v3533 = vunpack.c.h.b16 %v3144
    %v3534 = vunpack.c.l.b16 %v3145
    %v3535 = vpack.c.b16 %v3318, %v3311
    %v3536 = vpack.c.b16 %v3319, %v3312
    %v3537 = vpack.c.b16 %v3320, %v3313
    %v3538 = vpack.c.b16 %v3321, %v3314
    %v3539 = vpack.c.b16 %v3322, %v3315
    %v3540 = vpack.c.b16 %v3323, %v3316
    %v3541 = vpack.c.b16 %v3324, %v3317
    %v3542 = vpack.c.b16 %v3332, %v3325
    %v3543 = vpack.c.b16 %v3333, %v3326
    %v3544 = vpack.c.b16 %v3334, %v3327
    %v3545 = vpack.c.b16 %v3335, %v3328
    %v3546 = vpack.c.b16 %v3336, %v3329
    %v3547 = vpack.c.b16 %v3337, %v3330
    %v3548 = vpack.c.b16 %v3338, %v3331
    %v3549 = vpack.c.b16 %v3346, %v3339
    %v3550 = vpack.c.b16 %v3347, %v3340
    %v3551 = vpack.c.b16 %v3348, %v3341
    %v3552 = vpack.c.b16 %v3349, %v3342
    %v3553 = vpack.c.b16 %v3350, %v3343
    %v3554 = vpack.c.b16 %v3351, %v3344
    %v3555 = vpack.c.b16 %v3352, %v3345
    %v3556 = vpack.c.b16 %v3360, %v3353
    %v3557 = vpack.c.b16 %v3361, %v3354
    %v3558 = vpack.c.b16 %v3362, %v3355
    %v3559 = vpack.c.b16 %v3363, %v3356
    %v3560 = vpack.c.b16 %v3364, %v3357
    %v3561 = vpack.c.b16 %v3365, %v3358
    %v3562 = vpack.c.b16 %v3366, %v3359
    %v3563 = vpack.c.b16 %v3374, %v3367
    %v3564 = vpack.c.b16 %v3375, %v3368
    %v3565 = vpack.c.b16 %v3376, %v3369
    %v3566 = vpack.c.b16 %v3377, %v3370
    %v3567 = vpack.c.b16 %v3378, %v3371
    %v3568 = vpack.c.b16 %v3379, %v3372
    %v3569 = vpack.c.b16 %v3380, %v3373
    %v3570 = vpack.c.b16 %v3388, %v3381
    %v3571 = vpack.c.b16 %v3389, %v3382
    %v3572 = vpack.c.b16 %v3390, %v3383
    %v3573 = vpack.c.b16 %v3391, %v3384
    %v3574 = vpack.c.b16 %v3392, %v3385
    %v3575 = vpack.c.b16 %v3393, %v3386
    %v3576 = vpack.c.b16 %v3394, %v3387
    %v3577 = vpack.c.b16 %v3402, %v3395
    %v3578 = vpack.c.b16 %v3403, %v3396
    %v3579 = vpack.c.b16 %v3404, %v3397
    %v3580 = vpack.c.b16 %v3405, %v3398
    %v3581 = vpack.c.b16 %v3406, %v3399
    %v3582 = vpack.c.b16 %v3407, %v3400
    %v3583 = vpack.c.b16 %v3408, %v3401
    %v3584 = vpack.c.b16 %v3416, %v3409
    %v3585 = vpack.c.b16 %v3417, %v3410
    %v3586 = vpack.c.b16 %v3418, %v3411
    %v3587 = vpack.c.b16 %v3419, %v3412
    %v3588 = vpack.c.b16 %v3420, %v3413
    %v3589 = vpack.c.b16 %v3421, %v3414
    %v3590 = vpack.c.b16 %v3422, %v3415
    %v3591 = vpack.c.b16 %v3430, %v3423
    %v3592 = vpack.c.b16 %v3431, %v3424
    %v3593 = vpack.c.b16 %v3432, %v3425
    %v3594 = vpack.c.b16 %v3433, %v3426
    %v3595 = vpack.c.b16 %v3434, %v3427
    %v3596 = vpack.c.b16 %v3435, %v3428
    %v3597 = vpack.c.b16 %v3436, %v3429
    %v3598 = vpack.c.b16 %v3444, %v3437
    %v3599 = vpack.c.b16 %v3445, %v3438
    %v3600 = vpack.c.b16 %v3446, %v3439
    %v3601 = vpack.c.b16 %v3447, %v3440
    %v3602 = vpack.c.b16 %v3448, %v3441
    %v3603 = vpack.c.b16 %v3449, %v3442
    %v3604 = vpack.c.b16 %v3450, %v3443
    %v3605 = vpack.c.b16 %v3458, %v3451
    %v3606 = vpack.c.b16 %v3459, %v3452
    %v3607 = vpack.c.b16 %v3460, %v3453
    %v3608 = vpack.c.b16 %v3461, %v3454
    %v3609 = vpack.c.b16 %v3462, %v3455
    %v3610 = vpack.c.b16 %v3463, %v3456
    %v3611 = vpack.c.b16 %v3464, %v3457
    %v3612 = vpack.c.b16 %v3472, %v3465
    %v3613 = vpack.c.b16 %v3473, %v3466
    %v3614 = vpack.c.b16 %v3474, %v3467
    %v3615 = vpack.c.b16 %v3475, %v3468
    %v3616 = vpack.c.b16 %v3476, %v3469
    %v3617 = vpack.c.b16 %v3477, %v3470
    %v3618 = vpack.c.b16 %v3478, %v3471
    %v3619 = vpack.c.b16 %v3486, %v3479
    %v3620 = vpack.c.b16 %v3487, %v3480
    %v3621 = vpack.c.b16 %v3488, %v3481
    %v3622 = vpack.c.b16 %v3489, %v3482
    %v3623 = vpack.c.b16 %v3490, %v3483
    %v3624 = vpack.c.b16 %v3491, %v3484
    %v3625 = vpack.c.b16 %v3492, %v3485
    %v3626 = vpack.c.b16 %v3500, %v3493
    %v3627 = vpack.c.b16 %v3501, %v3494
    %v3628 = vpack.c.b16 %v3502, %v3495
    %v3629 = vpack.c.b16 %v3503, %v3496
    %v3630 = vpack.c.b16 %v3504, %v3497
    %v3631 = vpack.c.b16 %v3505, %v3498
    %v3632 = vpack.c.b16 %v3506, %v3499
    %v3633 = vpack.c.b16 %v3514, %v3507
    %v3634 = vpack.c.b16 %v3515, %v3508
    %v3635 = vpack.c.b16 %v3516, %v3509
    %v3636 = vpack.c.b16 %v3517, %v3510
    %v3637 = vpack.c.b16 %v3518, %v3511
    %v3638 = vpack.c.b16 %v3519, %v3512
    %v3639 = vpack.c.b16 %v3520, %v3513
    %v3640 = vpack.c.b16 %v3528, %v3521
    %v3641 = vpack.c.b16 %v3529, %v3522
    %v3642 = vpack.c.b16 %v3530, %v3523
    %v3643 = vpack.c.b16 %v3531, %v3524
    %v3644 = vpack.c.b16 %v3532, %v3525
    %v3645 = vpack.c.b16 %v3533, %v3526
    %v3646 = vpack.c.b16 %v3534, %v3527
    %3759 = vmatprep.subr.bf16.mxu0 %v3536
    %3760 = vmatpush1.bf16.msra.mxu0 %v3535
    %3761 = vmatprep.subr.bf16.mxu0 %v3543
    %3762 = vmatpush1.bf16.msra.mxu0 %v3542
    %3763 = vmatprep.subr.bf16.mxu0 %v3550
    %3764 = vmatpush1.bf16.msra.mxu0 %v3549
    %3765 = vmatprep.subr.bf16.mxu0 %v3557
    %3766 = vmatpush1.bf16.msra.mxu0 %v3556
    %3767 = vmatprep.subr.bf16.mxu0 %v3564
    %3768 = vmatpush1.bf16.msra.mxu0 %v3563
    %3769 = vmatprep.subr.bf16.mxu0 %v3571
    %3770 = vmatpush1.bf16.msra.mxu0 %v3570
    %3771 = vmatprep.subr.bf16.mxu0 %v3578
    %3772 = vmatpush1.bf16.msra.mxu0 %v3577
    %3773 = vmatprep.subr.bf16.mxu0 %v3585
    %3774 = vmatpush1.bf16.msra.mxu0 %v3584
    %3775 = vmatprep.subr.bf16.mxu0 %v3592
    %3776 = vmatpush1.bf16.msra.mxu0 %v3591
    %3777 = vmatprep.subr.bf16.mxu0 %v3599
    %3778 = vmatpush1.bf16.msra.mxu0 %v3598
    %3779 = vmatprep.subr.bf16.mxu0 %v3606
    %3780 = vmatpush1.bf16.msra.mxu0 %v3605
    %3781 = vmatprep.subr.bf16.mxu0 %v3613
    %3782 = vmatpush1.bf16.msra.mxu0 %v3612
    %3783 = vmatprep.subr.bf16.mxu0 %v3620
    %3784 = vmatpush1.bf16.msra.mxu0 %v3619
    %3785 = vmatprep.subr.bf16.mxu0 %v3627
    %3786 = vmatpush1.bf16.msra.mxu0 %v3626
    %3787 = vmatprep.subr.bf16.mxu0 %v3634
    %3788 = vmatpush1.bf16.msra.mxu0 %v3633
    %3789 = vmatprep.subr.bf16.mxu0 %v3641
    %3790 = vmatpush1.bf16.msra.mxu0 %v3640
    %3791 = vmatprep.mubr.bf16.mxu0 %v2987
    %3792 = vmatmul.mubr.bf16.gmra.mrb[0].mxu0 %v2986
    %v3793 = vpop.f32.mrb[0].mxu0
    %v3794 = vadd.f32 %v3151, %v3793
    %v3795 = vpop.f32.mrb[0].mxu0
    %v3796 = vadd.f32 %v3155, %v3795
    %v3797 = vpop.f32.mrb[0].mxu0
    %v3798 = vadd.f32 %v3151, %v3797
    %v3799 = vpop.f32.mrb[0].mxu0
    %v3800 = vadd.f32 %v3155, %v3799
    %3801 = vmatprep.mubr.bf16.mxu0 %v2989
    %3802 = vmatmul.mubr.bf16.gmra.mrb[0].mxu0 %v2988
    %v3803 = vpop.f32.mrb[0].mxu0
    %v3804 = vadd.f32 %v3151, %v3803
    %v3805 = vpop.f32.mrb[0].mxu0
    %v3806 = vadd.f32 %v3155, %v3805
    %v3807 = vpop.f32.mrb[0].mxu0
    %v3808 = vadd.f32 %v3151, %v3807
    %v3809 = vpop.f32.mrb[0].mxu0
    %v3810 = vadd.f32 %v3155, %v3809
    %3811 = vmatprep.mubr.bf16.mxu0 %v2991
    %3812 = vmatmul.mubr.bf16.gmra.mrb[0].mxu0 %v2990
    %v3813 = vpop.f32.mrb[0].mxu0
    %v3814 = vadd.f32 %v3151, %v3813
    %v3815 = vpop.f32.mrb[0].mxu0
    %v3816 = vadd.f32 %v3155, %v3815
    %v3817 = vpop.f32.mrb[0].mxu0
    %v3818 = vadd.f32 %v3151, %v3817
    %v3819 = vpop.f32.mrb[0].mxu0
    %v3820 = vadd.f32 %v3155, %v3819
    %3821 = vmatprep.mubr.bf16.mxu0 %v2993
    %3822 = vmatmul.mubr.bf16.gmra.mrb[0].mxu0 %v2992
    %v3823 = vpop.f32.mrb[0].mxu0
    %v3824 = vadd.f32 %v3151, %v3823
    %v3825 = vpop.f32.mrb[0].mxu0
    %v3826 = vadd.f32 %v3155, %v3825
    %v3827 = vpop.f32.mrb[0].mxu0
    %v3828 = vadd.f32 %v3151, %v3827
    %v3829 = vpop.f32.mrb[0].mxu0
    %v3830 = vadd.f32 %v3155, %v3829
    %3831 = vmatprep.mubr.bf16.mxu0 %v2995
    %3832 = vmatmul.mubr.bf16.gmra.mrb[0].mxu0 %v2994
    %v3833 = vpop.f32.mrb[0].mxu0
    %v3834 = vadd.f32 %v3151, %v3833
    %v3835 = vpop.f32.mrb[0].mxu0
    %v3836 = vadd.f32 %v3155, %v3835
    %v3837 = vpop.f32.mrb[0].mxu0
    %v3838 = vadd.f32 %v3151, %v3837
    %v3839 = vpop.f32.mrb[0].mxu0
    %v3840 = vadd.f32 %v3155, %v3839
    %3841 = vmatprep.mubr.bf16.mxu0 %v2997
    %3842 = vmatmul.mubr.bf16.gmra.mrb[0].mxu0 %v2996
    %v3843 = vpop.f32.mrb[0].mxu0
    %v3844 = vadd.f32 %v3151, %v3843
    %v3845 = vpop.f32.mrb[0].mxu0
    %v3846 = vadd.f32 %v3155, %v3845
    %v3847 = vpop.f32.mrb[0].mxu0
    %v3848 = vadd.f32 %v3151, %v3847
    %v3849 = vpop.f32.mrb[0].mxu0
    %v3850 = vadd.f32 %v3155, %v3849
    %3851 = vmatprep.mubr.bf16.mxu0 %v2999
    %3852 = vmatmul.mubr.bf16.gmra.mrb[0].mxu0 %v2998
    %v3853 = vpop.f32.mrb[0].mxu0
    %v3854 = vadd.f32 %v3151, %v3853
    %v3855 = vpop.f32.mrb[0].mxu0
    %v3856 = vadd.f32 %v3155, %v3855
    %v3857 = vpop.f32.mrb[0].mxu0
    %v3858 = vadd.f32 %v3151, %v3857
    %v3859 = vpop.f32.mrb[0].mxu0
    %v3860 = vadd.f32 %v3155, %v3859
    %3861 = vmatprep.mubr.bf16.mxu0 %v3001
    %3862 = vmatmul.mubr.bf16.gmra.mrb[0].mxu0 %v3000
    %v3863 = vpop.f32.mrb[0].mxu0
    %v3864 = vadd.f32 %v3151, %v3863
    %v3865 = vpop.f32.mrb[0].mxu0
    %v3866 = vadd.f32 %v3155, %v3865
    %v3867 = vpop.f32.mrb[0].mxu0
    %v3868 = vadd.f32 %v3151, %v3867
    %v3869 = vpop.f32.mrb[0].mxu0
    %v3870 = vadd.f32 %v3155, %v3869
    %3871 = vmatprep.mubr.bf16.mxu0 %v3003
    %3872 = vmatmul.mubr.bf16.gmra.mrb[0].mxu0 %v3002
    %v3873 = vpop.f32.mrb[0].mxu0
    %v3874 = vadd.f32 %v3151, %v3873
    %v3875 = vpop.f32.mrb[0].mxu0
    %v3876 = vadd.f32 %v3155, %v3875
    %v3877 = vpop.f32.mrb[0].mxu0
    %v3878 = vadd.f32 %v3151, %v3877
    %v3879 = vpop.f32.mrb[0].mxu0
    %v3880 = vadd.f32 %v3155, %v3879
    %3881 = vmatprep.mubr.bf16.mxu0 %v3005
    %3882 = vmatmul.mubr.bf16.gmra.mrb[0].mxu0 %v3004
    %v3883 = vpop.f32.mrb[0].mxu0
    %v3884 = vadd.f32 %v3151, %v3883
    %v3885 = vpop.f32.mrb[0].mxu0
    %v3886 = vadd.f32 %v3155, %v3885
    %v3887 = vpop.f32.mrb[0].mxu0
    %v3888 = vadd.f32 %v3151, %v3887
    %v3889 = vpop.f32.mrb[0].mxu0
    %v3890 = vadd.f32 %v3155, %v3889
    %3891 = vmatprep.mubr.bf16.mxu0 %v3007
    %3892 = vmatmul.mubr.bf16.gmra.mrb[0].mxu0 %v3006
    %v3893 = vpop.f32.mrb[0].mxu0
    %v3894 = vadd.f32 %v3151, %v3893
    %v3895 = vpop.f32.mrb[0].mxu0
    %v3896 = vadd.f32 %v3155, %v3895
    %v3897 = vpop.f32.mrb[0].mxu0
    %v3898 = vadd.f32 %v3151, %v3897
    %v3899 = vpop.f32.mrb[0].mxu0
    %v3900 = vadd.f32 %v3155, %v3899
    %3901 = vmatprep.mubr.bf16.mxu0 %v3009
    %3902 = vmatmul.mubr.bf16.gmra.mrb[0].mxu0 %v3008
    %v3903 = vpop.f32.mrb[0].mxu0
    %v3904 = vadd.f32 %v3151, %v3903
    %v3905 = vpop.f32.mrb[0].mxu0
    %v3906 = vadd.f32 %v3155, %v3905
    %v3907 = vpop.f32.mrb[0].mxu0
    %v3908 = vadd.f32 %v3151, %v3907
    %v3909 = vpop.f32.mrb[0].mxu0
    %v3910 = vadd.f32 %v3155, %v3909
    %3911 = vmatprep.mubr.bf16.mxu0 %v3011
    %3912 = vmatmul.mubr.bf16.gmra.mrb[0].mxu0 %v3010
    %v3913 = vpop.f32.mrb[0].mxu0
    %v3914 = vadd.f32 %v3151, %v3913
    %v3915 = vpop.f32.mrb[0].mxu0
    %v3916 = vadd.f32 %v3155, %v3915
    %v3917 = vpop.f32.mrb[0].mxu0
    %v3918 = vadd.f32 %v3151, %v3917
    %v3919 = vpop.f32.mrb[0].mxu0
    %v3920 = vadd.f32 %v3155, %v3919
    %3921 = vmatprep.mubr.bf16.mxu0 %v3013
    %3922 = vmatmul.mubr.bf16.gmra.mrb[0].mxu0 %v3012
    %v3923 = vpop.f32.mrb[0].mxu0
    %v3924 = vadd.f32 %v3151, %v3923
    %v3925 = vpop.f32.mrb[0].mxu0
    %v3926 = vadd.f32 %v3155, %v3925
    %v3927 = vpop.f32.mrb[0].mxu0
    %v3928 = vadd.f32 %v3151, %v3927
    %v3929 = vpop.f32.mrb[0].mxu0
    %v3930 = vadd.f32 %v3155, %v3929
    %3931 = vmatprep.mubr.bf16.mxu0 %v3015
    %3932 = vmatmul.mubr.bf16.gmra.mrb[0].mxu0 %v3014
    %v3933 = vpop.f32.mrb[0].mxu0
    %v3934 = vadd.f32 %v3151, %v3933
    %v3935 = vpop.f32.mrb[0].mxu0
    %v3936 = vadd.f32 %v3155, %v3935
    %v3937 = vpop.f32.mrb[0].mxu0
    %v3938 = vadd.f32 %v3151, %v3937
    %v3939 = vpop.f32.mrb[0].mxu0
    %v3940 = vadd.f32 %v3155, %v3939
    %3941 = vmatprep.mubr.bf16.mxu0 %v3017
    %3942 = vmatmul.mubr.bf16.gmra.mrb[0].mxu0 %v3016
    %v3943 = vpop.f32.mrb[0].mxu0
    %v3944 = vadd.f32 %v3151, %v3943
    %v3945 = vpop.f32.mrb[0].mxu0
    %v3946 = vadd.f32 %v3155, %v3945
    %v3947 = vpop.f32.mrb[0].mxu0
    %v3948 = vadd.f32 %v3151, %v3947
    %v3949 = vpop.f32.mrb[0].mxu0
    %v3950 = vadd.f32 %v3155, %v3949
    %3951 = vdwg.mxu0
    %3952 = vmatprep.subr.bf16.mxu0 %v3538
    %3953 = vmatpush1.bf16.msra.mxu0 %v3537
    %3954 = vmatprep.subr.bf16.mxu0 %v3545
    %3955 = vmatpush1.bf16.msra.mxu0 %v3544
    %3956 = vmatprep.subr.bf16.mxu0 %v3552
    %3957 = vmatpush1.bf16.msra.mxu0 %v3551
    %3958 = vmatprep.subr.bf16.mxu0 %v3559
    %3959 = vmatpush1.bf16.msra.mxu0 %v3558
    %3960 = vmatprep.subr.bf16.mxu0 %v3566
    %3961 = vmatpush1.bf16.msra.mxu0 %v3565
    %3962 = vmatprep.subr.bf16.mxu0 %v3573
    %3963 = vmatpush1.bf16.msra.mxu0 %v3572
    %3964 = vmatprep.subr.bf16.mxu0 %v3580
    %3965 = vmatpush1.bf16.msra.mxu0 %v3579
    %3966 = vmatprep.subr.bf16.mxu0 %v3587
    %3967 = vmatpush1.bf16.msra.mxu0 %v3586
    %3968 = vmatprep.subr.bf16.mxu0 %v3594
    %3969 = vmatpush1.bf16.msra.mxu0 %v3593
    %3970 = vmatprep.subr.bf16.mxu0 %v3601
    %3971 = vmatpush1.bf16.msra.mxu0 %v3600
    %3972 = vmatprep.subr.bf16.mxu0 %v3608
    %3973 = vmatpush1.bf16.msra.mxu0 %v3607
    %3974 = vmatprep.subr.bf16.mxu0 %v3615
    %3975 = vmatpush1.bf16.msra.mxu0 %v3614
    %3976 = vmatprep.subr.bf16.mxu0 %v3622
    %3977 = vmatpush1.bf16.msra.mxu0 %v3621
    %3978 = vmatprep.subr.bf16.mxu0 %v3629
    %3979 = vmatpush1.bf16.msra.mxu0 %v3628
    %3980 = vmatprep.subr.bf16.mxu0 %v3636
    %3981 = vmatpush1.bf16.msra.mxu0 %v3635
    %3982 = vmatprep.subr.bf16.mxu0 %v3643
    %3983 = vmatpush1.bf16.msra.mxu0 %v3642
    %3984 = vmatprep.mubr.bf16.mxu0 %v2987
    %3985 = vmatmul.mubr.bf16.gmra.mrb[0].mxu0 %v2986
    %v3986 = vpop.f32.mrb[0].mxu0
    %v3987 = vadd.f32 %v3159, %v3986
    %v3988 = vpop.f32.mrb[0].mxu0
    %v3989 = vadd.f32 %v3163, %v3988
    %v3990 = vpop.f32.mrb[0].mxu0
    %v3991 = vadd.f32 %v3159, %v3990
    %v3992 = vpop.f32.mrb[0].mxu0
    %v3993 = vadd.f32 %v3163, %v3992
    %3994 = vmatprep.mubr.bf16.mxu0 %v2989
    %3995 = vmatmul.mubr.bf16.gmra.mrb[0].mxu0 %v2988
    %v3996 = vpop.f32.mrb[0].mxu0
    %v3997 = vadd.f32 %v3159, %v3996
    %v3998 = vpop.f32.mrb[0].mxu0
    %v3999 = vadd.f32 %v3163, %v3998
    %v4000 = vpop.f32.mrb[0].mxu0
    %v4001 = vadd.f32 %v3159, %v4000
    %v4002 = vpop.f32.mrb[0].mxu0
    %v4003 = vadd.f32 %v3163, %v4002
    %4004 = vmatprep.mubr.bf16.mxu0 %v2991
    %4005 = vmatmul.mubr.bf16.gmra.mrb[0].mxu0 %v2990
    %v4006 = vpop.f32.mrb[0].mxu0
    %v4007 = vadd.f32 %v3159, %v4006
    %v4008 = vpop.f32.mrb[0].mxu0
    %v4009 = vadd.f32 %v3163, %v4008
    %v4010 = vpop.f32.mrb[0].mxu0
    %v4011 = vadd.f32 %v3159, %v4010
    %v4012 = vpop.f32.mrb[0].mxu0
    %v4013 = vadd.f32 %v3163, %v4012
    %4014 = vmatprep.mubr.bf16.mxu0 %v2993
    %4015 = vmatmul.mubr.bf16.gmra.mrb[0].mxu0 %v2992
    %v4016 = vpop.f32.mrb[0].mxu0
    %v4017 = vadd.f32 %v3159, %v4016
    %v4018 = vpop.f32.mrb[0].mxu0
    %v4019 = vadd.f32 %v3163, %v4018
    %v4020 = vpop.f32.mrb[0].mxu0
    %v4021 = vadd.f32 %v3159, %v4020
    %v4022 = vpop.f32.mrb[0].mxu0
    %v4023 = vadd.f32 %v3163, %v4022
    %4024 = vmatprep.mubr.bf16.mxu0 %v2995
    %4025 = vmatmul.mubr.bf16.gmra.mrb[0].mxu0 %v2994
    %v4026 = vpop.f32.mrb[0].mxu0
    %v4027 = vadd.f32 %v3159, %v4026
    %v4028 = vpop.f32.mrb[0].mxu0
    %v4029 = vadd.f32 %v3163, %v4028
    %v4030 = vpop.f32.mrb[0].mxu0
    %v4031 = vadd.f32 %v3159, %v4030
    %v4032 = vpop.f32.mrb[0].mxu0
    %v4033 = vadd.f32 %v3163, %v4032
    %4034 = vmatprep.mubr.bf16.mxu0 %v2997
    %4035 = vmatmul.mubr.bf16.gmra.mrb[0].mxu0 %v2996
    %v4036 = vpop.f32.mrb[0].mxu0
    %v4037 = vadd.f32 %v3159, %v4036
    %v4038 = vpop.f32.mrb[0].mxu0
    %v4039 = vadd.f32 %v3163, %v4038
    %v4040 = vpop.f32.mrb[0].mxu0
    %v4041 = vadd.f32 %v3159, %v4040
    %v4042 = vpop.f32.mrb[0].mxu0
    %v4043 = vadd.f32 %v3163, %v4042
    %4044 = vmatprep.mubr.bf16.mxu0 %v2999
    %4045 = vmatmul.mubr.bf16.gmra.mrb[0].mxu0 %v2998
    %v4046 = vpop.f32.mrb[0].mxu0
    %v4047 = vadd.f32 %v3159, %v4046
    %v4048 = vpop.f32.mrb[0].mxu0
    %v4049 = vadd.f32 %v3163, %v4048
    %v4050 = vpop.f32.mrb[0].mxu0
    %v4051 = vadd.f32 %v3159, %v4050
    %v4052 = vpop.f32.mrb[0].mxu0
    %v4053 = vadd.f32 %v3163, %v4052
    %4054 = vmatprep.mubr.bf16.mxu0 %v3001
    %4055 = vmatmul.mubr.bf16.gmra.mrb[0].mxu0 %v3000
    %v4056 = vpop.f32.mrb[0].mxu0
    %v4057 = vadd.f32 %v3159, %v4056
    %v4058 = vpop.f32.mrb[0].mxu0
    %v4059 = vadd.f32 %v3163, %v4058
    %v4060 = vpop.f32.mrb[0].mxu0
    %v4061 = vadd.f32 %v3159, %v4060
    %v4062 = vpop.f32.mrb[0].mxu0
    %v4063 = vadd.f32 %v3163, %v4062
    %4064 = vmatprep.mubr.bf16.mxu0 %v3003
    %4065 = vmatmul.mubr.bf16.gmra.mrb[0].mxu0 %v3002
    %v4066 = vpop.f32.mrb[0].mxu0
    %v4067 = vadd.f32 %v3159, %v4066
    %v4068 = vpop.f32.mrb[0].mxu0
    %v4069 = vadd.f32 %v3163, %v4068
    %v4070 = vpop.f32.mrb[0].mxu0
    %v4071 = vadd.f32 %v3159, %v4070
    %v4072 = vpop.f32.mrb[0].mxu0
    %v4073 = vadd.f32 %v3163, %v4072
    %4074 = vmatprep.mubr.bf16.mxu0 %v3005
    %4075 = vmatmul.mubr.bf16.gmra.mrb[0].mxu0 %v3004
    %v4076 = vpop.f32.mrb[0].mxu0
    %v4077 = vadd.f32 %v3159, %v4076
    %v4078 = vpop.f32.mrb[0].mxu0
    %v4079 = vadd.f32 %v3163, %v4078
    %v4080 = vpop.f32.mrb[0].mxu0
    %v4081 = vadd.f32 %v3159, %v4080
    %v4082 = vpop.f32.mrb[0].mxu0
    %v4083 = vadd.f32 %v3163, %v4082
    %4084 = vmatprep.mubr.bf16.mxu0 %v3007
    %4085 = vmatmul.mubr.bf16.gmra.mrb[0].mxu0 %v3006
    %v4086 = vpop.f32.mrb[0].mxu0
    %v4087 = vadd.f32 %v3159, %v4086
    %v4088 = vpop.f32.mrb[0].mxu0
    %v4089 = vadd.f32 %v3163, %v4088
    %v4090 = vpop.f32.mrb[0].mxu0
    %v4091 = vadd.f32 %v3159, %v4090
    %v4092 = vpop.f32.mrb[0].mxu0
    %v4093 = vadd.f32 %v3163, %v4092
    %4094 = vmatprep.mubr.bf16.mxu0 %v3009
    %4095 = vmatmul.mubr.bf16.gmra.mrb[0].mxu0 %v3008
    %v4096 = vpop.f32.mrb[0].mxu0
    %v4097 = vadd.f32 %v3159, %v4096
    %v4098 = vpop.f32.mrb[0].mxu0
    %v4099 = vadd.f32 %v3163, %v4098
    %v4100 = vpop.f32.mrb[0].mxu0
    %v4101 = vadd.f32 %v3159, %v4100
    %v4102 = vpop.f32.mrb[0].mxu0
    %v4103 = vadd.f32 %v3163, %v4102
    %4104 = vmatprep.mubr.bf16.mxu0 %v3011
    %4105 = vmatmul.mubr.bf16.gmra.mrb[0].mxu0 %v3010
    %v4106 = vpop.f32.mrb[0].mxu0
    %v4107 = vadd.f32 %v3159, %v4106
    %v4108 = vpop.f32.mrb[0].mxu0
    %v4109 = vadd.f32 %v3163, %v4108
    %v4110 = vpop.f32.mrb[0].mxu0
    %v4111 = vadd.f32 %v3159, %v4110
    %v4112 = vpop.f32.mrb[0].mxu0
    %v4113 = vadd.f32 %v3163, %v4112
    %4114 = vmatprep.mubr.bf16.mxu0 %v3013
    %4115 = vmatmul.mubr.bf16.gmra.mrb[0].mxu0 %v3012
    %v4116 = vpop.f32.mrb[0].mxu0
    %v4117 = vadd.f32 %v3159, %v4116
    %v4118 = vpop.f32.mrb[0].mxu0
    %v4119 = vadd.f32 %v3163, %v4118
    %v4120 = vpop.f32.mrb[0].mxu0
    %v4121 = vadd.f32 %v3159, %v4120
    %v4122 = vpop.f32.mrb[0].mxu0
    %v4123 = vadd.f32 %v3163, %v4122
    %4124 = vmatprep.mubr.bf16.mxu0 %v3015
    %4125 = vmatmul.mubr.bf16.gmra.mrb[0].mxu0 %v3014
    %v4126 = vpop.f32.mrb[0].mxu0
    %v4127 = vadd.f32 %v3159, %v4126
    %v4128 = vpop.f32.mrb[0].mxu0
    %v4129 = vadd.f32 %v3163, %v4128
    %v4130 = vpop.f32.mrb[0].mxu0
    %v4131 = vadd.f32 %v3159, %v4130
    %v4132 = vpop.f32.mrb[0].mxu0
    %v4133 = vadd.f32 %v3163, %v4132
    %4134 = vmatprep.mubr.bf16.mxu0 %v3017
    %4135 = vmatmul.mubr.bf16.gmra.mrb[0].mxu0 %v3016
    %v4136 = vpop.f32.mrb[0].mxu0
    %v4137 = vadd.f32 %v3159, %v4136
    %v4138 = vpop.f32.mrb[0].mxu0
    %v4139 = vadd.f32 %v3163, %v4138
    %v4140 = vpop.f32.mrb[0].mxu0
    %v4141 = vadd.f32 %v3159, %v4140
    %v4142 = vpop.f32.mrb[0].mxu0
    %v4143 = vadd.f32 %v3163, %v4142
    %4144 = vdwg.mxu0
    %4145 = vmatprep.subr.bf16.mxu0 %v3540
    %4146 = vmatpush1.bf16.msra.mxu0 %v3539
    %4147 = vmatprep.subr.bf16.mxu0 %v3547
    %4148 = vmatpush1.bf16.msra.mxu0 %v3546
    %4149 = vmatprep.subr.bf16.mxu0 %v3554
    %4150 = vmatpush1.bf16.msra.mxu0 %v3553
    %4151 = vmatprep.subr.bf16.mxu0 %v3561
    %4152 = vmatpush1.bf16.msra.mxu0 %v3560
    %4153 = vmatprep.subr.bf16.mxu0 %v3568
    %4154 = vmatpush1.bf16.msra.mxu0 %v3567
    %4155 = vmatprep.subr.bf16.mxu0 %v3575
    %4156 = vmatpush1.bf16.msra.mxu0 %v3574
    %4157 = vmatprep.subr.bf16.mxu0 %v3582
    %4158 = vmatpush1.bf16.msra.mxu0 %v3581
    %4159 = vmatprep.subr.bf16.mxu0 %v3589
    %4160 = vmatpush1.bf16.msra.mxu0 %v3588
    %4161 = vmatprep.subr.bf16.mxu0 %v3596
    %4162 = vmatpush1.bf16.msra.mxu0 %v3595
    %4163 = vmatprep.subr.bf16.mxu0 %v3603
    %4164 = vmatpush1.bf16.msra.mxu0 %v3602
    %4165 = vmatprep.subr.bf16.mxu0 %v3610
    %4166 = vmatpush1.bf16.msra.mxu0 %v3609
    %4167 = vmatprep.subr.bf16.mxu0 %v3617
    %4168 = vmatpush1.bf16.msra.mxu0 %v3616
    %4169 = vmatprep.subr.bf16.mxu0 %v3624
    %4170 = vmatpush1.bf16.msra.mxu0 %v3623
    %4171 = vmatprep.subr.bf16.mxu0 %v3631
    %4172 = vmatpush1.bf16.msra.mxu0 %v3630
    %4173 = vmatprep.subr.bf16.mxu0 %v3638
    %4174 = vmatpush1.bf16.msra.mxu0 %v3637
    %4175 = vmatprep.subr.bf16.mxu0 %v3645
    %4176 = vmatpush1.bf16.msra.mxu0 %v3644
    %4177 = vmatprep.mubr.bf16.mxu0 %v2987
    %4178 = vmatmul.mubr.bf16.gmra.mrb[0].mxu0 %v2986
    %v4179 = vpop.f32.mrb[0].mxu0
    %v4180 = vadd.f32 %v3167, %v4179
    %v4181 = vpop.f32.mrb[0].mxu0
    %v4182 = vadd.f32 %v3171, %v4181
    %v4183 = vpop.f32.mrb[0].mxu0
    %v4184 = vadd.f32 %v3167, %v4183
    %v4185 = vpop.f32.mrb[0].mxu0
    %v4186 = vadd.f32 %v3171, %v4185
    %4187 = vmatprep.mubr.bf16.mxu0 %v2989
    %4188 = vmatmul.mubr.bf16.gmra.mrb[0].mxu0 %v2988
    %v4189 = vpop.f32.mrb[0].mxu0
    %v4190 = vadd.f32 %v3167, %v4189
    %v4191 = vpop.f32.mrb[0].mxu0
    %v4192 = vadd.f32 %v3171, %v4191
    %v4193 = vpop.f32.mrb[0].mxu0
    %v4194 = vadd.f32 %v3167, %v4193
    %v4195 = vpop.f32.mrb[0].mxu0
    %v4196 = vadd.f32 %v3171, %v4195
    %4197 = vmatprep.mubr.bf16.mxu0 %v2991
    %4198 = vmatmul.mubr.bf16.gmra.mrb[0].mxu0 %v2990
    %v4199 = vpop.f32.mrb[0].mxu0
    %v4200 = vadd.f32 %v3167, %v4199
    %v4201 = vpop.f32.mrb[0].mxu0
    %v4202 = vadd.f32 %v3171, %v4201
    %v4203 = vpop.f32.mrb[0].mxu0
    %v4204 = vadd.f32 %v3167, %v4203
    %v4205 = vpop.f32.mrb[0].mxu0
    %v4206 = vadd.f32 %v3171, %v4205
    %4207 = vmatprep.mubr.bf16.mxu0 %v2993
    %4208 = vmatmul.mubr.bf16.gmra.mrb[0].mxu0 %v2992
    %v4209 = vpop.f32.mrb[0].mxu0
    %v4210 = vadd.f32 %v3167, %v4209
    %v4211 = vpop.f32.mrb[0].mxu0
    %v4212 = vadd.f32 %v3171, %v4211
    %v4213 = vpop.f32.mrb[0].mxu0
    %v4214 = vadd.f32 %v3167, %v4213
    %v4215 = vpop.f32.mrb[0].mxu0
    %v4216 = vadd.f32 %v3171, %v4215
    %4217 = vmatprep.mubr.bf16.mxu0 %v2995
    %4218 = vmatmul.mubr.bf16.gmra.mrb[0].mxu0 %v2994
    %v4219 = vpop.f32.mrb[0].mxu0
    %v4220 = vadd.f32 %v3167, %v4219
    %v4221 = vpop.f32.mrb[0].mxu0
    %v4222 = vadd.f32 %v3171, %v4221
    %v4223 = vpop.f32.mrb[0].mxu0
    %v4224 = vadd.f32 %v3167, %v4223
    %v4225 = vpop.f32.mrb[0].mxu0
    %v4226 = vadd.f32 %v3171, %v4225
    %4227 = vmatprep.mubr.bf16.mxu0 %v2997
    %4228 = vmatmul.mubr.bf16.gmra.mrb[0].mxu0 %v2996
    %v4229 = vpop.f32.mrb[0].mxu0
    %v4230 = vadd.f32 %v3167, %v4229
    %v4231 = vpop.f32.mrb[0].mxu0
    %v4232 = vadd.f32 %v3171, %v4231
    %v4233 = vpop.f32.mrb[0].mxu0
    %v4234 = vadd.f32 %v3167, %v4233
    %v4235 = vpop.f32.mrb[0].mxu0
    %v4236 = vadd.f32 %v3171, %v4235
    %4237 = vmatprep.mubr.bf16.mxu0 %v2999
    %4238 = vmatmul.mubr.bf16.gmra.mrb[0].mxu0 %v2998
    %v4239 = vpop.f32.mrb[0].mxu0
    %v4240 = vadd.f32 %v3167, %v4239
    %v4241 = vpop.f32.mrb[0].mxu0
    %v4242 = vadd.f32 %v3171, %v4241
    %v4243 = vpop.f32.mrb[0].mxu0
    %v4244 = vadd.f32 %v3167, %v4243
    %v4245 = vpop.f32.mrb[0].mxu0
    %v4246 = vadd.f32 %v3171, %v4245
    %4247 = vmatprep.mubr.bf16.mxu0 %v3001
    %4248 = vmatmul.mubr.bf16.gmra.mrb[0].mxu0 %v3000
    %v4249 = vpop.f32.mrb[0].mxu0
    %v4250 = vadd.f32 %v3167, %v4249
    %v4251 = vpop.f32.mrb[0].mxu0
    %v4252 = vadd.f32 %v3171, %v4251
    %v4253 = vpop.f32.mrb[0].mxu0
    %v4254 = vadd.f32 %v3167, %v4253
    %v4255 = vpop.f32.mrb[0].mxu0
    %v4256 = vadd.f32 %v3171, %v4255
    %4257 = vmatprep.mubr.bf16.mxu0 %v3003
    %4258 = vmatmul.mubr.bf16.gmra.mrb[0].mxu0 %v3002
    %v4259 = vpop.f32.mrb[0].mxu0
    %v4260 = vadd.f32 %v3167, %v4259
    %v4261 = vpop.f32.mrb[0].mxu0
    %v4262 = vadd.f32 %v3171, %v4261
    %v4263 = vpop.f32.mrb[0].mxu0
    %v4264 = vadd.f32 %v3167, %v4263
    %v4265 = vpop.f32.mrb[0].mxu0
    %v4266 = vadd.f32 %v3171, %v4265
    %4267 = vmatprep.mubr.bf16.mxu0 %v3005
    %4268 = vmatmul.mubr.bf16.gmra.mrb[0].mxu0 %v3004
    %v4269 = vpop.f32.mrb[0].mxu0
    %v4270 = vadd.f32 %v3167, %v4269
    %v4271 = vpop.f32.mrb[0].mxu0
    %v4272 = vadd.f32 %v3171, %v4271
    %v4273 = vpop.f32.mrb[0].mxu0
    %v4274 = vadd.f32 %v3167, %v4273
    %v4275 = vpop.f32.mrb[0].mxu0
    %v4276 = vadd.f32 %v3171, %v4275
    %4277 = vmatprep.mubr.bf16.mxu0 %v3007
    %4278 = vmatmul.mubr.bf16.gmra.mrb[0].mxu0 %v3006
    %v4279 = vpop.f32.mrb[0].mxu0
    %v4280 = vadd.f32 %v3167, %v4279
    %v4281 = vpop.f32.mrb[0].mxu0
    %v4282 = vadd.f32 %v3171, %v4281
    %v4283 = vpop.f32.mrb[0].mxu0
    %v4284 = vadd.f32 %v3167, %v4283
    %v4285 = vpop.f32.mrb[0].mxu0
    %v4286 = vadd.f32 %v3171, %v4285
    %4287 = vmatprep.mubr.bf16.mxu0 %v3009
    %4288 = vmatmul.mubr.bf16.gmra.mrb[0].mxu0 %v3008
    %v4289 = vpop.f32.mrb[0].mxu0
    %v4290 = vadd.f32 %v3167, %v4289
    %v4291 = vpop.f32.mrb[0].mxu0
    %v4292 = vadd.f32 %v3171, %v4291
    %v4293 = vpop.f32.mrb[0].mxu0
    %v4294 = vadd.f32 %v3167, %v4293
    %v4295 = vpop.f32.mrb[0].mxu0
    %v4296 = vadd.f32 %v3171, %v4295
    %4297 = vmatprep.mubr.bf16.mxu0 %v3011
    %4298 = vmatmul.mubr.bf16.gmra.mrb[0].mxu0 %v3010
    %v4299 = vpop.f32.mrb[0].mxu0
    %v4300 = vadd.f32 %v3167, %v4299
    %v4301 = vpop.f32.mrb[0].mxu0
    %v4302 = vadd.f32 %v3171, %v4301
    %v4303 = vpop.f32.mrb[0].mxu0
    %v4304 = vadd.f32 %v3167, %v4303
    %v4305 = vpop.f32.mrb[0].mxu0
    %v4306 = vadd.f32 %v3171, %v4305
    %4307 = vmatprep.mubr.bf16.mxu0 %v3013
    %4308 = vmatmul.mubr.bf16.gmra.mrb[0].mxu0 %v3012
    %v4309 = vpop.f32.mrb[0].mxu0
    %v4310 = vadd.f32 %v3167, %v4309
    %v4311 = vpop.f32.mrb[0].mxu0
    %v4312 = vadd.f32 %v3171, %v4311
    %v4313 = vpop.f32.mrb[0].mxu0
    %v4314 = vadd.f32 %v3167, %v4313
    %v4315 = vpop.f32.mrb[0].mxu0
    %v4316 = vadd.f32 %v3171, %v4315
    %4317 = vmatprep.mubr.bf16.mxu0 %v3015
    %4318 = vmatmul.mubr.bf16.gmra.mrb[0].mxu0 %v3014
    %v4319 = vpop.f32.mrb[0].mxu0
    %v4320 = vadd.f32 %v3167, %v4319
    %v4321 = vpop.f32.mrb[0].mxu0
    %v4322 = vadd.f32 %v3171, %v4321
    %v4323 = vpop.f32.mrb[0].mxu0
    %v4324 = vadd.f32 %v3167, %v4323
    %v4325 = vpop.f32.mrb[0].mxu0
    %v4326 = vadd.f32 %v3171, %v4325
    %4327 = vmatprep.mubr.bf16.mxu0 %v3017
    %4328 = vmatmul.mubr.bf16.gmra.mrb[0].mxu0 %v3016
    %v4329 = vpop.f32.mrb[0].mxu0
    %v4330 = vadd.f32 %v3167, %v4329
    %v4331 = vpop.f32.mrb[0].mxu0
    %v4332 = vadd.f32 %v3171, %v4331
    %v4333 = vpop.f32.mrb[0].mxu0
    %v4334 = vadd.f32 %v3167, %v4333
    %v4335 = vpop.f32.mrb[0].mxu0
    %v4336 = vadd.f32 %v3171, %v4335
    %4337 = vdwg.mxu0
    %4338 = vmatprep.subr.bf16.mxu0 0
    %4339 = vmatpush1.bf16.msra.mxu0 %v3541
    %4340 = vmatprep.subr.bf16.mxu0 0
    %4341 = vmatpush1.bf16.msra.mxu0 %v3548
    %4342 = vmatprep.subr.bf16.mxu0 0
    %4343 = vmatpush1.bf16.msra.mxu0 %v3555
    %4344 = vmatprep.subr.bf16.mxu0 0
    %4345 = vmatpush1.bf16.msra.mxu0 %v3562
    %4346 = vmatprep.subr.bf16.mxu0 0
    %4347 = vmatpush1.bf16.msra.mxu0 %v3569
    %4348 = vmatprep.subr.bf16.mxu0 0
    %4349 = vmatpush1.bf16.msra.mxu0 %v3576
    %4350 = vmatprep.subr.bf16.mxu0 0
    %4351 = vmatpush1.bf16.msra.mxu0 %v3583
    %4352 = vmatprep.subr.bf16.mxu0 0
    %4353 = vmatpush1.bf16.msra.mxu0 %v3590
    %4354 = vmatprep.subr.bf16.mxu0 0
    %4355 = vmatpush1.bf16.msra.mxu0 %v3597
    %4356 = vmatprep.subr.bf16.mxu0 0
    %4357 = vmatpush1.bf16.msra.mxu0 %v3604
    %4358 = vmatprep.subr.bf16.mxu0 0
    %4359 = vmatpush1.bf16.msra.mxu0 %v3611
    %4360 = vmatprep.subr.bf16.mxu0 0
    %4361 = vmatpush1.bf16.msra.mxu0 %v3618
    %4362 = vmatprep.subr.bf16.mxu0 0
    %4363 = vmatpush1.bf16.msra.mxu0 %v3625
    %4364 = vmatprep.subr.bf16.mxu0 0
    %4365 = vmatpush1.bf16.msra.mxu0 %v3632
    %4366 = vmatprep.subr.bf16.mxu0 0
    %4367 = vmatpush1.bf16.msra.mxu0 %v3639
    %4368 = vmatprep.subr.bf16.mxu0 0
    %4369 = vmatpush1.bf16.msra.mxu0 %v3646
    %4370 = vmatprep.mubr.bf16.mxu0 %v2987
    %4371 = vmatmul.mubr.bf16.gmra.mrb[0].mxu0 %v2986
    %v4372 = vpop.f32.mrb[0].mxu0
    %v4373 = vadd.f32 %v3175, %v4372
    %v4374 = vpop.f32.mrb[0].mxu0
    %v4375 = vpop.f32.mrb[0].mxu0
    %v4376 = vadd.f32 %v3175, %v4375
    %v4377 = vpop.f32.mrb[0].mxu0
    %4378 = vmatprep.mubr.bf16.mxu0 %v2989
    %4379 = vmatmul.mubr.bf16.gmra.mrb[0].mxu0 %v2988
    %v4380 = vpop.f32.mrb[0].mxu0
    %v4381 = vadd.f32 %v3175, %v4380
    %v4382 = vpop.f32.mrb[0].mxu0
    %v4383 = vpop.f32.mrb[0].mxu0
    %v4384 = vadd.f32 %v3175, %v4383
    %v4385 = vpop.f32.mrb[0].mxu0
    %4386 = vmatprep.mubr.bf16.mxu0 %v2991
    %4387 = vmatmul.mubr.bf16.gmra.mrb[0].mxu0 %v2990
    %v4388 = vpop.f32.mrb[0].mxu0
    %v4389 = vadd.f32 %v3175, %v4388
    %v4390 = vpop.f32.mrb[0].mxu0
    %v4391 = vpop.f32.mrb[0].mxu0
    %v4392 = vadd.f32 %v3175, %v4391
    %v4393 = vpop.f32.mrb[0].mxu0
    %4394 = vmatprep.mubr.bf16.mxu0 %v2993
    %4395 = vmatmul.mubr.bf16.gmra.mrb[0].mxu0 %v2992
    %v4396 = vpop.f32.mrb[0].mxu0
    %v4397 = vadd.f32 %v3175, %v4396
    %v4398 = vpop.f32.mrb[0].mxu0
    %v4399 = vpop.f32.mrb[0].mxu0
    %v4400 = vadd.f32 %v3175, %v4399
    %v4401 = vpop.f32.mrb[0].mxu0
    %4402 = vmatprep.mubr.bf16.mxu0 %v2995
    %4403 = vmatmul.mubr.bf16.gmra.mrb[0].mxu0 %v2994
    %v4404 = vpop.f32.mrb[0].mxu0
    %v4405 = vadd.f32 %v3175, %v4404
    %v4406 = vpop.f32.mrb[0].mxu0
    %v4407 = vpop.f32.mrb[0].mxu0
    %v4408 = vadd.f32 %v3175, %v4407
    %v4409 = vpop.f32.mrb[0].mxu0
    %4410 = vmatprep.mubr.bf16.mxu0 %v2997
    %4411 = vmatmul.mubr.bf16.gmra.mrb[0].mxu0 %v2996
    %v4412 = vpop.f32.mrb[0].mxu0
    %v4413 = vadd.f32 %v3175, %v4412
    %v4414 = vpop.f32.mrb[0].mxu0
    %v4415 = vpop.f32.mrb[0].mxu0
    %v4416 = vadd.f32 %v3175, %v4415
    %v4417 = vpop.f32.mrb[0].mxu0
    %4418 = vmatprep.mubr.bf16.mxu0 %v2999
    %4419 = vmatmul.mubr.bf16.gmra.mrb[0].mxu0 %v2998
    %v4420 = vpop.f32.mrb[0].mxu0
    %v4421 = vadd.f32 %v3175, %v4420
    %v4422 = vpop.f32.mrb[0].mxu0
    %v4423 = vpop.f32.mrb[0].mxu0
    %v4424 = vadd.f32 %v3175, %v4423
    %v4425 = vpop.f32.mrb[0].mxu0
    %4426 = vmatprep.mubr.bf16.mxu0 %v3001
    %4427 = vmatmul.mubr.bf16.gmra.mrb[0].mxu0 %v3000
    %v4428 = vpop.f32.mrb[0].mxu0
    %v4429 = vadd.f32 %v3175, %v4428
    %v4430 = vpop.f32.mrb[0].mxu0
    %v4431 = vpop.f32.mrb[0].mxu0
    %v4432 = vadd.f32 %v3175, %v4431
    %v4433 = vpop.f32.mrb[0].mxu0
    %4434 = vmatprep.mubr.bf16.mxu0 %v3003
    %4435 = vmatmul.mubr.bf16.gmra.mrb[0].mxu0 %v3002
    %v4436 = vpop.f32.mrb[0].mxu0
    %v4437 = vadd.f32 %v3175, %v4436
    %v4438 = vpop.f32.mrb[0].mxu0
    %v4439 = vpop.f32.mrb[0].mxu0
    %v4440 = vadd.f32 %v3175, %v4439
    %v4441 = vpop.f32.mrb[0].mxu0
    %4442 = vmatprep.mubr.bf16.mxu0 %v3005
    %4443 = vmatmul.mubr.bf16.gmra.mrb[0].mxu0 %v3004
    %v4444 = vpop.f32.mrb[0].mxu0
    %v4445 = vadd.f32 %v3175, %v4444
    %v4446 = vpop.f32.mrb[0].mxu0
    %v4447 = vpop.f32.mrb[0].mxu0
    %v4448 = vadd.f32 %v3175, %v4447
    %v4449 = vpop.f32.mrb[0].mxu0
    %4450 = vmatprep.mubr.bf16.mxu0 %v3007
    %4451 = vmatmul.mubr.bf16.gmra.mrb[0].mxu0 %v3006
    %v4452 = vpop.f32.mrb[0].mxu0
    %v4453 = vadd.f32 %v3175, %v4452
    %v4454 = vpop.f32.mrb[0].mxu0
    %v4455 = vpop.f32.mrb[0].mxu0
    %v4456 = vadd.f32 %v3175, %v4455
    %v4457 = vpop.f32.mrb[0].mxu0
    %4458 = vmatprep.mubr.bf16.mxu0 %v3009
    %4459 = vmatmul.mubr.bf16.gmra.mrb[0].mxu0 %v3008
    %v4460 = vpop.f32.mrb[0].mxu0
    %v4461 = vadd.f32 %v3175, %v4460
    %v4462 = vpop.f32.mrb[0].mxu0
    %v4463 = vpop.f32.mrb[0].mxu0
    %v4464 = vadd.f32 %v3175, %v4463
    %v4465 = vpop.f32.mrb[0].mxu0
    %4466 = vmatprep.mubr.bf16.mxu0 %v3011
    %4467 = vmatmul.mubr.bf16.gmra.mrb[0].mxu0 %v3010
    %v4468 = vpop.f32.mrb[0].mxu0
    %v4469 = vadd.f32 %v3175, %v4468
    %v4470 = vpop.f32.mrb[0].mxu0
    %v4471 = vpop.f32.mrb[0].mxu0
    %v4472 = vadd.f32 %v3175, %v4471
    %v4473 = vpop.f32.mrb[0].mxu0
    %4474 = vmatprep.mubr.bf16.mxu0 %v3013
    %4475 = vmatmul.mubr.bf16.gmra.mrb[0].mxu0 %v3012
    %v4476 = vpop.f32.mrb[0].mxu0
    %v4477 = vadd.f32 %v3175, %v4476
    %v4478 = vpop.f32.mrb[0].mxu0
    %v4479 = vpop.f32.mrb[0].mxu0
    %v4480 = vadd.f32 %v3175, %v4479
    %v4481 = vpop.f32.mrb[0].mxu0
    %4482 = vmatprep.mubr.bf16.mxu0 %v3015
    %4483 = vmatmul.mubr.bf16.gmra.mrb[0].mxu0 %v3014
    %v4484 = vpop.f32.mrb[0].mxu0
    %v4485 = vadd.f32 %v3175, %v4484
    %v4486 = vpop.f32.mrb[0].mxu0
    %v4487 = vpop.f32.mrb[0].mxu0
    %v4488 = vadd.f32 %v3175, %v4487
    %v4489 = vpop.f32.mrb[0].mxu0
    %4490 = vmatprep.mubr.bf16.mxu0 %v3017
    %4491 = vmatmul.mubr.bf16.gmra.mrb[0].mxu0 %v3016
    %v4492 = vpop.f32.mrb[0].mxu0
    %v4493 = vadd.f32 %v3175, %v4492
    %v4494 = vpop.f32.mrb[0].mxu0
    %v4495 = vpop.f32.mrb[0].mxu0
    %v4496 = vadd.f32 %v3175, %v4495
    %v4497 = vpop.f32.mrb[0].mxu0
    %4498 = vdwg.mxu0
    %4499 = vst [vmem:[#allocation8] sm:$0xff] %v3794
    %4500 = vst [vmem:[#allocation8 + $0x8] sm:$0xff] %v3796
    %4501 = vst [vmem:[#allocation8 + $0x10] sm:$0xff] %v3987
    %4502 = vst [vmem:[#allocation8 + $0x18] sm:$0xff] %v3989
    %4503 = vst [vmem:[#allocation8 + $0x20] sm:$0xff] %v4180
    %4504 = vst [vmem:[#allocation8 + $0x28] sm:$0xff] %v4182
    %4505 = vst [vmem:[#allocation8 + $0x30] sm:$0xff] %v4373
    %4506 = vst [vmem:[#allocation8 + $0x38] sm:$0xff] %v3798
    %4507 = vst [vmem:[#allocation8 + $0x40] sm:$0xff] %v3800
    %4508 = vst [vmem:[#allocation8 + $0x48] sm:$0xff] %v3991
    %4509 = vst [vmem:[#allocation8 + $0x50] sm:$0xff] %v3993
    %4510 = vst [vmem:[#allocation8 + $0x58] sm:$0xff] %v4184
    %4511 = vst [vmem:[#allocation8 + $0x60] sm:$0xff] %v4186
    %4512 = vst [vmem:[#allocation8 + $0x68] sm:$0xff] %v4376
    %4513 = vst [vmem:[#allocation8 + $0x70] sm:$0xff] %v3804
    %4514 = vst [vmem:[#allocation8 + $0x78] sm:$0xff] %v3806
    %4515 = vst [vmem:[#allocation8 + $0x80] sm:$0xff] %v3997
    %4516 = vst [vmem:[#allocation8 + $0x88] sm:$0xff] %v3999
    %4517 = vst [vmem:[#allocation8 + $0x90] sm:$0xff] %v4190
    %4518 = vst [vmem:[#allocation8 + $0x98] sm:$0xff] %v4192
    %4519 = vst [vmem:[#allocation8 + $0xa0] sm:$0xff] %v4381
    %4520 = vst [vmem:[#allocation8 + $0xa8] sm:$0xff] %v3808
    %4521 = vst [vmem:[#allocation8 + $0xb0] sm:$0xff] %v3810
    %4522 = vst [vmem:[#allocation8 + $0xb8] sm:$0xff] %v4001
    %4523 = vst [vmem:[#allocation8 + $0xc0] sm:$0xff] %v4003
    %4524 = vst [vmem:[#allocation8 + $0xc8] sm:$0xff] %v4194
    %4525 = vst [vmem:[#allocation8 + $0xd0] sm:$0xff] %v4196
    %4526 = vst [vmem:[#allocation8 + $0xd8] sm:$0xff] %v4384
    %4527 = vst [vmem:[#allocation8 + $0xe0] sm:$0xff] %v3814
    %4528 = vst [vmem:[#allocation8 + $0xe8] sm:$0xff] %v3816
    %4529 = vst [vmem:[#allocation8 + $0xf0] sm:$0xff] %v4007
    %4530 = vst [vmem:[#allocation8 + $0xf8] sm:$0xff] %v4009
    %4531 = vst [vmem:[#allocation8 + $0x100] sm:$0xff] %v4200
    %4532 = vst [vmem:[#allocation8 + $0x108] sm:$0xff] %v4202
    %4533 = vst [vmem:[#allocation8 + $0x110] sm:$0xff] %v4389
    %4534 = vst [vmem:[#allocation8 + $0x118] sm:$0xff] %v3818
    %4535 = vst [vmem:[#allocation8 + $0x120] sm:$0xff] %v3820
    %4536 = vst [vmem:[#allocation8 + $0x128] sm:$0xff] %v4011
    %4537 = vst [vmem:[#allocation8 + $0x130] sm:$0xff] %v4013
    %4538 = vst [vmem:[#allocation8 + $0x138] sm:$0xff] %v4204
    %4539 = vst [vmem:[#allocation8 + $0x140] sm:$0xff] %v4206
    %4540 = vst [vmem:[#allocation8 + $0x148] sm:$0xff] %v4392
    %4541 = vst [vmem:[#allocation8 + $0x150] sm:$0xff] %v3824
    %4542 = vst [vmem:[#allocation8 + $0x158] sm:$0xff] %v3826
    %4543 = vst [vmem:[#allocation8 + $0x160] sm:$0xff] %v4017
    %4544 = vst [vmem:[#allocation8 + $0x168] sm:$0xff] %v4019
    %4545 = vst [vmem:[#allocation8 + $0x170] sm:$0xff] %v4210
    %4546 = vst [vmem:[#allocation8 + $0x178] sm:$0xff] %v4212
    %4547 = vst [vmem:[#allocation8 + $0x180] sm:$0xff] %v4397
    %4548 = vst [vmem:[#allocation8 + $0x188] sm:$0xff] %v3828
    %4549 = vst [vmem:[#allocation8 + $0x190] sm:$0xff] %v3830
    %4550 = vst [vmem:[#allocation8 + $0x198] sm:$0xff] %v4021
    %4551 = vst [vmem:[#allocation8 + $0x1a0] sm:$0xff] %v4023
    %4552 = vst [vmem:[#allocation8 + $0x1a8] sm:$0xff] %v4214
    %4553 = vst [vmem:[#allocation8 + $0x1b0] sm:$0xff] %v4216
    %4554 = vst [vmem:[#allocation8 + $0x1b8] sm:$0xff] %v4400
    %4555 = vst [vmem:[#allocation8 + $0x1c0] sm:$0xff] %v3834
    %4556 = vst [vmem:[#allocation8 + $0x1c8] sm:$0xff] %v3836
    %4557 = vst [vmem:[#allocation8 + $0x1d0] sm:$0xff] %v4027
    %4558 = vst [vmem:[#allocation8 + $0x1d8] sm:$0xff] %v4029
    %4559 = vst [vmem:[#allocation8 + $0x1e0] sm:$0xff] %v4220
    %4560 = vst [vmem:[#allocation8 + $0x1e8] sm:$0xff] %v4222
    %4561 = vst [vmem:[#allocation8 + $0x1f0] sm:$0xff] %v4405
    %4562 = vst [vmem:[#allocation8 + $0x1f8] sm:$0xff] %v3838
    %4563 = vst [vmem:[#allocation8 + $0x200] sm:$0xff] %v3840
    %4564 = vst [vmem:[#allocation8 + $0x208] sm:$0xff] %v4031
    %4565 = vst [vmem:[#allocation8 + $0x210] sm:$0xff] %v4033
    %4566 = vst [vmem:[#allocation8 + $0x218] sm:$0xff] %v4224
    %4567 = vst [vmem:[#allocation8 + $0x220] sm:$0xff] %v4226
    %4568 = vst [vmem:[#allocation8 + $0x228] sm:$0xff] %v4408
    %4569 = vst [vmem:[#allocation8 + $0x230] sm:$0xff] %v3844
    %4570 = vst [vmem:[#allocation8 + $0x238] sm:$0xff] %v3846
    %4571 = vst [vmem:[#allocation8 + $0x240] sm:$0xff] %v4037
    %4572 = vst [vmem:[#allocation8 + $0x248] sm:$0xff] %v4039
    %4573 = vst [vmem:[#allocation8 + $0x250] sm:$0xff] %v4230
    %4574 = vst [vmem:[#allocation8 + $0x258] sm:$0xff] %v4232
    %4575 = vst [vmem:[#allocation8 + $0x260] sm:$0xff] %v4413
    %4576 = vst [vmem:[#allocation8 + $0x268] sm:$0xff] %v3848
    %4577 = vst [vmem:[#allocation8 + $0x270] sm:$0xff] %v3850
    %4578 = vst [vmem:[#allocation8 + $0x278] sm:$0xff] %v4041
    %4579 = vst [vmem:[#allocation8 + $0x280] sm:$0xff] %v4043
    %4580 = vst [vmem:[#allocation8 + $0x288] sm:$0xff] %v4234
    %4581 = vst [vmem:[#allocation8 + $0x290] sm:$0xff] %v4236
    %4582 = vst [vmem:[#allocation8 + $0x298] sm:$0xff] %v4416
    %4583 = vst [vmem:[#allocation8 + $0x2a0] sm:$0xff] %v3854
    %4584 = vst [vmem:[#allocation8 + $0x2a8] sm:$0xff] %v3856
    %4585 = vst [vmem:[#allocation8 + $0x2b0] sm:$0xff] %v4047
    %4586 = vst [vmem:[#allocation8 + $0x2b8] sm:$0xff] %v4049
    %4587 = vst [vmem:[#allocation8 + $0x2c0] sm:$0xff] %v4240
    %4588 = vst [vmem:[#allocation8 + $0x2c8] sm:$0xff] %v4242
    %4589 = vst [vmem:[#allocation8 + $0x2d0] sm:$0xff] %v4421
    %4590 = vst [vmem:[#allocation8 + $0x2d8] sm:$0xff] %v3858
    %4591 = vst [vmem:[#allocation8 + $0x2e0] sm:$0xff] %v3860
    %4592 = vst [vmem:[#allocation8 + $0x2e8] sm:$0xff] %v4051
    %4593 = vst [vmem:[#allocation8 + $0x2f0] sm:$0xff] %v4053
    %4594 = vst [vmem:[#allocation8 + $0x2f8] sm:$0xff] %v4244
    %4595 = vst [vmem:[#allocation8 + $0x300] sm:$0xff] %v4246
    %4596 = vst [vmem:[#allocation8 + $0x308] sm:$0xff] %v4424
    %4597 = vst [vmem:[#allocation8 + $0x310] sm:$0xff] %v3864
    %4598 = vst [vmem:[#allocation8 + $0x318] sm:$0xff] %v3866
    %4599 = vst [vmem:[#allocation8 + $0x320] sm:$0xff] %v4057
    %4600 = vst [vmem:[#allocation8 + $0x328] sm:$0xff] %v4059
    %4601 = vst [vmem:[#allocation8 + $0x330] sm:$0xff] %v4250
    %4602 = vst [vmem:[#allocation8 + $0x338] sm:$0xff] %v4252
    %4603 = vst [vmem:[#allocation8 + $0x340] sm:$0xff] %v4429
    %4604 = vst [vmem:[#allocation8 + $0x348] sm:$0xff] %v3868
    %4605 = vst [vmem:[#allocation8 + $0x350] sm:$0xff] %v3870
    %4606 = vst [vmem:[#allocation8 + $0x358] sm:$0xff] %v4061
    %4607 = vst [vmem:[#allocation8 + $0x360] sm:$0xff] %v4063
    %4608 = vst [vmem:[#allocation8 + $0x368] sm:$0xff] %v4254
    %4609 = vst [vmem:[#allocation8 + $0x370] sm:$0xff] %v4256
    %4610 = vst [vmem:[#allocation8 + $0x378] sm:$0xff] %v4432
    %4611 = vst [vmem:[#allocation8 + $0x380] sm:$0xff] %v3874
    %4612 = vst [vmem:[#allocation8 + $0x388] sm:$0xff] %v3876
    %4613 = vst [vmem:[#allocation8 + $0x390] sm:$0xff] %v4067
    %4614 = vst [vmem:[#allocation8 + $0x398] sm:$0xff] %v4069
    %4615 = vst [vmem:[#allocation8 + $0x3a0] sm:$0xff] %v4260
    %4616 = vst [vmem:[#allocation8 + $0x3a8] sm:$0xff] %v4262
    %4617 = vst [vmem:[#allocation8 + $0x3b0] sm:$0xff] %v4437
    %4618 = vst [vmem:[#allocation8 + $0x3b8] sm:$0xff] %v3878
    %4619 = vst [vmem:[#allocation8 + $0x3c0] sm:$0xff] %v3880
    %4620 = vst [vmem:[#allocation8 + $0x3c8] sm:$0xff] %v4071
    %4621 = vst [vmem:[#allocation8 + $0x3d0] sm:$0xff] %v4073
    %4622 = vst [vmem:[#allocation8 + $0x3d8] sm:$0xff] %v4264
    %4623 = vst [vmem:[#allocation8 + $0x3e0] sm:$0xff] %v4266
    %4624 = vst [vmem:[#allocation8 + $0x3e8] sm:$0xff] %v4440
    %4625 = vst [vmem:[#allocation8 + $0x3f0] sm:$0xff] %v3884
    %4626 = vst [vmem:[#allocation8 + $0x3f8] sm:$0xff] %v3886
    %4627 = vst [vmem:[#allocation8 + $0x400] sm:$0xff] %v4077
    %4628 = vst [vmem:[#allocation8 + $0x408] sm:$0xff] %v4079
    %4629 = vst [vmem:[#allocation8 + $0x410] sm:$0xff] %v4270
    %4630 = vst [vmem:[#allocation8 + $0x418] sm:$0xff] %v4272
    %4631 = vst [vmem:[#allocation8 + $0x420] sm:$0xff] %v4445
    %4632 = vst [vmem:[#allocation8 + $0x428] sm:$0xff] %v3888
    %4633 = vst [vmem:[#allocation8 + $0x430] sm:$0xff] %v3890
    %4634 = vst [vmem:[#allocation8 + $0x438] sm:$0xff] %v4081
    %4635 = vst [vmem:[#allocation8 + $0x440] sm:$0xff] %v4083
    %4636 = vst [vmem:[#allocation8 + $0x448] sm:$0xff] %v4274
    %4637 = vst [vmem:[#allocation8 + $0x450] sm:$0xff] %v4276
    %4638 = vst [vmem:[#allocation8 + $0x458] sm:$0xff] %v4448
    %4639 = vst [vmem:[#allocation8 + $0x460] sm:$0xff] %v3894
    %4640 = vst [vmem:[#allocation8 + $0x468] sm:$0xff] %v3896
    %4641 = vst [vmem:[#allocation8 + $0x470] sm:$0xff] %v4087
    %4642 = vst [vmem:[#allocation8 + $0x478] sm:$0xff] %v4089
    %4643 = vst [vmem:[#allocation8 + $0x480] sm:$0xff] %v4280
    %4644 = vst [vmem:[#allocation8 + $0x488] sm:$0xff] %v4282
    %4645 = vst [vmem:[#allocation8 + $0x490] sm:$0xff] %v4453
    %4646 = vst [vmem:[#allocation8 + $0x498] sm:$0xff] %v3898
    %4647 = vst [vmem:[#allocation8 + $0x4a0] sm:$0xff] %v3900
    %4648 = vst [vmem:[#allocation8 + $0x4a8] sm:$0xff] %v4091
    %4649 = vst [vmem:[#allocation8 + $0x4b0] sm:$0xff] %v4093
    %4650 = vst [vmem:[#allocation8 + $0x4b8] sm:$0xff] %v4284
    %4651 = vst [vmem:[#allocation8 + $0x4c0] sm:$0xff] %v4286
    %4652 = vst [vmem:[#allocation8 + $0x4c8] sm:$0xff] %v4456
    %4653 = vst [vmem:[#allocation8 + $0x4d0] sm:$0xff] %v3904
    %4654 = vst [vmem:[#allocation8 + $0x4d8] sm:$0xff] %v3906
    %4655 = vst [vmem:[#allocation8 + $0x4e0] sm:$0xff] %v4097
    %4656 = vst [vmem:[#allocation8 + $0x4e8] sm:$0xff] %v4099
    %4657 = vst [vmem:[#allocation8 + $0x4f0] sm:$0xff] %v4290
    %4658 = vst [vmem:[#allocation8 + $0x4f8] sm:$0xff] %v4292
    %4659 = vst [vmem:[#allocation8 + $0x500] sm:$0xff] %v4461
    %4660 = vst [vmem:[#allocation8 + $0x508] sm:$0xff] %v3908
    %4661 = vst [vmem:[#allocation8 + $0x510] sm:$0xff] %v3910
    %4662 = vst [vmem:[#allocation8 + $0x518] sm:$0xff] %v4101
    %4663 = vst [vmem:[#allocation8 + $0x520] sm:$0xff] %v4103
    %4664 = vst [vmem:[#allocation8 + $0x528] sm:$0xff] %v4294
    %4665 = vst [vmem:[#allocation8 + $0x530] sm:$0xff] %v4296
    %4666 = vst [vmem:[#allocation8 + $0x538] sm:$0xff] %v4464
    %4667 = vst [vmem:[#allocation8 + $0x540] sm:$0xff] %v3914
    %4668 = vst [vmem:[#allocation8 + $0x548] sm:$0xff] %v3916
    %4669 = vst [vmem:[#allocation8 + $0x550] sm:$0xff] %v4107
    %4670 = vst [vmem:[#allocation8 + $0x558] sm:$0xff] %v4109
    %4671 = vst [vmem:[#allocation8 + $0x560] sm:$0xff] %v4300
    %4672 = vst [vmem:[#allocation8 + $0x568] sm:$0xff] %v4302
    %4673 = vst [vmem:[#allocation8 + $0x570] sm:$0xff] %v4469
    %4674 = vst [vmem:[#allocation8 + $0x578] sm:$0xff] %v3918
    %4675 = vst [vmem:[#allocation8 + $0x580] sm:$0xff] %v3920
    %4676 = vst [vmem:[#allocation8 + $0x588] sm:$0xff] %v4111
    %4677 = vst [vmem:[#allocation8 + $0x590] sm:$0xff] %v4113
    %4678 = vst [vmem:[#allocation8 + $0x598] sm:$0xff] %v4304
    %4679 = vst [vmem:[#allocation8 + $0x5a0] sm:$0xff] %v4306
    %4680 = vst [vmem:[#allocation8 + $0x5a8] sm:$0xff] %v4472
    %4681 = vst [vmem:[#allocation8 + $0x5b0] sm:$0xff] %v3924
    %4682 = vst [vmem:[#allocation8 + $0x5b8] sm:$0xff] %v3926
    %4683 = vst [vmem:[#allocation8 + $0x5c0] sm:$0xff] %v4117
    %4684 = vst [vmem:[#allocation8 + $0x5c8] sm:$0xff] %v4119
    %4685 = vst [vmem:[#allocation8 + $0x5d0] sm:$0xff] %v4310
    %4686 = vst [vmem:[#allocation8 + $0x5d8] sm:$0xff] %v4312
    %4687 = vst [vmem:[#allocation8 + $0x5e0] sm:$0xff] %v4477
    %4688 = vst [vmem:[#allocation8 + $0x5e8] sm:$0xff] %v3928
    %4689 = vst [vmem:[#allocation8 + $0x5f0] sm:$0xff] %v3930
    %4690 = vst [vmem:[#allocation8 + $0x5f8] sm:$0xff] %v4121
    %4691 = vst [vmem:[#allocation8 + $0x600] sm:$0xff] %v4123
    %4692 = vst [vmem:[#allocation8 + $0x608] sm:$0xff] %v4314
    %4693 = vst [vmem:[#allocation8 + $0x610] sm:$0xff] %v4316
    %4694 = vst [vmem:[#allocation8 + $0x618] sm:$0xff] %v4480
    %4695 = vst [vmem:[#allocation8 + $0x620] sm:$0xff] %v3934
    %4696 = vst [vmem:[#allocation8 + $0x628] sm:$0xff] %v3936
    %4697 = vst [vmem:[#allocation8 + $0x630] sm:$0xff] %v4127
    %4698 = vst [vmem:[#allocation8 + $0x638] sm:$0xff] %v4129
    %4699 = vst [vmem:[#allocation8 + $0x640] sm:$0xff] %v4320
    %4700 = vst [vmem:[#allocation8 + $0x648] sm:$0xff] %v4322
    %4701 = vst [vmem:[#allocation8 + $0x650] sm:$0xff] %v4485
    %4702 = vst [vmem:[#allocation8 + $0x658] sm:$0xff] %v3938
    %4703 = vst [vmem:[#allocation8 + $0x660] sm:$0xff] %v3940
    %4704 = vst [vmem:[#allocation8 + $0x668] sm:$0xff] %v4131
    %4705 = vst [vmem:[#allocation8 + $0x670] sm:$0xff] %v4133
    %4706 = vst [vmem:[#allocation8 + $0x678] sm:$0xff] %v4324
    %4707 = vst [vmem:[#allocation8 + $0x680] sm:$0xff] %v4326
    %4708 = vst [vmem:[#allocation8 + $0x688] sm:$0xff] %v4488
    %4709 = vst [vmem:[#allocation8 + $0x690] sm:$0xff] %v3944
    %4710 = vst [vmem:[#allocation8 + $0x698] sm:$0xff] %v3946
    %4711 = vst [vmem:[#allocation8 + $0x6a0] sm:$0xff] %v4137
    %4712 = vst [vmem:[#allocation8 + $0x6a8] sm:$0xff] %v4139
    %4713 = vst [vmem:[#allocation8 + $0x6b0] sm:$0xff] %v4330
    %4714 = vst [vmem:[#allocation8 + $0x6b8] sm:$0xff] %v4332
    %4715 = vst [vmem:[#allocation8 + $0x6c0] sm:$0xff] %v4493
    %4716 = vst [vmem:[#allocation8 + $0x6c8] sm:$0xff] %v3948
    %4717 = vst [vmem:[#allocation8 + $0x6d0] sm:$0xff] %v3950
    %4718 = vst [vmem:[#allocation8 + $0x6d8] sm:$0xff] %v4141
    %4719 = vst [vmem:[#allocation8 + $0x6e0] sm:$0xff] %v4143
    %4720 = vst [vmem:[#allocation8 + $0x6e8] sm:$0xff] %v4334
    %4721 = vst [vmem:[#allocation8 + $0x6f0] sm:$0xff] %v4336
    %4722 = vst [vmem:[#allocation8 + $0x6f8] sm:$0xff] %v4496
    // Predicated region
    $region50: #{tpu_custom_call.1} parent=1 // pred_check
      _
    $region51: #{tpu_custom_call.1} parent=1 // pred_check_branch
      %4724 = sbr.rel (0) target = $region53
    $region52: #{tpu_custom_call.1} parent=1 // pred_region
      %s4726 = ssub.s32 28672, 28672
      %4727 = vsyncadd [#allocation4], %s4726
      %s4728 = sshll.u32 [#allocation8], 4
      %s4729 = int_to_ptr.vmem [resolvable:$true] %s4728
      %4734 = dma.vmem_to_hbm [thread:$0]  %s4729, 28672, %s9, [#allocation4], 896, 896, 56
    $region53: #{tpu_custom_call.1} parent=1 // pred_fallthru
      _
    // Predicated region
    $region54: #{tpu_custom_call.1} parent=1 // pred_check
      _
    $region55: #{tpu_custom_call.1} parent=1 // pred_check_branch
      %4736 = sbr.rel (0) target = $region57
    $region56: #{tpu_custom_call.1} parent=1 // pred_region
      %4737 = dma.done [#allocation4], 28672
    $region57: #{tpu_custom_call.1} parent=1 // pred_fallthru
      _
    %4738 = vsyncpa [#allocation3], 1
    %4739 = vsyncpa [#allocation6], 1
    %4740 = vsyncpa [#allocation4], 1

</llo_original>
